<compile_context>
chip_gen: v6e
topology: v6e:2x2x1
jax: 0.10.0
libtpu: 0.0.40
codegen_flags: <defaults>
</compile_context>

<pallas_src>
import math
import jax
import jax.numpy as jnp
from jax.experimental import pallas as pl
from jax.experimental.pallas import tpu as pltpu  # noqa: F401  (not needed at this size)

# ---- hyperparameters (from the PyTorch module) ------------------------------
D = 64            # size_token_embeddings
CTX = 16          # context_length
H = 4             # num_heads
NB = 8            # num_blocks
HS = D // H       # head_size = 16
FF = 4 * D        # feed-forward hidden size (256)
LN_EPS = 1e-5     # torch.nn.LayerNorm default eps


# ------------------------------ Pallas kernel --------------------------------
def transformer_kernel(x_ref, bias_ref,
                       wqkv_ref, bqkv_ref, wp_ref, bp_ref,
                       w1_ref, b1_ref, w2_ref, b2_ref,
                       wout_ref, bout_ref,
                       out_ref):
    B, T, _ = x_ref.shape
    BT = B * T
    BH = B * H
    V = wout_ref.shape[1]
    bf16, f32 = jnp.bfloat16, jnp.float32

    # Activations live as a (B*T, D) f32 value carried through the block loop.
    x0 = x_ref[...].reshape(BT, D)

    # Causal additive bias (0 / -1e30): broadcast ONCE for all (batch, head).
    bias_b = jnp.broadcast_to(bias_ref[...], (BH, T, T))

    def norm(v):
        # gamma/beta are folded into the following matmul host-side.
        mu = jnp.mean(v, axis=-1, keepdims=True)
        var = jnp.mean((v - mu) ** 2, axis=-1, keepdims=True)
        return (v - mu) * jax.lax.rsqrt(var + LN_EPS)

    def block_body(blk, x):
        # ---- multi-head causal self-attention (pre-LN) -----------------------
        h = norm(x)
        # Fused QKV: one (BT, D) @ (D, 3D) matmul; 1/sqrt(HS) and LN gamma are
        # pre-folded into the weight, LN beta into the bias.
        qkv = jnp.dot(h.astype(bf16), wqkv_ref[blk],
                      preferred_element_type=f32) + bqkv_ref[blk]       # (BT, 3D)

        # Rearrange once to head-major (B*H, T, HS); columns are ordered
        # (which-of-qkv, head, hs), so a single swapaxes + 3 major-dim slices
        # replaces the previous 3 + 12 sub-tile lane slices per block.
        qkv = qkv.reshape(B, T, 3 * H, HS)
        qkv = jnp.swapaxes(qkv, 1, 2)                                   # (B, 3H, T, HS)
        q = qkv[:, 0 * H:1 * H].reshape(BH, T, HS).astype(bf16)
        k = qkv[:, 1 * H:2 * H].reshape(BH, T, HS).astype(bf16)
        v = qkv[:, 2 * H:3 * H].reshape(BH, T, HS).astype(bf16)

        # Batched scores + ONE softmax over all heads.
        s = jnp.einsum('nqd,nkd->nqk', q, k,
                       preferred_element_type=f32) + bias_b             # (BH, T, T)
        s = s - jnp.max(s, axis=-1, keepdims=True)
        e = jnp.exp(s)
        p = e * pl.reciprocal(jnp.sum(e, axis=-1, keepdims=True), approx=True)
        # attention dropout is identity at inference

        o = jnp.einsum('nqk,nkd->nqd', p.astype(bf16), v,
                       preferred_element_type=f32)                      # (BH, T, HS)
        # Merge heads back to a lane-dense (BT, D) slab and do ONE K=64
        # output projection per block (was 4 accumulated K=16 matmuls).
        o = jnp.swapaxes(o.reshape(B, H, T, HS), 1, 2).reshape(BT, D)
        attn = jnp.dot(o.astype(bf16), wp_ref[blk],
                       preferred_element_type=f32) + bp_ref[blk]
        x = x + attn                                                    # residual 1

        # ---- feed-forward (pre-LN) -------------------------------------------
        h2 = norm(x)
        f = jnp.dot(h2.astype(bf16), w1_ref[blk],
                    preferred_element_type=f32) + b1_ref[blk]           # gamma/beta folded
        f = jnp.maximum(f, 0.0)                                         # ReLU
        f = jnp.dot(f.astype(bf16), w2_ref[blk],
                    preferred_element_type=f32) + b2_ref[blk]
        return x + f                                                    # residual 2

    x = jax.lax.fori_loop(0, NB, block_body, x0)

    # ---- final LayerNorm + vocab projection (V = 128, lane-dense) ------------
    xf = norm(x)
    logits = jnp.dot(xf.astype(bf16), wout_ref[...],
                     preferred_element_type=f32) + bout_ref[...]
    out_ref[...] = logits.reshape(B, T, V)


# ------------------------------ host-side glue -------------------------------
def sinusoidal_pe():
    """Sinusoidal positional encoding exactly as in the PyTorch forward."""
    pos = jnp.arange(CTX, dtype=jnp.float32)[:, None]
    div = jnp.exp(jnp.arange(0, D, 2, dtype=jnp.float32) *
                  (-math.log(10000.0) / D))
    pe = jnp.zeros((CTX, D), jnp.float32)
    pe = pe.at[:, 0::2].set(jnp.sin(pos * div))
    pe = pe.at[:, 1::2].set(jnp.cos(pos * div))
    return pe


def fold_params(raw):
    """One-time host-side transform (zero runtime cost inside the kernel):

      * 1/sqrt(HS) is pre-multiplied into the Wq columns of the fused QKV weight.
      * Each LayerNorm's gamma/beta are folded into the following matmul:
            (x_hat*g + b) @ W == x_hat @ (diag(g) W) + (b @ W)
        so the kernel's LayerNorm is a bare normalize.
      * Matmul weights are cast to bf16 (MXU-native); biases stay f32.
    """
    f32, bf16 = jnp.float32, jnp.bfloat16
    scale = 1.0 / math.sqrt(HS)

    col_scale = jnp.concatenate([jnp.full((D,), scale, f32),
                                 jnp.ones((2 * D,), f32)])               # scale Wq only
    wqkv = raw['wqkv'] * col_scale[None, None, :]                        # (NB, D, 3D)
    g1 = jnp.swapaxes(raw['ln1_g'], 1, 2)                                # (NB, D, 1)
    wqkv_f = (g1 * wqkv).astype(bf16)
    bqkv_f = jnp.einsum('nrd,ndc->nrc', raw['ln1_b'], wqkv)              # (NB, 1, 3D)

    g2 = jnp.swapaxes(raw['ln2_g'], 1, 2)
    w1_f = (g2 * raw['w1']).astype(bf16)
    b1_f = jnp.einsum('nrd,ndc->nrc', raw['ln2_b'], raw['w1']) + raw['b1']

    gf = raw['lnf_g'].reshape(D, 1)
    wout_f = (gf * raw['wout']).astype(bf16)
    bout_f = raw['lnf_b'] @ raw['wout'] + raw['bout']                    # (1, V)

    return dict(
        emb=raw['emb'],
        wqkv=wqkv_f, bqkv=bqkv_f,
        wp=raw['wp'].astype(bf16), bp=raw['bp'],
        w1=w1_f, b1=b1_f,
        w2=raw['w2'].astype(bf16), b2=raw['b2'],
        wout=wout_f, bout=bout_f,
    )


def run_transformer_llm(idx, p):
    """Equivalent of TransformerLLM.forward(idx, targets=None) -> (logits, None).

    `p` is the folded parameter dict from fold_params().
    """
    B, T = idx.shape
    emb = p['emb'][idx]                                    # (B, T, D) lookup (glue)
    x = (emb + sinusoidal_pe()[:T]).astype(jnp.float32)

    # Causal mask hoisted out of the kernel as a finite additive bias.
    row = jnp.arange(T)[:, None]
    col = jnp.arange(T)[None, :]
    bias = jnp.where(col <= row, 0.0, -1e30).astype(jnp.float32)         # (T, T)

    V = p['wout'].shape[1]
    logits = pl.pallas_call(
        transformer_kernel,
        out_shape=jax.ShapeDtypeStruct((B, T, V), jnp.float32),
        # No grid: whole-array VMEM refs for every operand (total < 1 MiB).
    )(x, bias,
      p['wqkv'], p['bqkv'], p['wp'], p['bp'],
      p['w1'], p['b1'], p['w2'], p['b2'],
      p['wout'], p['bout'])

    # TODO(synk): cross-entropy loss path (targets is not None) not implemented.
    return logits, None


# --------------------------- pure-JAX reference ------------------------------
def reference_forward(idx, raw):
    """Straightforward f32 re-implementation of the PyTorch forward (eval mode)."""
    B, T = idx.shape
    x = raw['emb'][idx] + sinusoidal_pe()[:T]
    mask = jnp.tril(jnp.ones((T, T), bool))
    scale = 1.0 / math.sqrt(HS)

    def ln(v, g, b):
        mu = v.mean(-1, keepdims=True)
        var = ((v - mu) ** 2).mean(-1, keepdims=True)
        return (v - mu) / jnp.sqrt(var + LN_EPS) * g + b

    for blk in range(NB):
        h = ln(x, raw['ln1_g'][blk], raw['ln1_b'][blk])
        qkv = h @ raw['wqkv'][blk]
        q, k, v = qkv[..., :D], qkv[..., D:2 * D], qkv[..., 2 * D:]
        outs = []
        for hh in range(H):
            sl = slice(hh * HS, (hh + 1) * HS)
            w = (q[..., sl] @ jnp.swapaxes(k[..., sl], -1, -2)) * scale
            w = jnp.where(mask, w, -jnp.inf)
            w = jax.nn.softmax(w, axis=-1)
            outs.append(w @ v[..., sl])
        o = jnp.concatenate(outs, axis=-1)
        x = x + o @ raw['wp'][blk] + raw['bp'][blk]
        h2 = ln(x, raw['ln2_g'][blk], raw['ln2_b'][blk])
        f = jax.nn.relu(h2 @ raw['w1'][blk] + raw['b1'][blk])
        x = x + f @ raw['w2'][blk] + raw['b2'][blk]
    x = ln(x, raw['lnf_g'], raw['lnf_b'])
    return x @ raw['wout'] + raw['bout']


# --------------------------------- params ------------------------------------
def init_params(key, max_token_value):
    """Deterministic synthetic parameters (shapes follow the PyTorch __init__).

    Matmul weights are stored pre-transposed as (in, out) with QKV fused per
    block as (NB, D, 3*D); everything is f32 here — fold_params() does the
    scale/LN folding and the bf16 cast.
    """
    ks = jax.random.split(key, 8)
    s = 0.02
    f32 = jnp.float32
    nrm = lambda k, shp: jax.random.normal(k, shp, f32) * s
    return dict(
        emb=nrm(ks[0], (max_token_value + 1, D)),
        ln1_g=jnp.ones((NB, 1, D), f32),
        ln1_b=jnp.zeros((NB, 1, D), f32),
        wqkv=nrm(ks[1], (NB, D, 3 * D)),          # [Wq | Wk | Wv], head-major cols
        wp=nrm(ks[2], (NB, D, D)),
        bp=jnp.zeros((NB, 1, D), f32),
        ln2_g=jnp.ones((NB, 1, D), f32),
        ln2_b=jnp.zeros((NB, 1, D), f32),
        w1=nrm(ks[3], (NB, D, FF)),
        b1=jnp.zeros((NB, 1, FF), f32),
        w2=nrm(ks[4], (NB, FF, D)),
        b2=jnp.zeros((NB, 1, D), f32),
        lnf_g=jnp.ones((1, D), f32),
        lnf_b=jnp.zeros((1, D), f32),
        wout=nrm(ks[5], (D, max_token_value)),
        bout=jnp.zeros((1, max_token_value), f32),
    )


if __name__ == "__main__":
    max_token_value = 128                          # -> V = 128 (multiple of 128)
    key = jax.random.PRNGKey(0)
    k_param, k_idx = jax.random.split(key)
    raw_params = init_params(k_param, max_token_value)
    params = fold_params(raw_params)               # one-time host-side transform

    B, T = 2, CTX
    idx = jax.random.randint(k_idx, (B, T), 0, max_token_value + 1,
                             dtype=jnp.int32)

    logits, loss = run_transformer_llm(idx, params)
    jax.block_until_ready(logits)

    assert logits.shape == (B, T, max_token_value)
    assert loss is None
    assert bool(jnp.all(jnp.isfinite(logits)))

    # Cross-check against the pure-JAX f32 reference (bf16 weights + approx
    # reciprocal in the kernel -> loose tolerance).
    ref = reference_forward(idx, raw_params)
    err = float(jnp.max(jnp.abs(logits - ref)))
    assert err < 5e-2, f"max |kernel - reference| = {err}"

    print("KERNEL_OK")
</pallas_src>

<mosaic_0001>
module attributes {stable_mosaic.version = 11 : i64} {
  func.func @transformer_kernel(%arg0: memref<2x16x64xf32, #tpu.memory_space<vmem>>, %arg1: memref<16x16xf32, #tpu.memory_space<vmem>>, %arg2: memref<8x64x192xbf16, #tpu.memory_space<vmem>>, %arg3: memref<8x1x192xf32, #tpu.memory_space<vmem>>, %arg4: memref<8x64x64xbf16, #tpu.memory_space<vmem>>, %arg5: memref<8x1x64xf32, #tpu.memory_space<vmem>>, %arg6: memref<8x64x256xbf16, #tpu.memory_space<vmem>>, %arg7: memref<8x1x256xf32, #tpu.memory_space<vmem>>, %arg8: memref<8x256x64xbf16, #tpu.memory_space<vmem>>, %arg9: memref<8x1x64xf32, #tpu.memory_space<vmem>>, %arg10: memref<64x128xbf16, #tpu.memory_space<vmem>>, %arg11: memref<1x128xf32, #tpu.memory_space<vmem>>, %arg12: memref<2x16x128xf32, #tpu.memory_space<vmem>>) attributes {dimension_semantics = [], scalar_prefetch = 0 : i64, scratch_operands = 0 : i64, tpu.core_type = #tpu.core_type<tc>} {
    %c0 = arith.constant 0 : index
    %c0_0 = arith.constant 0 : index
    %c0_1 = arith.constant 0 : index
    %0 = vector.load %arg0[%c0, %c0_0, %c0_1] : memref<2x16x64xf32, #tpu.memory_space<vmem>>, vector<2x16x64xf32>
    %1 = vector.shape_cast %0 : vector<2x16x64xf32> to vector<32x64xf32>
    %c0_2 = arith.constant 0 : index
    %c0_3 = arith.constant 0 : index
    %2 = vector.load %arg1[%c0_2, %c0_3] : memref<16x16xf32, #tpu.memory_space<vmem>>, vector<16x16xf32>
    %3 = vector.shape_cast %2 : vector<16x16xf32> to vector<1x16x16xf32>
    %4 = vector.broadcast %3 : vector<1x16x16xf32> to vector<8x16x16xf32>
    %c0_i32 = arith.constant 0 : i32
    %c8_i32 = arith.constant 8 : i32
    %5 = arith.addi %c0_i32, %c8_i32 : i32
    %c1_i32 = arith.constant 1 : i32
    %6 = scf.for %arg13 = %c0_i32 to %5 step %c1_i32 iter_args(%arg14 = %1) -> (vector<32x64xf32>)  : i32 {
      %cst_17 = arith.constant dense<0.000000e+00> : vector<32xf32>
      %33 = vector.multi_reduction <add>, %arg14, %cst_17 [1] : vector<32x64xf32> to vector<32xf32>
      %34 = vector.shape_cast %33 : vector<32xf32> to vector<32x1xf32>
      %cst_18 = arith.constant 6.400000e+01 : f32
      %35 = vector.broadcast %cst_18 : f32 to vector<32x1xf32>
      %36 = arith.divf %34, %35 : vector<32x1xf32>
      %37 = vector.broadcast %36 : vector<32x1xf32> to vector<32x64xf32>
      %38 = arith.subf %arg14, %37 : vector<32x64xf32>
      %39 = arith.mulf %38, %38 : vector<32x64xf32>
      %cst_19 = arith.constant dense<0.000000e+00> : vector<32xf32>
      %40 = vector.multi_reduction <add>, %39, %cst_19 [1] : vector<32x64xf32> to vector<32xf32>
      %41 = vector.shape_cast %40 : vector<32xf32> to vector<32x1xf32>
      %cst_20 = arith.constant 6.400000e+01 : f32
      %42 = vector.broadcast %cst_20 : f32 to vector<32x1xf32>
      %43 = arith.divf %41, %42 : vector<32x1xf32>
      %44 = vector.broadcast %36 : vector<32x1xf32> to vector<32x64xf32>
      %45 = arith.subf %arg14, %44 : vector<32x64xf32>
      %cst_21 = arith.constant 9.99999974E-6 : f32
      %46 = vector.broadcast %cst_21 : f32 to vector<32x1xf32>
      %47 = arith.addf %43, %46 : vector<32x1xf32>
      %48 = math.rsqrt %47 : vector<32x1xf32>
      %49 = vector.broadcast %48 : vector<32x1xf32> to vector<32x64xf32>
      %50 = arith.mulf %45, %49 : vector<32x64xf32>
      %51 = arith.truncf %50 : vector<32x64xf32> to vector<32x64xbf16>
      %52 = arith.index_cast %arg13 : i32 to index
      %c0_22 = arith.constant 0 : index
      %c0_23 = arith.constant 0 : index
      %53 = vector.load %arg2[%52, %c0_22, %c0_23] : memref<8x64x192xbf16, #tpu.memory_space<vmem>>, vector<1x64x192xbf16>
      %54 = vector.shape_cast %53 : vector<1x64x192xbf16> to vector<64x192xbf16>
      %cst_24 = arith.constant dense<0.000000e+00> : vector<32x192xf32>
      %55 = tpu.matmul %51, %54, %cst_24 {dimension_numbers = #tpu.dot_dimension_numbers<[1], [0], [0], [1], [0, 0, 1, 1], [], []>} : vector<32x64xbf16>, vector<64x192xbf16>, vector<32x192xf32> -> vector<32x192xf32>
      %56 = arith.index_cast %arg13 : i32 to index
      %c0_25 = arith.constant 0 : index
      %c0_26 = arith.constant 0 : index
      %57 = vector.load %arg3[%56, %c0_25, %c0_26] : memref<8x1x192xf32, #tpu.memory_space<vmem>>, vector<1x1x192xf32>
      %58 = vector.shape_cast %57 : vector<1x1x192xf32> to vector<1x192xf32>
      %59 = vector.broadcast %58 : vector<1x192xf32> to vector<32x192xf32>
      %60 = arith.addf %55, %59 : vector<32x192xf32>
      %61 = vector.shape_cast %60 : vector<32x192xf32> to vector<2x16x12x16xf32>
      %62 = tpu.transpose %61, [0, 2, 1, 3] : vector<2x16x12x16xf32> -> vector<2x12x16x16xf32>
      %63 = vector.extract_strided_slice %62 {offsets = [0, 0, 0, 0], sizes = [2, 4, 16, 16], strides = [1, 1, 1, 1]} : vector<2x12x16x16xf32> to vector<2x4x16x16xf32>
      %64 = vector.shape_cast %63 : vector<2x4x16x16xf32> to vector<8x16x16xf32>
      %65 = arith.truncf %64 : vector<8x16x16xf32> to vector<8x16x16xbf16>
      %66 = vector.extract_strided_slice %62 {offsets = [0, 4, 0, 0], sizes = [2, 4, 16, 16], strides = [1, 1, 1, 1]} : vector<2x12x16x16xf32> to vector<2x4x16x16xf32>
      %67 = vector.shape_cast %66 : vector<2x4x16x16xf32> to vector<8x16x16xf32>
      %68 = arith.truncf %67 : vector<8x16x16xf32> to vector<8x16x16xbf16>
      %69 = vector.extract_strided_slice %62 {offsets = [0, 8, 0, 0], sizes = [2, 4, 16, 16], strides = [1, 1, 1, 1]} : vector<2x12x16x16xf32> to vector<2x4x16x16xf32>
      %70 = vector.shape_cast %69 : vector<2x4x16x16xf32> to vector<8x16x16xf32>
      %71 = arith.truncf %70 : vector<8x16x16xf32> to vector<8x16x16xbf16>
      "tpu.trace_start"() <{level = 10 : i32, message = "nqd,nkd->nqk"}> : () -> ()
      %cst_27 = arith.constant dense<0.000000e+00> : vector<8x16x16xf32>
      %72 = tpu.matmul %65, %68, %cst_27 {dimension_numbers = #tpu.dot_dimension_numbers<[2], [2], [1], [1], [0, 0, 0, 1, 1, 1], [0], [0]>} : vector<8x16x16xbf16>, vector<8x16x16xbf16>, vector<8x16x16xf32> -> vector<8x16x16xf32>
      "tpu.trace_stop"() : () -> ()
      %73 = arith.addf %72, %4 : vector<8x16x16xf32>
      %cst_28 = arith.constant dense<0xFF800000> : vector<8x16xf32>
      %74 = vector.multi_reduction <maximumf>, %73, %cst_28 [2] : vector<8x16x16xf32> to vector<8x16xf32>
      %75 = vector.shape_cast %74 : vector<8x16xf32> to vector<8x16x1xf32>
      %76 = vector.broadcast %75 : vector<8x16x1xf32> to vector<8x16x16xf32>
      %77 = arith.subf %73, %76 : vector<8x16x16xf32>
      %78 = math.exp %77 : vector<8x16x16xf32>
      %cst_29 = arith.constant dense<0.000000e+00> : vector<8x16xf32>
      %79 = vector.multi_reduction <add>, %78, %cst_29 [2] : vector<8x16x16xf32> to vector<8x16xf32>
      %80 = vector.shape_cast %79 : vector<8x16xf32> to vector<8x16x1xf32>
      %81 = tpu.reciprocal %80 {approx = true} : vector<8x16x1xf32> -> vector<8x16x1xf32>
      %82 = vector.broadcast %81 : vector<8x16x1xf32> to vector<8x16x16xf32>
      %83 = arith.mulf %78, %82 : vector<8x16x16xf32>
      %84 = arith.truncf %83 : vector<8x16x16xf32> to vector<8x16x16xbf16>
      "tpu.trace_start"() <{level = 10 : i32, message = "nqk,nkd->nqd"}> : () -> ()
      %cst_30 = arith.constant dense<0.000000e+00> : vector<8x16x16xf32>
      %85 = tpu.matmul %84, %71, %cst_30 {dimension_numbers = #tpu.dot_dimension_numbers<[2], [1], [1], [2], [0, 0, 0, 1, 1, 2], [0], [0]>} : vector<8x16x16xbf16>, vector<8x16x16xbf16>, vector<8x16x16xf32> -> vector<8x16x16xf32>
      "tpu.trace_stop"() : () -> ()
      %86 = vector.shape_cast %85 : vector<8x16x16xf32> to vector<2x4x16x16xf32>
      %87 = tpu.transpose %86, [0, 2, 1, 3] : vector<2x4x16x16xf32> -> vector<2x16x4x16xf32>
      %88 = vector.shape_cast %87 : vector<2x16x4x16xf32> to vector<32x64xf32>
      %89 = arith.truncf %88 : vector<32x64xf32> to vector<32x64xbf16>
      %90 = arith.index_cast %arg13 : i32 to index
      %c0_31 = arith.constant 0 : index
      %c0_32 = arith.constant 0 : index
      %91 = vector.load %arg4[%90, %c0_31, %c0_32] : memref<8x64x64xbf16, #tpu.memory_space<vmem>>, vector<1x64x64xbf16>
      %92 = vector.shape_cast %91 : vector<1x64x64xbf16> to vector<64x64xbf16>
      %cst_33 = arith.constant dense<0.000000e+00> : vector<32x64xf32>
      %93 = tpu.matmul %89, %92, %cst_33 {dimension_numbers = #tpu.dot_dimension_numbers<[1], [0], [0], [1], [0, 0, 1, 1], [], []>} : vector<32x64xbf16>, vector<64x64xbf16>, vector<32x64xf32> -> vector<32x64xf32>
      %94 = arith.index_cast %arg13 : i32 to index
      %c0_34 = arith.constant 0 : index
      %c0_35 = arith.constant 0 : index
      %95 = vector.load %arg5[%94, %c0_34, %c0_35] : memref<8x1x64xf32, #tpu.memory_space<vmem>>, vector<1x1x64xf32>
      %96 = vector.shape_cast %95 : vector<1x1x64xf32> to vector<1x64xf32>
      %97 = vector.broadcast %96 : vector<1x64xf32> to vector<32x64xf32>
      %98 = arith.addf %93, %97 : vector<32x64xf32>
      %99 = arith.addf %arg14, %98 : vector<32x64xf32>
      %cst_36 = arith.constant dense<0.000000e+00> : vector<32xf32>
      %100 = vector.multi_reduction <add>, %99, %cst_36 [1] : vector<32x64xf32> to vector<32xf32>
      %101 = vector.shape_cast %100 : vector<32xf32> to vector<32x1xf32>
      %cst_37 = arith.constant 6.400000e+01 : f32
      %102 = vector.broadcast %cst_37 : f32 to vector<32x1xf32>
      %103 = arith.divf %101, %102 : vector<32x1xf32>
      %104 = vector.broadcast %103 : vector<32x1xf32> to vector<32x64xf32>
      %105 = arith.subf %99, %104 : vector<32x64xf32>
      %106 = arith.mulf %105, %105 : vector<32x64xf32>
      %cst_38 = arith.constant dense<0.000000e+00> : vector<32xf32>
      %107 = vector.multi_reduction <add>, %106, %cst_38 [1] : vector<32x64xf32> to vector<32xf32>
      %108 = vector.shape_cast %107 : vector<32xf32> to vector<32x1xf32>
      %cst_39 = arith.constant 6.400000e+01 : f32
      %109 = vector.broadcast %cst_39 : f32 to vector<32x1xf32>
      %110 = arith.divf %108, %109 : vector<32x1xf32>
      %111 = vector.broadcast %103 : vector<32x1xf32> to vector<32x64xf32>
      %112 = arith.subf %99, %111 : vector<32x64xf32>
      %cst_40 = arith.constant 9.99999974E-6 : f32
      %113 = vector.broadcast %cst_40 : f32 to vector<32x1xf32>
      %114 = arith.addf %110, %113 : vector<32x1xf32>
      %115 = math.rsqrt %114 : vector<32x1xf32>
      %116 = vector.broadcast %115 : vector<32x1xf32> to vector<32x64xf32>
      %117 = arith.mulf %112, %116 : vector<32x64xf32>
      %118 = arith.truncf %117 : vector<32x64xf32> to vector<32x64xbf16>
      %119 = arith.index_cast %arg13 : i32 to index
      %c0_41 = arith.constant 0 : index
      %c0_42 = arith.constant 0 : index
      %120 = vector.load %arg6[%119, %c0_41, %c0_42] : memref<8x64x256xbf16, #tpu.memory_space<vmem>>, vector<1x64x256xbf16>
      %121 = vector.shape_cast %120 : vector<1x64x256xbf16> to vector<64x256xbf16>
      %cst_43 = arith.constant dense<0.000000e+00> : vector<32x256xf32>
      %122 = tpu.matmul %118, %121, %cst_43 {dimension_numbers = #tpu.dot_dimension_numbers<[1], [0], [0], [1], [0, 0, 1, 1], [], []>} : vector<32x64xbf16>, vector<64x256xbf16>, vector<32x256xf32> -> vector<32x256xf32>
      %123 = arith.index_cast %arg13 : i32 to index
      %c0_44 = arith.constant 0 : index
      %c0_45 = arith.constant 0 : index
      %124 = vector.load %arg7[%123, %c0_44, %c0_45] : memref<8x1x256xf32, #tpu.memory_space<vmem>>, vector<1x1x256xf32>
      %125 = vector.shape_cast %124 : vector<1x1x256xf32> to vector<1x256xf32>
      %126 = vector.broadcast %125 : vector<1x256xf32> to vector<32x256xf32>
      %127 = arith.addf %122, %126 : vector<32x256xf32>
      %cst_46 = arith.constant 0.000000e+00 : f32
      %128 = vector.broadcast %cst_46 : f32 to vector<32x256xf32>
      %129 = arith.maximumf %127, %128 : vector<32x256xf32>
      %130 = arith.truncf %129 : vector<32x256xf32> to vector<32x256xbf16>
      %131 = arith.index_cast %arg13 : i32 to index
      %c0_47 = arith.constant 0 : index
      %c0_48 = arith.constant 0 : index
      %132 = vector.load %arg8[%131, %c0_47, %c0_48] : memref<8x256x64xbf16, #tpu.memory_space<vmem>>, vector<1x256x64xbf16>
      %133 = vector.shape_cast %132 : vector<1x256x64xbf16> to vector<256x64xbf16>
      %cst_49 = arith.constant dense<0.000000e+00> : vector<32x64xf32>
      %134 = tpu.matmul %130, %133, %cst_49 {dimension_numbers = #tpu.dot_dimension_numbers<[1], [0], [0], [1], [0, 0, 1, 1], [], []>} : vector<32x256xbf16>, vector<256x64xbf16>, vector<32x64xf32> -> vector<32x64xf32>
      %135 = arith.index_cast %arg13 : i32 to index
      %c0_50 = arith.constant 0 : index
      %c0_51 = arith.constant 0 : index
      %136 = vector.load %arg9[%135, %c0_50, %c0_51] : memref<8x1x64xf32, #tpu.memory_space<vmem>>, vector<1x1x64xf32>
      %137 = vector.shape_cast %136 : vector<1x1x64xf32> to vector<1x64xf32>
      %138 = vector.broadcast %137 : vector<1x64xf32> to vector<32x64xf32>
      %139 = arith.addf %134, %138 : vector<32x64xf32>
      %140 = arith.addf %99, %139 : vector<32x64xf32>
      scf.yield %140 : vector<32x64xf32>
    }
    %c8_i32_4 = arith.constant 8 : i32
    %cst = arith.constant dense<0.000000e+00> : vector<32xf32>
    %7 = vector.multi_reduction <add>, %6, %cst [1] : vector<32x64xf32> to vector<32xf32>
    %8 = vector.shape_cast %7 : vector<32xf32> to vector<32x1xf32>
    %cst_5 = arith.constant 6.400000e+01 : f32
    %9 = vector.broadcast %cst_5 : f32 to vector<32x1xf32>
    %10 = arith.divf %8, %9 : vector<32x1xf32>
    %11 = vector.broadcast %10 : vector<32x1xf32> to vector<32x64xf32>
    %12 = arith.subf %6, %11 : vector<32x64xf32>
    %13 = arith.mulf %12, %12 : vector<32x64xf32>
    %cst_6 = arith.constant dense<0.000000e+00> : vector<32xf32>
    %14 = vector.multi_reduction <add>, %13, %cst_6 [1] : vector<32x64xf32> to vector<32xf32>
    %15 = vector.shape_cast %14 : vector<32xf32> to vector<32x1xf32>
    %cst_7 = arith.constant 6.400000e+01 : f32
    %16 = vector.broadcast %cst_7 : f32 to vector<32x1xf32>
    %17 = arith.divf %15, %16 : vector<32x1xf32>
    %18 = vector.broadcast %10 : vector<32x1xf32> to vector<32x64xf32>
    %19 = arith.subf %6, %18 : vector<32x64xf32>
    %cst_8 = arith.constant 9.99999974E-6 : f32
    %20 = vector.broadcast %cst_8 : f32 to vector<32x1xf32>
    %21 = arith.addf %17, %20 : vector<32x1xf32>
    %22 = math.rsqrt %21 : vector<32x1xf32>
    %23 = vector.broadcast %22 : vector<32x1xf32> to vector<32x64xf32>
    %24 = arith.mulf %19, %23 : vector<32x64xf32>
    %25 = arith.truncf %24 : vector<32x64xf32> to vector<32x64xbf16>
    %c0_9 = arith.constant 0 : index
    %c0_10 = arith.constant 0 : index
    %26 = vector.load %arg10[%c0_9, %c0_10] : memref<64x128xbf16, #tpu.memory_space<vmem>>, vector<64x128xbf16>
    %cst_11 = arith.constant dense<0.000000e+00> : vector<32x128xf32>
    %27 = tpu.matmul %25, %26, %cst_11 {dimension_numbers = #tpu.dot_dimension_numbers<[1], [0], [0], [1], [0, 0, 1, 1], [], []>} : vector<32x64xbf16>, vector<64x128xbf16>, vector<32x128xf32> -> vector<32x128xf32>
    %c0_12 = arith.constant 0 : index
    %c0_13 = arith.constant 0 : index
    %28 = vector.load %arg11[%c0_12, %c0_13] : memref<1x128xf32, #tpu.memory_space<vmem>>, vector<1x128xf32>
    %29 = vector.broadcast %28 : vector<1x128xf32> to vector<32x128xf32>
    %30 = arith.addf %27, %29 : vector<32x128xf32>
    %31 = vector.shape_cast %30 : vector<32x128xf32> to vector<2x16x128xf32>
    %c0_14 = arith.constant 0 : index
    %c0_15 = arith.constant 0 : index
    %c0_16 = arith.constant 0 : index
    %32 = vector.load %arg12[%c0_14, %c0_15, %c0_16] : memref<2x16x128xf32, #tpu.memory_space<vmem>>, vector<2x16x128xf32>
    tpu.vector_store %arg12[%c0_14, %c0_15, %c0_16], %31 {strides = array<i32>} : memref<2x16x128xf32, #tpu.memory_space<vmem>>, vector<2x16x128xf32>,
    return
  }
}

</mosaic_0001>

<llo_original>
// kernel: tpu_custom_call.1
$region0: #{tpu_custom_call.1}
  #allocation0 [shape = 'u32[]', space=smem, size = 0x4, offset = 0x4, fixed_abs, tag = 'smem constant byte address 0x4 - core index']
  #allocation1 [shape = 'u32[144,128]{1,0:T(1,128)}', space=vmem, size = 0x12000, scoped, tag = 'internal scratch']
  %s0 = inlined_call_operand.vmem [shape: f32[2,16,64], index: 0, kind: input, shape index: {}]
  %s1 = inlined_call_operand.vmem [shape: f32[16,16], index: 1, kind: input, shape index: {}]
  %s2 = inlined_call_operand.vmem [shape: bf16[8,64,192], index: 2, kind: input, shape index: {}]
  %s3 = inlined_call_operand.vmem [shape: f32[8,1,192], index: 3, kind: input, shape index: {}]
  %s4 = inlined_call_operand.vmem [shape: bf16[8,64,64], index: 4, kind: input, shape index: {}]
  %s5 = inlined_call_operand.vmem [shape: f32[8,1,64], index: 5, kind: input, shape index: {}]
  %s6 = inlined_call_operand.vmem [shape: bf16[8,64,256], index: 6, kind: input, shape index: {}]
  %s7 = inlined_call_operand.vmem [shape: f32[8,1,256], index: 7, kind: input, shape index: {}]
  %s8 = inlined_call_operand.vmem [shape: bf16[8,256,64], index: 8, kind: input, shape index: {}]
  %s9 = inlined_call_operand.vmem [shape: f32[8,1,64], index: 9, kind: input, shape index: {}]
  %s10 = inlined_call_operand.vmem [shape: bf16[64,128], index: 10, kind: input, shape index: {}]
  %s11 = inlined_call_operand.vmem [shape: f32[1,128], index: 11, kind: input, shape index: {}]
  %s12 = inlined_call_operand.hbm [shape: f32[2,16,128], index: 12, kind: output, shape index: {}]
  %s13 = sld [smem:[#allocation0]]
  $region65: #{tpu_custom_call.1} parent=0
    _
  %s15 = ssub.s32 1, %s13
  %s16 = scalar_select 0, %s15, %s13
  $region1: #{tpu_custom_call.1} parent=0
    #allocation2 [shape = 'u8[16384]{0}', space=vmem, size = 0x4000, scoped, tag = 'output window, operand 0, single buffered']
    #allocation3 [shape = 's32[1]{0}', space=sflag, size = 0x4, scoped, tag = 'scoped memory for tpu_custom_call.1']
    %17 = vsyncpa [#allocation3], 0
    // Predicated region
    $region2: #{tpu_custom_call.1} parent=1 // pred_check
      _
    $region3: #{tpu_custom_call.1} parent=1 // pred_check_branch
      %19 = sbr.rel (0) target = $region5
    $region4: #{tpu_custom_call.1} parent=1 // pred_region
      _
    $region5: #{tpu_custom_call.1} parent=1 // pred_fallthru
      _
    // Predicated region
    $region6: #{tpu_custom_call.1} parent=1 // pred_check
      _
    $region7: #{tpu_custom_call.1} parent=1 // pred_check_branch
      %21 = sbr.rel (0) target = $region9
    $region8: #{tpu_custom_call.1} parent=1 // pred_region
      _
    $region9: #{tpu_custom_call.1} parent=1 // pred_fallthru
      _
    // Predicated region
    $region10: #{tpu_custom_call.1} parent=1 // pred_check
      _
    $region11: #{tpu_custom_call.1} parent=1 // pred_check_branch
      %23 = sbr.rel (0) target = $region13
    $region12: #{tpu_custom_call.1} parent=1 // pred_region
      _
    $region13: #{tpu_custom_call.1} parent=1 // pred_fallthru
      _
    // Predicated region
    $region14: #{tpu_custom_call.1} parent=1 // pred_check
      _
    $region15: #{tpu_custom_call.1} parent=1 // pred_check_branch
      %25 = sbr.rel (0) target = $region17
    $region16: #{tpu_custom_call.1} parent=1 // pred_region
      _
    $region17: #{tpu_custom_call.1} parent=1 // pred_fallthru
      _
    // Predicated region
    $region18: #{tpu_custom_call.1} parent=1 // pred_check
      _
    $region19: #{tpu_custom_call.1} parent=1 // pred_check_branch
      %27 = sbr.rel (0) target = $region21
    $region20: #{tpu_custom_call.1} parent=1 // pred_region
      _
    $region21: #{tpu_custom_call.1} parent=1 // pred_fallthru
      _
    // Predicated region
    $region22: #{tpu_custom_call.1} parent=1 // pred_check
      _
    $region23: #{tpu_custom_call.1} parent=1 // pred_check_branch
      %29 = sbr.rel (0) target = $region25
    $region24: #{tpu_custom_call.1} parent=1 // pred_region
      _
    $region25: #{tpu_custom_call.1} parent=1 // pred_fallthru
      _
    // Predicated region
    $region26: #{tpu_custom_call.1} parent=1 // pred_check
      _
    $region27: #{tpu_custom_call.1} parent=1 // pred_check_branch
      %31 = sbr.rel (0) target = $region29
    $region28: #{tpu_custom_call.1} parent=1 // pred_region
      _
    $region29: #{tpu_custom_call.1} parent=1 // pred_fallthru
      _
    // Predicated region
    $region30: #{tpu_custom_call.1} parent=1 // pred_check
      _
    $region31: #{tpu_custom_call.1} parent=1 // pred_check_branch
      %33 = sbr.rel (0) target = $region33
    $region32: #{tpu_custom_call.1} parent=1 // pred_region
      _
    $region33: #{tpu_custom_call.1} parent=1 // pred_fallthru
      _
    // Predicated region
    $region34: #{tpu_custom_call.1} parent=1 // pred_check
      _
    $region35: #{tpu_custom_call.1} parent=1 // pred_check_branch
      %35 = sbr.rel (0) target = $region37
    $region36: #{tpu_custom_call.1} parent=1 // pred_region
      _
    $region37: #{tpu_custom_call.1} parent=1 // pred_fallthru
      _
    // Predicated region
    $region38: #{tpu_custom_call.1} parent=1 // pred_check
      _
    $region39: #{tpu_custom_call.1} parent=1 // pred_check_branch
      %37 = sbr.rel (0) target = $region41
    $region40: #{tpu_custom_call.1} parent=1 // pred_region
      _
    $region41: #{tpu_custom_call.1} parent=1 // pred_fallthru
      _
    // Predicated region
    $region42: #{tpu_custom_call.1} parent=1 // pred_check
      _
    $region43: #{tpu_custom_call.1} parent=1 // pred_check_branch
      %39 = sbr.rel (0) target = $region45
    $region44: #{tpu_custom_call.1} parent=1 // pred_region
      _
    $region45: #{tpu_custom_call.1} parent=1 // pred_fallthru
      _
    // Predicated region
    $region46: #{tpu_custom_call.1} parent=1 // pred_check
      _
    $region47: #{tpu_custom_call.1} parent=1 // pred_check_branch
      %41 = sbr.rel (0) target = $region49
    $region48: #{tpu_custom_call.1} parent=1 // pred_region
      _
    $region49: #{tpu_custom_call.1} parent=1 // pred_fallthru
      _
    %v43 = vld [vmem:[%s0] sm:$0xff]
    %v44 = vld [vmem:[%s0 + $0x8] sm:$0xff]
    %v45 = vld [vmem:[%s0 + $0x10] sm:$0xff]
    %v46 = vld [vmem:[%s0 + $0x18] sm:$0xff]
    %v47 = vld [vmem:[%s1] sm:$0xff]
    %v48 = vld [vmem:[%s1 + $0x8] sm:$0xff]
    loop: start=0, step=1, limit=8
    $region50: #{tpu_custom_call.1} parent=1 // loop_pre_header
      _
    $region51: #{tpu_custom_call.1} parent=1 // loop_header
      %s50 = sphi 0, %s54
      %p51 = scmp.ge.s32.totalorder %s50, 8
      %v55 = vphi %v43, %v4022
      %v56 = vphi %v44, %v4023
      %v57 = vphi %v45, %v4024
      %v58 = vphi %v46, %v4025
    $region52: #{tpu_custom_call.1} parent=1 // loop_header_branch
      %53 = sbr.rel (%p51) target = $region56
    $region53: #{tpu_custom_call.1} parent=1 // loop_body
      %vm59 = vcmask 523264
      %v60 = vsel %vm59, %v55, 0.0
      %61 = vadd.xlane.f32.xlu0 %v60
      %v62 = vpop.xlane.xlu0 %61
      %v63 = vsel %vm59, %v56, 0.0
      %64 = vadd.xlane.f32.xlu0 %v63
      %v65 = vpop.xlane.xlu0 %64
      %v66 = vsel %vm59, %v57, 0.0
      %67 = vadd.xlane.f32.xlu0 %v66
      %v68 = vpop.xlane.xlu0 %67
      %v69 = vsel %vm59, %v58, 0.0
      %70 = vadd.xlane.f32.xlu0 %v69
      %v71 = vpop.xlane.xlu0 %70
      %v72 = vrcp.pop 64.0
      %v73 = vmul.f32 %v62, %v72
      %v74 = vmul.f32 %v65, %v72
      %v75 = vmul.f32 %v68, %v72
      %v76 = vmul.f32 %v71, %v72
      %v77 = vsub.f32 %v55, %v73
      %v78 = vsub.f32 %v56, %v74
      %v79 = vsub.f32 %v57, %v75
      %v80 = vsub.f32 %v58, %v76
      %v81 = vmul.f32 %v77, %v77
      %v82 = vmul.f32 %v78, %v78
      %v83 = vmul.f32 %v79, %v79
      %v84 = vmul.f32 %v80, %v80
      %v85 = vsel %vm59, %v81, 0.0
      %86 = vadd.xlane.f32.xlu0 %v85
      %v87 = vpop.xlane.xlu0 %86
      %v88 = vsel %vm59, %v82, 0.0
      %89 = vadd.xlane.f32.xlu0 %v88
      %v90 = vpop.xlane.xlu0 %89
      %v91 = vsel %vm59, %v83, 0.0
      %92 = vadd.xlane.f32.xlu0 %v91
      %v93 = vpop.xlane.xlu0 %92
      %v94 = vsel %vm59, %v84, 0.0
      %95 = vadd.xlane.f32.xlu0 %v94
      %v96 = vpop.xlane.xlu0 %95
      %v97 = vmul.f32 %v87, %v72
      %v98 = vmul.f32 %v90, %v72
      %v99 = vmul.f32 %v93, %v72
      %v100 = vmul.f32 %v96, %v72
      %v101 = vadd.f32 %v97, 1e-05
      %v102 = vadd.f32 %v98, 1e-05
      %v103 = vadd.f32 %v99, 1e-05
      %v104 = vadd.f32 %v100, 1e-05
      %v105 = vrsqrt.pop %v101
      %v106 = vrsqrt.pop %v102
      %v107 = vrsqrt.pop %v103
      %v108 = vrsqrt.pop %v104
      %v109 = vmul.f32 %v77, %v105
      %v110 = vmul.f32 %v78, %v106
      %v111 = vmul.f32 %v79, %v107
      %v112 = vmul.f32 %v80, %v108
      %v113 = vpack.c.bf16 %v110, %v109
      %v114 = vpack.c.bf16 %v112, %v111
      %s115 = smul.u32 %s50, 16
      %s116 = smul.addr %s115, 4
      %s117 = scalar_lea.vmem %s2, %s116
      %v118 = vld [vmem:[%s117] sm:$0xff]
      %v119 = vld [vmem:[%s117 + $0x8] sm:$0xff]
      %v120 = vld [vmem:[%s117 + $0x10] sm:$0xff]
      %v121 = vld [vmem:[%s117 + $0x18] sm:$0xff]
      %v122 = vld [vmem:[%s117 + $0x20] sm:$0xff]
      %v123 = vld [vmem:[%s117 + $0x28] sm:$0xff]
      %v124 = vld [vmem:[%s117 + $0x30] sm:$0xff]
      %v125 = vld [vmem:[%s117 + $0x38] sm:$0xff]
      %s126 = smul.u32 %s50, 2
      %s127 = scalar_lea.vmem %s3, %s126
      %v128 = vld [vmem:[%s127] sm:$0x3]
      %v130 = vlaneseq
      %v131 = vshrl.u32 %v130, 7
      %v132 = vsub.s32 0, %v131
      %v133 = vrot.slane %v128, %v132
      %v134 = vlaneseq
      %v135 = vshrl.u32 %v134, 7
      %v136 = vsub.s32 1, %v135
      %v137 = vrot.slane %v128, %v136
      %v148 = vunpack.c.l.b16 %v118
      %v149 = vunpack.c.h.b16 %v118
      %v150 = vunpack.c.l.b16 %v119
      %v151 = vunpack.c.h.b16 %v119
      %v152 = vunpack.c.l.b16 %v120
      %v153 = vunpack.c.h.b16 %v120
      %v154 = vunpack.c.l.b16 %v121
      %v155 = vunpack.c.h.b16 %v121
      %v156 = vunpack.c.l.b16 %v122
      %v157 = vunpack.c.h.b16 %v122
      %v158 = vunpack.c.l.b16 %v123
      %v159 = vunpack.c.h.b16 %v123
      %v160 = vunpack.c.l.b16 %v124
      %v161 = vunpack.c.h.b16 %v124
      %v162 = vunpack.c.l.b16 %v125
      %v163 = vunpack.c.h.b16 %v125
      %v164 = vpack.c.b16 %v150, %v148
      %v165 = vpack.c.b16 %v151, %v149
      %v166 = vpack.c.b16 %v154, %v152
      %v167 = vpack.c.b16 %v155, %v153
      %v168 = vpack.c.b16 %v158, %v156
      %v169 = vpack.c.b16 %v159, %v157
      %v170 = vpack.c.b16 %v162, %v160
      %v171 = vpack.c.b16 %v163, %v161
      %v181 = vsel %vm59, %v113, 0
      %v184 = vsel %vm59, %v114, 0
      %186 = vmatprep.subr.bf16.mxu0 0
      %187 = vmatpush1.bf16.msra.mxu0 0
      %188 = vmatprep.subr.bf16.mxu0 0
      %189 = vmatpush1.bf16.msra.mxu0 0
      %190 = vmatprep.subr.bf16.mxu0 0
      %191 = vmatpush1.bf16.msra.mxu0 0
      %192 = vmatprep.subr.bf16.mxu0 0
      %193 = vmatpush1.bf16.msra.mxu0 0
      %194 = vmatprep.subr.bf16.mxu0 %v171
      %195 = vmatpush1.bf16.msra.mxu0 %v170
      %196 = vmatprep.subr.bf16.mxu0 %v169
      %197 = vmatpush1.bf16.msra.mxu0 %v168
      %198 = vmatprep.subr.bf16.mxu0 %v167
      %199 = vmatpush1.bf16.msra.mxu0 %v166
      %200 = vmatprep.subr.bf16.mxu0 %v165
      %201 = vmatpush1.bf16.msra.mxu0 %v164
      %202 = vmatprep.subr.bf16.mxu0 0
      %203 = vmatpush2.bf16.msra.mxu0 0
      %204 = vmatprep.subr.bf16.mxu0 0
      %205 = vmatpush2.bf16.msra.mxu0 0
      %206 = vmatprep.subr.bf16.mxu0 0
      %207 = vmatpush2.bf16.msra.mxu0 0
      %208 = vmatprep.subr.bf16.mxu0 0
      %209 = vmatpush2.bf16.msra.mxu0 0
      %210 = vmatprep.subr.bf16.mxu0 0
      %211 = vmatpush2.bf16.msra.mxu0 0
      %212 = vmatprep.subr.bf16.mxu0 0
      %213 = vmatpush2.bf16.msra.mxu0 0
      %214 = vmatprep.subr.bf16.mxu0 0
      %215 = vmatpush2.bf16.msra.mxu0 0
      %216 = vmatprep.subr.bf16.mxu0 0
      %217 = vmatpush2.bf16.msra.mxu0 0
      %218 = vmatprep.mubr.bf16.mxu0 0
      %219 = vmatmul.mubr.bf16.gmra.mxu0 %v181
      %v220 = vpop.f32.mrf.mxu0
      %v221 = vadd.f32 %v133, %v220
      %v222 = vpop.f32.mrf.mxu0
      %v223 = vadd.f32 %v137, %v222
      %v224 = vpop.f32.mrf.mxu0
      %v225 = vadd.f32 %v133, %v224
      %v226 = vpop.f32.mrf.mxu0
      %v227 = vadd.f32 %v137, %v226
      %228 = vmatprep.mubr.bf16.mxu0 0
      %229 = vmatmul.mubr.bf16.gmra.mxu0 %v184
      %v230 = vpop.f32.mrf.mxu0
      %v231 = vadd.f32 %v133, %v230
      %v232 = vpop.f32.mrf.mxu0
      %v233 = vadd.f32 %v137, %v232
      %v234 = vpop.f32.mrf.mxu0
      %v235 = vadd.f32 %v133, %v234
      %v236 = vpop.f32.mrf.mxu0
      %v237 = vadd.f32 %v137, %v236
      %238 = vdwg.mxu0
      %243 = vrot.lane.b32.xlu0 %v221, 112
      %v244 = vpop.permute.xlu0 %243
      %245 = vrot.lane.b32.xlu0 %v225, 112
      %v246 = vpop.permute.xlu0 %245
      %247 = vrot.lane.b32.xlu0 %v231, 112
      %v248 = vpop.permute.xlu0 %247
      %249 = vrot.lane.b32.xlu0 %v235, 112
      %v250 = vpop.permute.xlu0 %249
      %255 = vrot.lane.b32.xlu0 %v221, 96
      %v256 = vpop.permute.xlu0 %255
      %257 = vrot.lane.b32.xlu0 %v225, 96
      %v258 = vpop.permute.xlu0 %257
      %259 = vrot.lane.b32.xlu0 %v231, 96
      %v260 = vpop.permute.xlu0 %259
      %261 = vrot.lane.b32.xlu0 %v235, 96
      %v262 = vpop.permute.xlu0 %261
      %267 = vrot.lane.b32.xlu0 %v221, 80
      %v268 = vpop.permute.xlu0 %267
      %269 = vrot.lane.b32.xlu0 %v225, 80
      %v270 = vpop.permute.xlu0 %269
      %271 = vrot.lane.b32.xlu0 %v231, 80
      %v272 = vpop.permute.xlu0 %271
      %273 = vrot.lane.b32.xlu0 %v235, 80
      %v274 = vpop.permute.xlu0 %273
      %279 = vrot.lane.b32.xlu0 %v221, 64
      %v280 = vpop.permute.xlu0 %279
      %281 = vrot.lane.b32.xlu0 %v225, 64
      %v282 = vpop.permute.xlu0 %281
      %283 = vrot.lane.b32.xlu0 %v231, 64
      %v284 = vpop.permute.xlu0 %283
      %285 = vrot.lane.b32.xlu0 %v235, 64
      %v286 = vpop.permute.xlu0 %285
      %291 = vrot.lane.b32.xlu0 %v221, 48
      %v292 = vpop.permute.xlu0 %291
      %293 = vrot.lane.b32.xlu0 %v225, 48
      %v294 = vpop.permute.xlu0 %293
      %295 = vrot.lane.b32.xlu0 %v231, 48
      %v296 = vpop.permute.xlu0 %295
      %297 = vrot.lane.b32.xlu0 %v235, 48
      %v298 = vpop.permute.xlu0 %297
      %303 = vrot.lane.b32.xlu0 %v221, 32
      %v304 = vpop.permute.xlu0 %303
      %305 = vrot.lane.b32.xlu0 %v225, 32
      %v306 = vpop.permute.xlu0 %305
      %307 = vrot.lane.b32.xlu0 %v231, 32
      %v308 = vpop.permute.xlu0 %307
      %309 = vrot.lane.b32.xlu0 %v235, 32
      %v310 = vpop.permute.xlu0 %309
      %315 = vrot.lane.b32.xlu0 %v221, 16
      %v316 = vpop.permute.xlu0 %315
      %317 = vrot.lane.b32.xlu0 %v225, 16
      %v318 = vpop.permute.xlu0 %317
      %319 = vrot.lane.b32.xlu0 %v231, 16
      %v320 = vpop.permute.xlu0 %319
      %321 = vrot.lane.b32.xlu0 %v235, 16
      %v322 = vpop.permute.xlu0 %321
      %331 = vrot.lane.b32.xlu0 %v223, 112
      %v332 = vpop.permute.xlu0 %331
      %333 = vrot.lane.b32.xlu0 %v227, 112
      %v334 = vpop.permute.xlu0 %333
      %335 = vrot.lane.b32.xlu0 %v233, 112
      %v336 = vpop.permute.xlu0 %335
      %337 = vrot.lane.b32.xlu0 %v237, 112
      %v338 = vpop.permute.xlu0 %337
      %343 = vrot.lane.b32.xlu0 %v223, 96
      %v344 = vpop.permute.xlu0 %343
      %345 = vrot.lane.b32.xlu0 %v227, 96
      %v346 = vpop.permute.xlu0 %345
      %347 = vrot.lane.b32.xlu0 %v233, 96
      %v348 = vpop.permute.xlu0 %347
      %349 = vrot.lane.b32.xlu0 %v237, 96
      %v350 = vpop.permute.xlu0 %349
      %355 = vrot.lane.b32.xlu0 %v223, 80
      %v356 = vpop.permute.xlu0 %355
      %357 = vrot.lane.b32.xlu0 %v227, 80
      %v358 = vpop.permute.xlu0 %357
      %359 = vrot.lane.b32.xlu0 %v233, 80
      %v360 = vpop.permute.xlu0 %359
      %361 = vrot.lane.b32.xlu0 %v237, 80
      %v362 = vpop.permute.xlu0 %361
      %v367 = vcombine.low %v221, %v256
      %v368 = vcombine.high %v221, %v256
      %v370 = vunpack.c.l.s4 1983009808
      %v371 = vunpack.c.0.s8 %v370
      %v372 = vlaneseq
      %v373 = vshrl.u32 %v372, 7
      %v374 = vsub.s32 %v371, %v373
      %v375 = vrot.slane %v367, %v374
      %v377 = vunpack.c.l.s4 1983009808
      %v378 = vunpack.c.0.s8 %v377
      %v379 = vlaneseq
      %v380 = vshrl.u32 %v379, 7
      %v381 = vsub.s32 %v378, %v380
      %v382 = vrot.slane %v368, %v381
      %v383 = vcombine.low %v244, %v268
      %v384 = vcombine.high %v244, %v268
      %v386 = vunpack.c.l.s4 1983009808
      %v387 = vunpack.c.0.s8 %v386
      %v388 = vlaneseq
      %v389 = vshrl.u32 %v388, 7
      %v390 = vsub.s32 %v387, %v389
      %v391 = vrot.slane %v383, %v390
      %v393 = vunpack.c.l.s4 1983009808
      %v394 = vunpack.c.0.s8 %v393
      %v395 = vlaneseq
      %v396 = vshrl.u32 %v395, 7
      %v397 = vsub.s32 %v394, %v396
      %v398 = vrot.slane %v384, %v397
      %v399 = vcombine.low %v280, %v304
      %v400 = vcombine.high %v280, %v304
      %v402 = vunpack.c.l.s4 1983009808
      %v403 = vunpack.c.0.s8 %v402
      %v404 = vlaneseq
      %v405 = vshrl.u32 %v404, 7
      %v406 = vsub.s32 %v403, %v405
      %v407 = vrot.slane %v399, %v406
      %v409 = vunpack.c.l.s4 1983009808
      %v410 = vunpack.c.0.s8 %v409
      %v411 = vlaneseq
      %v412 = vshrl.u32 %v411, 7
      %v413 = vsub.s32 %v410, %v412
      %v414 = vrot.slane %v400, %v413
      %v415 = vcombine.low %v292, %v316
      %v416 = vcombine.high %v292, %v316
      %v418 = vunpack.c.l.s4 1983009808
      %v419 = vunpack.c.0.s8 %v418
      %v420 = vlaneseq
      %v421 = vshrl.u32 %v420, 7
      %v422 = vsub.s32 %v419, %v421
      %v423 = vrot.slane %v415, %v422
      %v425 = vunpack.c.l.s4 1983009808
      %v426 = vunpack.c.0.s8 %v425
      %v427 = vlaneseq
      %v428 = vshrl.u32 %v427, 7
      %v429 = vsub.s32 %v426, %v428
      %v430 = vrot.slane %v416, %v429
      %v431 = vcombine.low %v375, %v391
      %v432 = vcombine.high %v375, %v391
      %v434 = vunpack.c.l.s4 1934713408
      %v435 = vunpack.c.0.s8 %v434
      %v436 = vlaneseq
      %v437 = vshrl.u32 %v436, 7
      %v438 = vsub.s32 %v435, %v437
      %v439 = vrot.slane %v431, %v438
      %v441 = vunpack.c.l.s4 1934713408
      %v442 = vunpack.c.0.s8 %v441
      %v443 = vlaneseq
      %v444 = vshrl.u32 %v443, 7
      %v445 = vsub.s32 %v442, %v444
      %v446 = vrot.slane %v432, %v445
      %v447 = vcombine.low %v382, %v398
      %v448 = vcombine.high %v382, %v398
      %v450 = vunpack.c.l.s4 1934713408
      %v451 = vunpack.c.0.s8 %v450
      %v452 = vlaneseq
      %v453 = vshrl.u32 %v452, 7
      %v454 = vsub.s32 %v451, %v453
      %v455 = vrot.slane %v447, %v454
      %v457 = vunpack.c.l.s4 1934713408
      %v458 = vunpack.c.0.s8 %v457
      %v459 = vlaneseq
      %v460 = vshrl.u32 %v459, 7
      %v461 = vsub.s32 %v458, %v460
      %v462 = vrot.slane %v448, %v461
      %v463 = vcombine.low %v407, %v423
      %v464 = vcombine.high %v407, %v423
      %v466 = vunpack.c.l.s4 1934713408
      %v467 = vunpack.c.0.s8 %v466
      %v468 = vlaneseq
      %v469 = vshrl.u32 %v468, 7
      %v470 = vsub.s32 %v467, %v469
      %v471 = vrot.slane %v463, %v470
      %v473 = vunpack.c.l.s4 1934713408
      %v474 = vunpack.c.0.s8 %v473
      %v475 = vlaneseq
      %v476 = vshrl.u32 %v475, 7
      %v477 = vsub.s32 %v474, %v476
      %v478 = vrot.slane %v464, %v477
      %v479 = vcombine.low %v414, %v430
      %v480 = vcombine.high %v414, %v430
      %v482 = vunpack.c.l.s4 1934713408
      %v483 = vunpack.c.0.s8 %v482
      %v484 = vlaneseq
      %v485 = vshrl.u32 %v484, 7
      %v486 = vsub.s32 %v483, %v485
      %v487 = vrot.slane %v479, %v486
      %v489 = vunpack.c.l.s4 1934713408
      %v490 = vunpack.c.0.s8 %v489
      %v491 = vlaneseq
      %v492 = vshrl.u32 %v491, 7
      %v493 = vsub.s32 %v490, %v492
      %v494 = vrot.slane %v480, %v493
      %v495 = vcombine.low %v439, %v471
      %v496 = vcombine.high %v439, %v471
      %v497 = vcombine.low %v446, %v478
      %v498 = vcombine.high %v446, %v478
      %v499 = vcombine.low %v455, %v487
      %v500 = vcombine.high %v455, %v487
      %v501 = vcombine.low %v462, %v494
      %v502 = vcombine.high %v462, %v494
      %v503 = vcombine.low %v223, %v344
      %v504 = vcombine.high %v223, %v344
      %v506 = vunpack.c.l.s4 1983009808
      %v507 = vunpack.c.0.s8 %v506
      %v508 = vlaneseq
      %v509 = vshrl.u32 %v508, 7
      %v510 = vsub.s32 %v507, %v509
      %v511 = vrot.slane %v503, %v510
      %v513 = vunpack.c.l.s4 1983009808
      %v514 = vunpack.c.0.s8 %v513
      %v515 = vlaneseq
      %v516 = vshrl.u32 %v515, 7
      %v517 = vsub.s32 %v514, %v516
      %v518 = vrot.slane %v504, %v517
      %v519 = vcombine.low %v332, %v356
      %v520 = vcombine.high %v332, %v356
      %v522 = vunpack.c.l.s4 1983009808
      %v523 = vunpack.c.0.s8 %v522
      %v524 = vlaneseq
      %v525 = vshrl.u32 %v524, 7
      %v526 = vsub.s32 %v523, %v525
      %v527 = vrot.slane %v519, %v526
      %v529 = vunpack.c.l.s4 1983009808
      %v530 = vunpack.c.0.s8 %v529
      %v531 = vlaneseq
      %v532 = vshrl.u32 %v531, 7
      %v533 = vsub.s32 %v530, %v532
      %v534 = vrot.slane %v520, %v533
      %v535 = vcombine.low %v511, %v527
      %v536 = vcombine.high %v511, %v527
      %v538 = vunpack.c.l.s4 1934713408
      %v539 = vunpack.c.0.s8 %v538
      %v540 = vlaneseq
      %v541 = vshrl.u32 %v540, 7
      %v542 = vsub.s32 %v539, %v541
      %v543 = vrot.slane %v535, %v542
      %v545 = vunpack.c.l.s4 1934713408
      %v546 = vunpack.c.0.s8 %v545
      %v547 = vlaneseq
      %v548 = vshrl.u32 %v547, 7
      %v549 = vsub.s32 %v546, %v548
      %v550 = vrot.slane %v536, %v549
      %v551 = vcombine.low %v518, %v534
      %v552 = vcombine.high %v518, %v534
      %v554 = vunpack.c.l.s4 1934713408
      %v555 = vunpack.c.0.s8 %v554
      %v556 = vlaneseq
      %v557 = vshrl.u32 %v556, 7
      %v558 = vsub.s32 %v555, %v557
      %v559 = vrot.slane %v551, %v558
      %v561 = vunpack.c.l.s4 1934713408
      %v562 = vunpack.c.0.s8 %v561
      %v563 = vlaneseq
      %v564 = vshrl.u32 %v563, 7
      %v565 = vsub.s32 %v562, %v564
      %v566 = vrot.slane %v552, %v565
      %v567 = vcombine.high %v543, 0.0
      %v568 = vcombine.high %v550, 0.0
      %v569 = vcombine.high %v559, 0.0
      %v570 = vcombine.high %v566, 0.0
      %v571 = vcombine.low %v225, %v258
      %v572 = vcombine.high %v225, %v258
      %v574 = vunpack.c.l.s4 1983009808
      %v575 = vunpack.c.0.s8 %v574
      %v576 = vlaneseq
      %v577 = vshrl.u32 %v576, 7
      %v578 = vsub.s32 %v575, %v577
      %v579 = vrot.slane %v571, %v578
      %v581 = vunpack.c.l.s4 1983009808
      %v582 = vunpack.c.0.s8 %v581
      %v583 = vlaneseq
      %v584 = vshrl.u32 %v583, 7
      %v585 = vsub.s32 %v582, %v584
      %v586 = vrot.slane %v572, %v585
      %v587 = vcombine.low %v246, %v270
      %v588 = vcombine.high %v246, %v270
      %v590 = vunpack.c.l.s4 1983009808
      %v591 = vunpack.c.0.s8 %v590
      %v592 = vlaneseq
      %v593 = vshrl.u32 %v592, 7
      %v594 = vsub.s32 %v591, %v593
      %v595 = vrot.slane %v587, %v594
      %v597 = vunpack.c.l.s4 1983009808
      %v598 = vunpack.c.0.s8 %v597
      %v599 = vlaneseq
      %v600 = vshrl.u32 %v599, 7
      %v601 = vsub.s32 %v598, %v600
      %v602 = vrot.slane %v588, %v601
      %v603 = vcombine.low %v282, %v306
      %v604 = vcombine.high %v282, %v306
      %v606 = vunpack.c.l.s4 1983009808
      %v607 = vunpack.c.0.s8 %v606
      %v608 = vlaneseq
      %v609 = vshrl.u32 %v608, 7
      %v610 = vsub.s32 %v607, %v609
      %v611 = vrot.slane %v603, %v610
      %v613 = vunpack.c.l.s4 1983009808
      %v614 = vunpack.c.0.s8 %v613
      %v615 = vlaneseq
      %v616 = vshrl.u32 %v615, 7
      %v617 = vsub.s32 %v614, %v616
      %v618 = vrot.slane %v604, %v617
      %v619 = vcombine.low %v294, %v318
      %v620 = vcombine.high %v294, %v318
      %v622 = vunpack.c.l.s4 1983009808
      %v623 = vunpack.c.0.s8 %v622
      %v624 = vlaneseq
      %v625 = vshrl.u32 %v624, 7
      %v626 = vsub.s32 %v623, %v625
      %v627 = vrot.slane %v619, %v626
      %v629 = vunpack.c.l.s4 1983009808
      %v630 = vunpack.c.0.s8 %v629
      %v631 = vlaneseq
      %v632 = vshrl.u32 %v631, 7
      %v633 = vsub.s32 %v630, %v632
      %v634 = vrot.slane %v620, %v633
      %v635 = vcombine.low %v579, %v595
      %v636 = vcombine.high %v579, %v595
      %v638 = vunpack.c.l.s4 1934713408
      %v639 = vunpack.c.0.s8 %v638
      %v640 = vlaneseq
      %v641 = vshrl.u32 %v640, 7
      %v642 = vsub.s32 %v639, %v641
      %v643 = vrot.slane %v635, %v642
      %v645 = vunpack.c.l.s4 1934713408
      %v646 = vunpack.c.0.s8 %v645
      %v647 = vlaneseq
      %v648 = vshrl.u32 %v647, 7
      %v649 = vsub.s32 %v646, %v648
      %v650 = vrot.slane %v636, %v649
      %v651 = vcombine.low %v586, %v602
      %v652 = vcombine.high %v586, %v602
      %v654 = vunpack.c.l.s4 1934713408
      %v655 = vunpack.c.0.s8 %v654
      %v656 = vlaneseq
      %v657 = vshrl.u32 %v656, 7
      %v658 = vsub.s32 %v655, %v657
      %v659 = vrot.slane %v651, %v658
      %v661 = vunpack.c.l.s4 1934713408
      %v662 = vunpack.c.0.s8 %v661
      %v663 = vlaneseq
      %v664 = vshrl.u32 %v663, 7
      %v665 = vsub.s32 %v662, %v664
      %v666 = vrot.slane %v652, %v665
      %v667 = vcombine.low %v611, %v627
      %v668 = vcombine.high %v611, %v627
      %v670 = vunpack.c.l.s4 1934713408
      %v671 = vunpack.c.0.s8 %v670
      %v672 = vlaneseq
      %v673 = vshrl.u32 %v672, 7
      %v674 = vsub.s32 %v671, %v673
      %v675 = vrot.slane %v667, %v674
      %v677 = vunpack.c.l.s4 1934713408
      %v678 = vunpack.c.0.s8 %v677
      %v679 = vlaneseq
      %v680 = vshrl.u32 %v679, 7
      %v681 = vsub.s32 %v678, %v680
      %v682 = vrot.slane %v668, %v681
      %v683 = vcombine.low %v618, %v634
      %v684 = vcombine.high %v618, %v634
      %v686 = vunpack.c.l.s4 1934713408
      %v687 = vunpack.c.0.s8 %v686
      %v688 = vlaneseq
      %v689 = vshrl.u32 %v688, 7
      %v690 = vsub.s32 %v687, %v689
      %v691 = vrot.slane %v683, %v690
      %v693 = vunpack.c.l.s4 1934713408
      %v694 = vunpack.c.0.s8 %v693
      %v695 = vlaneseq
      %v696 = vshrl.u32 %v695, 7
      %v697 = vsub.s32 %v694, %v696
      %v698 = vrot.slane %v684, %v697
      %v699 = vcombine.low %v643, %v675
      %v700 = vcombine.high %v643, %v675
      %v701 = vcombine.low %v650, %v682
      %v702 = vcombine.high %v650, %v682
      %v703 = vcombine.low %v659, %v691
      %v704 = vcombine.high %v659, %v691
      %v705 = vcombine.low %v666, %v698
      %v706 = vcombine.high %v666, %v698
      %v707 = vcombine.low %v227, %v346
      %v708 = vcombine.high %v227, %v346
      %v710 = vunpack.c.l.s4 1983009808
      %v711 = vunpack.c.0.s8 %v710
      %v712 = vlaneseq
      %v713 = vshrl.u32 %v712, 7
      %v714 = vsub.s32 %v711, %v713
      %v715 = vrot.slane %v707, %v714
      %v717 = vunpack.c.l.s4 1983009808
      %v718 = vunpack.c.0.s8 %v717
      %v719 = vlaneseq
      %v720 = vshrl.u32 %v719, 7
      %v721 = vsub.s32 %v718, %v720
      %v722 = vrot.slane %v708, %v721
      %v723 = vcombine.low %v334, %v358
      %v724 = vcombine.high %v334, %v358
      %v726 = vunpack.c.l.s4 1983009808
      %v727 = vunpack.c.0.s8 %v726
      %v728 = vlaneseq
      %v729 = vshrl.u32 %v728, 7
      %v730 = vsub.s32 %v727, %v729
      %v731 = vrot.slane %v723, %v730
      %v733 = vunpack.c.l.s4 1983009808
      %v734 = vunpack.c.0.s8 %v733
      %v735 = vlaneseq
      %v736 = vshrl.u32 %v735, 7
      %v737 = vsub.s32 %v734, %v736
      %v738 = vrot.slane %v724, %v737
      %v739 = vcombine.low %v715, %v731
      %v740 = vcombine.high %v715, %v731
      %v742 = vunpack.c.l.s4 1934713408
      %v743 = vunpack.c.0.s8 %v742
      %v744 = vlaneseq
      %v745 = vshrl.u32 %v744, 7
      %v746 = vsub.s32 %v743, %v745
      %v747 = vrot.slane %v739, %v746
      %v749 = vunpack.c.l.s4 1934713408
      %v750 = vunpack.c.0.s8 %v749
      %v751 = vlaneseq
      %v752 = vshrl.u32 %v751, 7
      %v753 = vsub.s32 %v750, %v752
      %v754 = vrot.slane %v740, %v753
      %v755 = vcombine.low %v722, %v738
      %v756 = vcombine.high %v722, %v738
      %v758 = vunpack.c.l.s4 1934713408
      %v759 = vunpack.c.0.s8 %v758
      %v760 = vlaneseq
      %v761 = vshrl.u32 %v760, 7
      %v762 = vsub.s32 %v759, %v761
      %v763 = vrot.slane %v755, %v762
      %v765 = vunpack.c.l.s4 1934713408
      %v766 = vunpack.c.0.s8 %v765
      %v767 = vlaneseq
      %v768 = vshrl.u32 %v767, 7
      %v769 = vsub.s32 %v766, %v768
      %v770 = vrot.slane %v756, %v769
      %v771 = vcombine.high %v747, 0.0
      %v772 = vcombine.high %v754, 0.0
      %v773 = vcombine.high %v763, 0.0
      %v774 = vcombine.high %v770, 0.0
      %v775 = vcombine.low %v231, %v260
      %v776 = vcombine.high %v231, %v260
      %v778 = vunpack.c.l.s4 1983009808
      %v779 = vunpack.c.0.s8 %v778
      %v780 = vlaneseq
      %v781 = vshrl.u32 %v780, 7
      %v782 = vsub.s32 %v779, %v781
      %v783 = vrot.slane %v775, %v782
      %v785 = vunpack.c.l.s4 1983009808
      %v786 = vunpack.c.0.s8 %v785
      %v787 = vlaneseq
      %v788 = vshrl.u32 %v787, 7
      %v789 = vsub.s32 %v786, %v788
      %v790 = vrot.slane %v776, %v789
      %v791 = vcombine.low %v248, %v272
      %v792 = vcombine.high %v248, %v272
      %v794 = vunpack.c.l.s4 1983009808
      %v795 = vunpack.c.0.s8 %v794
      %v796 = vlaneseq
      %v797 = vshrl.u32 %v796, 7
      %v798 = vsub.s32 %v795, %v797
      %v799 = vrot.slane %v791, %v798
      %v801 = vunpack.c.l.s4 1983009808
      %v802 = vunpack.c.0.s8 %v801
      %v803 = vlaneseq
      %v804 = vshrl.u32 %v803, 7
      %v805 = vsub.s32 %v802, %v804
      %v806 = vrot.slane %v792, %v805
      %v807 = vcombine.low %v284, %v308
      %v808 = vcombine.high %v284, %v308
      %v810 = vunpack.c.l.s4 1983009808
      %v811 = vunpack.c.0.s8 %v810
      %v812 = vlaneseq
      %v813 = vshrl.u32 %v812, 7
      %v814 = vsub.s32 %v811, %v813
      %v815 = vrot.slane %v807, %v814
      %v817 = vunpack.c.l.s4 1983009808
      %v818 = vunpack.c.0.s8 %v817
      %v819 = vlaneseq
      %v820 = vshrl.u32 %v819, 7
      %v821 = vsub.s32 %v818, %v820
      %v822 = vrot.slane %v808, %v821
      %v823 = vcombine.low %v296, %v320
      %v824 = vcombine.high %v296, %v320
      %v826 = vunpack.c.l.s4 1983009808
      %v827 = vunpack.c.0.s8 %v826
      %v828 = vlaneseq
      %v829 = vshrl.u32 %v828, 7
      %v830 = vsub.s32 %v827, %v829
      %v831 = vrot.slane %v823, %v830
      %v833 = vunpack.c.l.s4 1983009808
      %v834 = vunpack.c.0.s8 %v833
      %v835 = vlaneseq
      %v836 = vshrl.u32 %v835, 7
      %v837 = vsub.s32 %v834, %v836
      %v838 = vrot.slane %v824, %v837
      %v839 = vcombine.low %v783, %v799
      %v840 = vcombine.high %v783, %v799
      %v842 = vunpack.c.l.s4 1934713408
      %v843 = vunpack.c.0.s8 %v842
      %v844 = vlaneseq
      %v845 = vshrl.u32 %v844, 7
      %v846 = vsub.s32 %v843, %v845
      %v847 = vrot.slane %v839, %v846
      %v849 = vunpack.c.l.s4 1934713408
      %v850 = vunpack.c.0.s8 %v849
      %v851 = vlaneseq
      %v852 = vshrl.u32 %v851, 7
      %v853 = vsub.s32 %v850, %v852
      %v854 = vrot.slane %v840, %v853
      %v855 = vcombine.low %v790, %v806
      %v856 = vcombine.high %v790, %v806
      %v858 = vunpack.c.l.s4 1934713408
      %v859 = vunpack.c.0.s8 %v858
      %v860 = vlaneseq
      %v861 = vshrl.u32 %v860, 7
      %v862 = vsub.s32 %v859, %v861
      %v863 = vrot.slane %v855, %v862
      %v865 = vunpack.c.l.s4 1934713408
      %v866 = vunpack.c.0.s8 %v865
      %v867 = vlaneseq
      %v868 = vshrl.u32 %v867, 7
      %v869 = vsub.s32 %v866, %v868
      %v870 = vrot.slane %v856, %v869
      %v871 = vcombine.low %v815, %v831
      %v872 = vcombine.high %v815, %v831
      %v874 = vunpack.c.l.s4 1934713408
      %v875 = vunpack.c.0.s8 %v874
      %v876 = vlaneseq
      %v877 = vshrl.u32 %v876, 7
      %v878 = vsub.s32 %v875, %v877
      %v879 = vrot.slane %v871, %v878
      %v881 = vunpack.c.l.s4 1934713408
      %v882 = vunpack.c.0.s8 %v881
      %v883 = vlaneseq
      %v884 = vshrl.u32 %v883, 7
      %v885 = vsub.s32 %v882, %v884
      %v886 = vrot.slane %v872, %v885
      %v887 = vcombine.low %v822, %v838
      %v888 = vcombine.high %v822, %v838
      %v890 = vunpack.c.l.s4 1934713408
      %v891 = vunpack.c.0.s8 %v890
      %v892 = vlaneseq
      %v893 = vshrl.u32 %v892, 7
      %v894 = vsub.s32 %v891, %v893
      %v895 = vrot.slane %v887, %v894
      %v897 = vunpack.c.l.s4 1934713408
      %v898 = vunpack.c.0.s8 %v897
      %v899 = vlaneseq
      %v900 = vshrl.u32 %v899, 7
      %v901 = vsub.s32 %v898, %v900
      %v902 = vrot.slane %v888, %v901
      %v903 = vcombine.low %v847, %v879
      %v904 = vcombine.high %v847, %v879
      %v905 = vcombine.low %v854, %v886
      %v906 = vcombine.high %v854, %v886
      %v907 = vcombine.low %v863, %v895
      %v908 = vcombine.high %v863, %v895
      %v909 = vcombine.low %v870, %v902
      %v910 = vcombine.high %v870, %v902
      %v911 = vcombine.low %v233, %v348
      %v912 = vcombine.high %v233, %v348
      %v914 = vunpack.c.l.s4 1983009808
      %v915 = vunpack.c.0.s8 %v914
      %v916 = vlaneseq
      %v917 = vshrl.u32 %v916, 7
      %v918 = vsub.s32 %v915, %v917
      %v919 = vrot.slane %v911, %v918
      %v921 = vunpack.c.l.s4 1983009808
      %v922 = vunpack.c.0.s8 %v921
      %v923 = vlaneseq
      %v924 = vshrl.u32 %v923, 7
      %v925 = vsub.s32 %v922, %v924
      %v926 = vrot.slane %v912, %v925
      %v927 = vcombine.low %v336, %v360
      %v928 = vcombine.high %v336, %v360
      %v930 = vunpack.c.l.s4 1983009808
      %v931 = vunpack.c.0.s8 %v930
      %v932 = vlaneseq
      %v933 = vshrl.u32 %v932, 7
      %v934 = vsub.s32 %v931, %v933
      %v935 = vrot.slane %v927, %v934
      %v937 = vunpack.c.l.s4 1983009808
      %v938 = vunpack.c.0.s8 %v937
      %v939 = vlaneseq
      %v940 = vshrl.u32 %v939, 7
      %v941 = vsub.s32 %v938, %v940
      %v942 = vrot.slane %v928, %v941
      %v943 = vcombine.low %v919, %v935
      %v944 = vcombine.high %v919, %v935
      %v946 = vunpack.c.l.s4 1934713408
      %v947 = vunpack.c.0.s8 %v946
      %v948 = vlaneseq
      %v949 = vshrl.u32 %v948, 7
      %v950 = vsub.s32 %v947, %v949
      %v951 = vrot.slane %v943, %v950
      %v953 = vunpack.c.l.s4 1934713408
      %v954 = vunpack.c.0.s8 %v953
      %v955 = vlaneseq
      %v956 = vshrl.u32 %v955, 7
      %v957 = vsub.s32 %v954, %v956
      %v958 = vrot.slane %v944, %v957
      %v959 = vcombine.low %v926, %v942
      %v960 = vcombine.high %v926, %v942
      %v962 = vunpack.c.l.s4 1934713408
      %v963 = vunpack.c.0.s8 %v962
      %v964 = vlaneseq
      %v965 = vshrl.u32 %v964, 7
      %v966 = vsub.s32 %v963, %v965
      %v967 = vrot.slane %v959, %v966
      %v969 = vunpack.c.l.s4 1934713408
      %v970 = vunpack.c.0.s8 %v969
      %v971 = vlaneseq
      %v972 = vshrl.u32 %v971, 7
      %v973 = vsub.s32 %v970, %v972
      %v974 = vrot.slane %v960, %v973
      %v975 = vcombine.high %v951, 0.0
      %v976 = vcombine.high %v958, 0.0
      %v977 = vcombine.high %v967, 0.0
      %v978 = vcombine.high %v974, 0.0
      %v979 = vcombine.low %v235, %v262
      %v980 = vcombine.high %v235, %v262
      %v982 = vunpack.c.l.s4 1983009808
      %v983 = vunpack.c.0.s8 %v982
      %v984 = vlaneseq
      %v985 = vshrl.u32 %v984, 7
      %v986 = vsub.s32 %v983, %v985
      %v987 = vrot.slane %v979, %v986
      %v989 = vunpack.c.l.s4 1983009808
      %v990 = vunpack.c.0.s8 %v989
      %v991 = vlaneseq
      %v992 = vshrl.u32 %v991, 7
      %v993 = vsub.s32 %v990, %v992
      %v994 = vrot.slane %v980, %v993
      %v995 = vcombine.low %v250, %v274
      %v996 = vcombine.high %v250, %v274
      %v998 = vunpack.c.l.s4 1983009808
      %v999 = vunpack.c.0.s8 %v998
      %v1000 = vlaneseq
      %v1001 = vshrl.u32 %v1000, 7
      %v1002 = vsub.s32 %v999, %v1001
      %v1003 = vrot.slane %v995, %v1002
      %v1005 = vunpack.c.l.s4 1983009808
      %v1006 = vunpack.c.0.s8 %v1005
      %v1007 = vlaneseq
      %v1008 = vshrl.u32 %v1007, 7
      %v1009 = vsub.s32 %v1006, %v1008
      %v1010 = vrot.slane %v996, %v1009
      %v1011 = vcombine.low %v286, %v310
      %v1012 = vcombine.high %v286, %v310
      %v1014 = vunpack.c.l.s4 1983009808
      %v1015 = vunpack.c.0.s8 %v1014
      %v1016 = vlaneseq
      %v1017 = vshrl.u32 %v1016, 7
      %v1018 = vsub.s32 %v1015, %v1017
      %v1019 = vrot.slane %v1011, %v1018
      %v1021 = vunpack.c.l.s4 1983009808
      %v1022 = vunpack.c.0.s8 %v1021
      %v1023 = vlaneseq
      %v1024 = vshrl.u32 %v1023, 7
      %v1025 = vsub.s32 %v1022, %v1024
      %v1026 = vrot.slane %v1012, %v1025
      %v1027 = vcombine.low %v298, %v322
      %v1028 = vcombine.high %v298, %v322
      %v1030 = vunpack.c.l.s4 1983009808
      %v1031 = vunpack.c.0.s8 %v1030
      %v1032 = vlaneseq
      %v1033 = vshrl.u32 %v1032, 7
      %v1034 = vsub.s32 %v1031, %v1033
      %v1035 = vrot.slane %v1027, %v1034
      %v1037 = vunpack.c.l.s4 1983009808
      %v1038 = vunpack.c.0.s8 %v1037
      %v1039 = vlaneseq
      %v1040 = vshrl.u32 %v1039, 7
      %v1041 = vsub.s32 %v1038, %v1040
      %v1042 = vrot.slane %v1028, %v1041
      %v1043 = vcombine.low %v987, %v1003
      %v1044 = vcombine.high %v987, %v1003
      %v1046 = vunpack.c.l.s4 1934713408
      %v1047 = vunpack.c.0.s8 %v1046
      %v1048 = vlaneseq
      %v1049 = vshrl.u32 %v1048, 7
      %v1050 = vsub.s32 %v1047, %v1049
      %v1051 = vrot.slane %v1043, %v1050
      %v1053 = vunpack.c.l.s4 1934713408
      %v1054 = vunpack.c.0.s8 %v1053
      %v1055 = vlaneseq
      %v1056 = vshrl.u32 %v1055, 7
      %v1057 = vsub.s32 %v1054, %v1056
      %v1058 = vrot.slane %v1044, %v1057
      %v1059 = vcombine.low %v994, %v1010
      %v1060 = vcombine.high %v994, %v1010
      %v1062 = vunpack.c.l.s4 1934713408
      %v1063 = vunpack.c.0.s8 %v1062
      %v1064 = vlaneseq
      %v1065 = vshrl.u32 %v1064, 7
      %v1066 = vsub.s32 %v1063, %v1065
      %v1067 = vrot.slane %v1059, %v1066
      %v1069 = vunpack.c.l.s4 1934713408
      %v1070 = vunpack.c.0.s8 %v1069
      %v1071 = vlaneseq
      %v1072 = vshrl.u32 %v1071, 7
      %v1073 = vsub.s32 %v1070, %v1072
      %v1074 = vrot.slane %v1060, %v1073
      %v1075 = vcombine.low %v1019, %v1035
      %v1076 = vcombine.high %v1019, %v1035
      %v1078 = vunpack.c.l.s4 1934713408
      %v1079 = vunpack.c.0.s8 %v1078
      %v1080 = vlaneseq
      %v1081 = vshrl.u32 %v1080, 7
      %v1082 = vsub.s32 %v1079, %v1081
      %v1083 = vrot.slane %v1075, %v1082
      %v1085 = vunpack.c.l.s4 1934713408
      %v1086 = vunpack.c.0.s8 %v1085
      %v1087 = vlaneseq
      %v1088 = vshrl.u32 %v1087, 7
      %v1089 = vsub.s32 %v1086, %v1088
      %v1090 = vrot.slane %v1076, %v1089
      %v1091 = vcombine.low %v1026, %v1042
      %v1092 = vcombine.high %v1026, %v1042
      %v1094 = vunpack.c.l.s4 1934713408
      %v1095 = vunpack.c.0.s8 %v1094
      %v1096 = vlaneseq
      %v1097 = vshrl.u32 %v1096, 7
      %v1098 = vsub.s32 %v1095, %v1097
      %v1099 = vrot.slane %v1091, %v1098
      %v1101 = vunpack.c.l.s4 1934713408
      %v1102 = vunpack.c.0.s8 %v1101
      %v1103 = vlaneseq
      %v1104 = vshrl.u32 %v1103, 7
      %v1105 = vsub.s32 %v1102, %v1104
      %v1106 = vrot.slane %v1092, %v1105
      %v1107 = vcombine.low %v1051, %v1083
      %v1108 = vcombine.high %v1051, %v1083
      %v1109 = vcombine.low %v1058, %v1090
      %v1110 = vcombine.high %v1058, %v1090
      %v1111 = vcombine.low %v1067, %v1099
      %v1112 = vcombine.high %v1067, %v1099
      %v1113 = vcombine.low %v1074, %v1106
      %v1114 = vcombine.high %v1074, %v1106
      %v1115 = vcombine.low %v237, %v350
      %v1116 = vcombine.high %v237, %v350
      %v1118 = vunpack.c.l.s4 1983009808
      %v1119 = vunpack.c.0.s8 %v1118
      %v1120 = vlaneseq
      %v1121 = vshrl.u32 %v1120, 7
      %v1122 = vsub.s32 %v1119, %v1121
      %v1123 = vrot.slane %v1115, %v1122
      %v1125 = vunpack.c.l.s4 1983009808
      %v1126 = vunpack.c.0.s8 %v1125
      %v1127 = vlaneseq
      %v1128 = vshrl.u32 %v1127, 7
      %v1129 = vsub.s32 %v1126, %v1128
      %v1130 = vrot.slane %v1116, %v1129
      %v1131 = vcombine.low %v338, %v362
      %v1132 = vcombine.high %v338, %v362
      %v1134 = vunpack.c.l.s4 1983009808
      %v1135 = vunpack.c.0.s8 %v1134
      %v1136 = vlaneseq
      %v1137 = vshrl.u32 %v1136, 7
      %v1138 = vsub.s32 %v1135, %v1137
      %v1139 = vrot.slane %v1131, %v1138
      %v1141 = vunpack.c.l.s4 1983009808
      %v1142 = vunpack.c.0.s8 %v1141
      %v1143 = vlaneseq
      %v1144 = vshrl.u32 %v1143, 7
      %v1145 = vsub.s32 %v1142, %v1144
      %v1146 = vrot.slane %v1132, %v1145
      %v1147 = vcombine.low %v1123, %v1139
      %v1148 = vcombine.high %v1123, %v1139
      %v1150 = vunpack.c.l.s4 1934713408
      %v1151 = vunpack.c.0.s8 %v1150
      %v1152 = vlaneseq
      %v1153 = vshrl.u32 %v1152, 7
      %v1154 = vsub.s32 %v1151, %v1153
      %v1155 = vrot.slane %v1147, %v1154
      %v1157 = vunpack.c.l.s4 1934713408
      %v1158 = vunpack.c.0.s8 %v1157
      %v1159 = vlaneseq
      %v1160 = vshrl.u32 %v1159, 7
      %v1161 = vsub.s32 %v1158, %v1160
      %v1162 = vrot.slane %v1148, %v1161
      %v1163 = vcombine.low %v1130, %v1146
      %v1164 = vcombine.high %v1130, %v1146
      %v1166 = vunpack.c.l.s4 1934713408
      %v1167 = vunpack.c.0.s8 %v1166
      %v1168 = vlaneseq
      %v1169 = vshrl.u32 %v1168, 7
      %v1170 = vsub.s32 %v1167, %v1169
      %v1171 = vrot.slane %v1163, %v1170
      %v1173 = vunpack.c.l.s4 1934713408
      %v1174 = vunpack.c.0.s8 %v1173
      %v1175 = vlaneseq
      %v1176 = vshrl.u32 %v1175, 7
      %v1177 = vsub.s32 %v1174, %v1176
      %v1178 = vrot.slane %v1164, %v1177
      %v1179 = vcombine.high %v1155, 0.0
      %v1180 = vcombine.high %v1162, 0.0
      %v1181 = vcombine.high %v1171, 0.0
      %v1182 = vcombine.high %v1178, 0.0
      %v1183 = vcombine.low %v495, %v497
      %v1184 = vcombine.high %v495, %v497
      %v1186 = vunpack.c.l.s4 1983009808
      %v1187 = vunpack.c.0.s8 %v1186
      %v1188 = vlaneseq
      %v1189 = vshrl.u32 %v1188, 7
      %v1190 = vsub.s32 %v1187, %v1189
      %v1191 = vrot.slane %v1183, %v1190
      %v1193 = vunpack.c.l.s4 1983009808
      %v1194 = vunpack.c.0.s8 %v1193
      %v1195 = vlaneseq
      %v1196 = vshrl.u32 %v1195, 7
      %v1197 = vsub.s32 %v1194, %v1196
      %v1198 = vrot.slane %v1184, %v1197
      %v1199 = vcombine.low %v496, %v498
      %v1200 = vcombine.high %v496, %v498
      %v1202 = vunpack.c.l.s4 1983009808
      %v1203 = vunpack.c.0.s8 %v1202
      %v1204 = vlaneseq
      %v1205 = vshrl.u32 %v1204, 7
      %v1206 = vsub.s32 %v1203, %v1205
      %v1207 = vrot.slane %v1199, %v1206
      %v1209 = vunpack.c.l.s4 1983009808
      %v1210 = vunpack.c.0.s8 %v1209
      %v1211 = vlaneseq
      %v1212 = vshrl.u32 %v1211, 7
      %v1213 = vsub.s32 %v1210, %v1212
      %v1214 = vrot.slane %v1200, %v1213
      %v1215 = vcombine.low %v499, %v501
      %v1216 = vcombine.high %v499, %v501
      %v1218 = vunpack.c.l.s4 1983009808
      %v1219 = vunpack.c.0.s8 %v1218
      %v1220 = vlaneseq
      %v1221 = vshrl.u32 %v1220, 7
      %v1222 = vsub.s32 %v1219, %v1221
      %v1223 = vrot.slane %v1215, %v1222
      %v1225 = vunpack.c.l.s4 1983009808
      %v1226 = vunpack.c.0.s8 %v1225
      %v1227 = vlaneseq
      %v1228 = vshrl.u32 %v1227, 7
      %v1229 = vsub.s32 %v1226, %v1228
      %v1230 = vrot.slane %v1216, %v1229
      %v1231 = vcombine.low %v500, %v502
      %v1232 = vcombine.high %v500, %v502
      %v1234 = vunpack.c.l.s4 1983009808
      %v1235 = vunpack.c.0.s8 %v1234
      %v1236 = vlaneseq
      %v1237 = vshrl.u32 %v1236, 7
      %v1238 = vsub.s32 %v1235, %v1237
      %v1239 = vrot.slane %v1231, %v1238
      %v1241 = vunpack.c.l.s4 1983009808
      %v1242 = vunpack.c.0.s8 %v1241
      %v1243 = vlaneseq
      %v1244 = vshrl.u32 %v1243, 7
      %v1245 = vsub.s32 %v1242, %v1244
      %v1246 = vrot.slane %v1232, %v1245
      %v1247 = vcombine.low %v1191, %v1207
      %v1248 = vcombine.high %v1191, %v1207
      %v1250 = vunpack.c.l.s4 1934713408
      %v1251 = vunpack.c.0.s8 %v1250
      %v1252 = vlaneseq
      %v1253 = vshrl.u32 %v1252, 7
      %v1254 = vsub.s32 %v1251, %v1253
      %v1255 = vrot.slane %v1247, %v1254
      %v1257 = vunpack.c.l.s4 1934713408
      %v1258 = vunpack.c.0.s8 %v1257
      %v1259 = vlaneseq
      %v1260 = vshrl.u32 %v1259, 7
      %v1261 = vsub.s32 %v1258, %v1260
      %v1262 = vrot.slane %v1248, %v1261
      %v1263 = vcombine.low %v1198, %v1214
      %v1264 = vcombine.high %v1198, %v1214
      %v1266 = vunpack.c.l.s4 1934713408
      %v1267 = vunpack.c.0.s8 %v1266
      %v1268 = vlaneseq
      %v1269 = vshrl.u32 %v1268, 7
      %v1270 = vsub.s32 %v1267, %v1269
      %v1271 = vrot.slane %v1263, %v1270
      %v1273 = vunpack.c.l.s4 1934713408
      %v1274 = vunpack.c.0.s8 %v1273
      %v1275 = vlaneseq
      %v1276 = vshrl.u32 %v1275, 7
      %v1277 = vsub.s32 %v1274, %v1276
      %v1278 = vrot.slane %v1264, %v1277
      %v1279 = vcombine.low %v1223, %v1239
      %v1280 = vcombine.high %v1223, %v1239
      %v1282 = vunpack.c.l.s4 1934713408
      %v1283 = vunpack.c.0.s8 %v1282
      %v1284 = vlaneseq
      %v1285 = vshrl.u32 %v1284, 7
      %v1286 = vsub.s32 %v1283, %v1285
      %v1287 = vrot.slane %v1279, %v1286
      %v1289 = vunpack.c.l.s4 1934713408
      %v1290 = vunpack.c.0.s8 %v1289
      %v1291 = vlaneseq
      %v1292 = vshrl.u32 %v1291, 7
      %v1293 = vsub.s32 %v1290, %v1292
      %v1294 = vrot.slane %v1280, %v1293
      %v1295 = vcombine.low %v1230, %v1246
      %v1296 = vcombine.high %v1230, %v1246
      %v1298 = vunpack.c.l.s4 1934713408
      %v1299 = vunpack.c.0.s8 %v1298
      %v1300 = vlaneseq
      %v1301 = vshrl.u32 %v1300, 7
      %v1302 = vsub.s32 %v1299, %v1301
      %v1303 = vrot.slane %v1295, %v1302
      %v1305 = vunpack.c.l.s4 1934713408
      %v1306 = vunpack.c.0.s8 %v1305
      %v1307 = vlaneseq
      %v1308 = vshrl.u32 %v1307, 7
      %v1309 = vsub.s32 %v1306, %v1308
      %v1310 = vrot.slane %v1296, %v1309
      %v1311 = vcombine.low %v1255, %v1287
      %v1312 = vcombine.high %v1255, %v1287
      %v1313 = vcombine.low %v1262, %v1294
      %v1314 = vcombine.high %v1262, %v1294
      %v1315 = vcombine.low %v1271, %v1303
      %v1316 = vcombine.high %v1271, %v1303
      %v1317 = vcombine.low %v1278, %v1310
      %v1318 = vcombine.high %v1278, %v1310
      %v1319 = vcombine.low %v699, %v701
      %v1320 = vcombine.high %v699, %v701
      %v1322 = vunpack.c.l.s4 1983009808
      %v1323 = vunpack.c.0.s8 %v1322
      %v1324 = vlaneseq
      %v1325 = vshrl.u32 %v1324, 7
      %v1326 = vsub.s32 %v1323, %v1325
      %v1327 = vrot.slane %v1319, %v1326
      %v1329 = vunpack.c.l.s4 1983009808
      %v1330 = vunpack.c.0.s8 %v1329
      %v1331 = vlaneseq
      %v1332 = vshrl.u32 %v1331, 7
      %v1333 = vsub.s32 %v1330, %v1332
      %v1334 = vrot.slane %v1320, %v1333
      %v1335 = vcombine.low %v700, %v702
      %v1336 = vcombine.high %v700, %v702
      %v1338 = vunpack.c.l.s4 1983009808
      %v1339 = vunpack.c.0.s8 %v1338
      %v1340 = vlaneseq
      %v1341 = vshrl.u32 %v1340, 7
      %v1342 = vsub.s32 %v1339, %v1341
      %v1343 = vrot.slane %v1335, %v1342
      %v1345 = vunpack.c.l.s4 1983009808
      %v1346 = vunpack.c.0.s8 %v1345
      %v1347 = vlaneseq
      %v1348 = vshrl.u32 %v1347, 7
      %v1349 = vsub.s32 %v1346, %v1348
      %v1350 = vrot.slane %v1336, %v1349
      %v1351 = vcombine.low %v703, %v705
      %v1352 = vcombine.high %v703, %v705
      %v1354 = vunpack.c.l.s4 1983009808
      %v1355 = vunpack.c.0.s8 %v1354
      %v1356 = vlaneseq
      %v1357 = vshrl.u32 %v1356, 7
      %v1358 = vsub.s32 %v1355, %v1357
      %v1359 = vrot.slane %v1351, %v1358
      %v1361 = vunpack.c.l.s4 1983009808
      %v1362 = vunpack.c.0.s8 %v1361
      %v1363 = vlaneseq
      %v1364 = vshrl.u32 %v1363, 7
      %v1365 = vsub.s32 %v1362, %v1364
      %v1366 = vrot.slane %v1352, %v1365
      %v1367 = vcombine.low %v704, %v706
      %v1368 = vcombine.high %v704, %v706
      %v1370 = vunpack.c.l.s4 1983009808
      %v1371 = vunpack.c.0.s8 %v1370
      %v1372 = vlaneseq
      %v1373 = vshrl.u32 %v1372, 7
      %v1374 = vsub.s32 %v1371, %v1373
      %v1375 = vrot.slane %v1367, %v1374
      %v1377 = vunpack.c.l.s4 1983009808
      %v1378 = vunpack.c.0.s8 %v1377
      %v1379 = vlaneseq
      %v1380 = vshrl.u32 %v1379, 7
      %v1381 = vsub.s32 %v1378, %v1380
      %v1382 = vrot.slane %v1368, %v1381
      %v1383 = vcombine.low %v1327, %v1343
      %v1384 = vcombine.high %v1327, %v1343
      %v1386 = vunpack.c.l.s4 1934713408
      %v1387 = vunpack.c.0.s8 %v1386
      %v1388 = vlaneseq
      %v1389 = vshrl.u32 %v1388, 7
      %v1390 = vsub.s32 %v1387, %v1389
      %v1391 = vrot.slane %v1383, %v1390
      %v1393 = vunpack.c.l.s4 1934713408
      %v1394 = vunpack.c.0.s8 %v1393
      %v1395 = vlaneseq
      %v1396 = vshrl.u32 %v1395, 7
      %v1397 = vsub.s32 %v1394, %v1396
      %v1398 = vrot.slane %v1384, %v1397
      %v1399 = vcombine.low %v1334, %v1350
      %v1400 = vcombine.high %v1334, %v1350
      %v1402 = vunpack.c.l.s4 1934713408
      %v1403 = vunpack.c.0.s8 %v1402
      %v1404 = vlaneseq
      %v1405 = vshrl.u32 %v1404, 7
      %v1406 = vsub.s32 %v1403, %v1405
      %v1407 = vrot.slane %v1399, %v1406
      %v1409 = vunpack.c.l.s4 1934713408
      %v1410 = vunpack.c.0.s8 %v1409
      %v1411 = vlaneseq
      %v1412 = vshrl.u32 %v1411, 7
      %v1413 = vsub.s32 %v1410, %v1412
      %v1414 = vrot.slane %v1400, %v1413
      %v1415 = vcombine.low %v1359, %v1375
      %v1416 = vcombine.high %v1359, %v1375
      %v1418 = vunpack.c.l.s4 1934713408
      %v1419 = vunpack.c.0.s8 %v1418
      %v1420 = vlaneseq
      %v1421 = vshrl.u32 %v1420, 7
      %v1422 = vsub.s32 %v1419, %v1421
      %v1423 = vrot.slane %v1415, %v1422
      %v1425 = vunpack.c.l.s4 1934713408
      %v1426 = vunpack.c.0.s8 %v1425
      %v1427 = vlaneseq
      %v1428 = vshrl.u32 %v1427, 7
      %v1429 = vsub.s32 %v1426, %v1428
      %v1430 = vrot.slane %v1416, %v1429
      %v1431 = vcombine.low %v1366, %v1382
      %v1432 = vcombine.high %v1366, %v1382
      %v1434 = vunpack.c.l.s4 1934713408
      %v1435 = vunpack.c.0.s8 %v1434
      %v1436 = vlaneseq
      %v1437 = vshrl.u32 %v1436, 7
      %v1438 = vsub.s32 %v1435, %v1437
      %v1439 = vrot.slane %v1431, %v1438
      %v1441 = vunpack.c.l.s4 1934713408
      %v1442 = vunpack.c.0.s8 %v1441
      %v1443 = vlaneseq
      %v1444 = vshrl.u32 %v1443, 7
      %v1445 = vsub.s32 %v1442, %v1444
      %v1446 = vrot.slane %v1432, %v1445
      %v1447 = vcombine.low %v1391, %v1423
      %v1448 = vcombine.high %v1391, %v1423
      %v1449 = vcombine.low %v1398, %v1430
      %v1450 = vcombine.high %v1398, %v1430
      %v1451 = vcombine.low %v1407, %v1439
      %v1452 = vcombine.high %v1407, %v1439
      %v1453 = vcombine.low %v1414, %v1446
      %v1454 = vcombine.high %v1414, %v1446
      %v1455 = vcombine.low %v543, %v550
      %v1457 = vunpack.c.l.s4 1983009808
      %v1458 = vunpack.c.0.s8 %v1457
      %v1459 = vlaneseq
      %v1460 = vshrl.u32 %v1459, 7
      %v1461 = vsub.s32 %v1458, %v1460
      %v1462 = vrot.slane %v1455, %v1461
      %v1463 = vcombine.low %v567, %v568
      %v1465 = vunpack.c.l.s4 1983009808
      %v1466 = vunpack.c.0.s8 %v1465
      %v1467 = vlaneseq
      %v1468 = vshrl.u32 %v1467, 7
      %v1469 = vsub.s32 %v1466, %v1468
      %v1470 = vrot.slane %v1463, %v1469
      %v1471 = vcombine.low %v559, %v566
      %v1473 = vunpack.c.l.s4 1983009808
      %v1474 = vunpack.c.0.s8 %v1473
      %v1475 = vlaneseq
      %v1476 = vshrl.u32 %v1475, 7
      %v1477 = vsub.s32 %v1474, %v1476
      %v1478 = vrot.slane %v1471, %v1477
      %v1479 = vcombine.low %v569, %v570
      %v1481 = vunpack.c.l.s4 1983009808
      %v1482 = vunpack.c.0.s8 %v1481
      %v1483 = vlaneseq
      %v1484 = vshrl.u32 %v1483, 7
      %v1485 = vsub.s32 %v1482, %v1484
      %v1486 = vrot.slane %v1479, %v1485
      %v1487 = vcombine.low %v1462, %v1470
      %v1488 = vcombine.high %v1462, %v1470
      %v1490 = vunpack.c.l.s4 1934713408
      %v1491 = vunpack.c.0.s8 %v1490
      %v1492 = vlaneseq
      %v1493 = vshrl.u32 %v1492, 7
      %v1494 = vsub.s32 %v1491, %v1493
      %v1495 = vrot.slane %v1487, %v1494
      %v1497 = vunpack.c.l.s4 1934713408
      %v1498 = vunpack.c.0.s8 %v1497
      %v1499 = vlaneseq
      %v1500 = vshrl.u32 %v1499, 7
      %v1501 = vsub.s32 %v1498, %v1500
      %v1502 = vrot.slane %v1488, %v1501
      %v1503 = vcombine.low %v1478, %v1486
      %v1504 = vcombine.high %v1478, %v1486
      %v1506 = vunpack.c.l.s4 1934713408
      %v1507 = vunpack.c.0.s8 %v1506
      %v1508 = vlaneseq
      %v1509 = vshrl.u32 %v1508, 7
      %v1510 = vsub.s32 %v1507, %v1509
      %v1511 = vrot.slane %v1503, %v1510
      %v1513 = vunpack.c.l.s4 1934713408
      %v1514 = vunpack.c.0.s8 %v1513
      %v1515 = vlaneseq
      %v1516 = vshrl.u32 %v1515, 7
      %v1517 = vsub.s32 %v1514, %v1516
      %v1518 = vrot.slane %v1504, %v1517
      %v1519 = vcombine.low %v1495, %v1511
      %v1520 = vcombine.high %v1495, %v1511
      %v1521 = vcombine.low %v1502, %v1518
      %v1522 = vcombine.high %v1502, %v1518
      %v1523 = vcombine.low %v747, %v754
      %v1525 = vunpack.c.l.s4 1983009808
      %v1526 = vunpack.c.0.s8 %v1525
      %v1527 = vlaneseq
      %v1528 = vshrl.u32 %v1527, 7
      %v1529 = vsub.s32 %v1526, %v1528
      %v1530 = vrot.slane %v1523, %v1529
      %v1531 = vcombine.low %v771, %v772
      %v1533 = vunpack.c.l.s4 1983009808
      %v1534 = vunpack.c.0.s8 %v1533
      %v1535 = vlaneseq
      %v1536 = vshrl.u32 %v1535, 7
      %v1537 = vsub.s32 %v1534, %v1536
      %v1538 = vrot.slane %v1531, %v1537
      %v1539 = vcombine.low %v763, %v770
      %v1541 = vunpack.c.l.s4 1983009808
      %v1542 = vunpack.c.0.s8 %v1541
      %v1543 = vlaneseq
      %v1544 = vshrl.u32 %v1543, 7
      %v1545 = vsub.s32 %v1542, %v1544
      %v1546 = vrot.slane %v1539, %v1545
      %v1547 = vcombine.low %v773, %v774
      %v1549 = vunpack.c.l.s4 1983009808
      %v1550 = vunpack.c.0.s8 %v1549
      %v1551 = vlaneseq
      %v1552 = vshrl.u32 %v1551, 7
      %v1553 = vsub.s32 %v1550, %v1552
      %v1554 = vrot.slane %v1547, %v1553
      %v1555 = vcombine.low %v1530, %v1538
      %v1556 = vcombine.high %v1530, %v1538
      %v1558 = vunpack.c.l.s4 1934713408
      %v1559 = vunpack.c.0.s8 %v1558
      %v1560 = vlaneseq
      %v1561 = vshrl.u32 %v1560, 7
      %v1562 = vsub.s32 %v1559, %v1561
      %v1563 = vrot.slane %v1555, %v1562
      %v1565 = vunpack.c.l.s4 1934713408
      %v1566 = vunpack.c.0.s8 %v1565
      %v1567 = vlaneseq
      %v1568 = vshrl.u32 %v1567, 7
      %v1569 = vsub.s32 %v1566, %v1568
      %v1570 = vrot.slane %v1556, %v1569
      %v1571 = vcombine.low %v1546, %v1554
      %v1572 = vcombine.high %v1546, %v1554
      %v1574 = vunpack.c.l.s4 1934713408
      %v1575 = vunpack.c.0.s8 %v1574
      %v1576 = vlaneseq
      %v1577 = vshrl.u32 %v1576, 7
      %v1578 = vsub.s32 %v1575, %v1577
      %v1579 = vrot.slane %v1571, %v1578
      %v1581 = vunpack.c.l.s4 1934713408
      %v1582 = vunpack.c.0.s8 %v1581
      %v1583 = vlaneseq
      %v1584 = vshrl.u32 %v1583, 7
      %v1585 = vsub.s32 %v1582, %v1584
      %v1586 = vrot.slane %v1572, %v1585
      %v1587 = vcombine.low %v1563, %v1579
      %v1588 = vcombine.high %v1563, %v1579
      %v1589 = vcombine.low %v1570, %v1586
      %v1590 = vcombine.high %v1570, %v1586
      %v1591 = vcombine.low %v903, %v905
      %v1592 = vcombine.high %v903, %v905
      %v1594 = vunpack.c.l.s4 1983009808
      %v1595 = vunpack.c.0.s8 %v1594
      %v1596 = vlaneseq
      %v1597 = vshrl.u32 %v1596, 7
      %v1598 = vsub.s32 %v1595, %v1597
      %v1599 = vrot.slane %v1591, %v1598
      %v1601 = vunpack.c.l.s4 1983009808
      %v1602 = vunpack.c.0.s8 %v1601
      %v1603 = vlaneseq
      %v1604 = vshrl.u32 %v1603, 7
      %v1605 = vsub.s32 %v1602, %v1604
      %v1606 = vrot.slane %v1592, %v1605
      %v1607 = vcombine.low %v904, %v906
      %v1608 = vcombine.high %v904, %v906
      %v1610 = vunpack.c.l.s4 1983009808
      %v1611 = vunpack.c.0.s8 %v1610
      %v1612 = vlaneseq
      %v1613 = vshrl.u32 %v1612, 7
      %v1614 = vsub.s32 %v1611, %v1613
      %v1615 = vrot.slane %v1607, %v1614
      %v1617 = vunpack.c.l.s4 1983009808
      %v1618 = vunpack.c.0.s8 %v1617
      %v1619 = vlaneseq
      %v1620 = vshrl.u32 %v1619, 7
      %v1621 = vsub.s32 %v1618, %v1620
      %v1622 = vrot.slane %v1608, %v1621
      %v1623 = vcombine.low %v907, %v909
      %v1624 = vcombine.high %v907, %v909
      %v1626 = vunpack.c.l.s4 1983009808
      %v1627 = vunpack.c.0.s8 %v1626
      %v1628 = vlaneseq
      %v1629 = vshrl.u32 %v1628, 7
      %v1630 = vsub.s32 %v1627, %v1629
      %v1631 = vrot.slane %v1623, %v1630
      %v1633 = vunpack.c.l.s4 1983009808
      %v1634 = vunpack.c.0.s8 %v1633
      %v1635 = vlaneseq
      %v1636 = vshrl.u32 %v1635, 7
      %v1637 = vsub.s32 %v1634, %v1636
      %v1638 = vrot.slane %v1624, %v1637
      %v1639 = vcombine.low %v908, %v910
      %v1640 = vcombine.high %v908, %v910
      %v1642 = vunpack.c.l.s4 1983009808
      %v1643 = vunpack.c.0.s8 %v1642
      %v1644 = vlaneseq
      %v1645 = vshrl.u32 %v1644, 7
      %v1646 = vsub.s32 %v1643, %v1645
      %v1647 = vrot.slane %v1639, %v1646
      %v1649 = vunpack.c.l.s4 1983009808
      %v1650 = vunpack.c.0.s8 %v1649
      %v1651 = vlaneseq
      %v1652 = vshrl.u32 %v1651, 7
      %v1653 = vsub.s32 %v1650, %v1652
      %v1654 = vrot.slane %v1640, %v1653
      %v1655 = vcombine.low %v1599, %v1615
      %v1656 = vcombine.high %v1599, %v1615
      %v1658 = vunpack.c.l.s4 1934713408
      %v1659 = vunpack.c.0.s8 %v1658
      %v1660 = vlaneseq
      %v1661 = vshrl.u32 %v1660, 7
      %v1662 = vsub.s32 %v1659, %v1661
      %v1663 = vrot.slane %v1655, %v1662
      %v1665 = vunpack.c.l.s4 1934713408
      %v1666 = vunpack.c.0.s8 %v1665
      %v1667 = vlaneseq
      %v1668 = vshrl.u32 %v1667, 7
      %v1669 = vsub.s32 %v1666, %v1668
      %v1670 = vrot.slane %v1656, %v1669
      %v1671 = vcombine.low %v1606, %v1622
      %v1672 = vcombine.high %v1606, %v1622
      %v1674 = vunpack.c.l.s4 1934713408
      %v1675 = vunpack.c.0.s8 %v1674
      %v1676 = vlaneseq
      %v1677 = vshrl.u32 %v1676, 7
      %v1678 = vsub.s32 %v1675, %v1677
      %v1679 = vrot.slane %v1671, %v1678
      %v1681 = vunpack.c.l.s4 1934713408
      %v1682 = vunpack.c.0.s8 %v1681
      %v1683 = vlaneseq
      %v1684 = vshrl.u32 %v1683, 7
      %v1685 = vsub.s32 %v1682, %v1684
      %v1686 = vrot.slane %v1672, %v1685
      %v1687 = vcombine.low %v1631, %v1647
      %v1688 = vcombine.high %v1631, %v1647
      %v1690 = vunpack.c.l.s4 1934713408
      %v1691 = vunpack.c.0.s8 %v1690
      %v1692 = vlaneseq
      %v1693 = vshrl.u32 %v1692, 7
      %v1694 = vsub.s32 %v1691, %v1693
      %v1695 = vrot.slane %v1687, %v1694
      %v1697 = vunpack.c.l.s4 1934713408
      %v1698 = vunpack.c.0.s8 %v1697
      %v1699 = vlaneseq
      %v1700 = vshrl.u32 %v1699, 7
      %v1701 = vsub.s32 %v1698, %v1700
      %v1702 = vrot.slane %v1688, %v1701
      %v1703 = vcombine.low %v1638, %v1654
      %v1704 = vcombine.high %v1638, %v1654
      %v1706 = vunpack.c.l.s4 1934713408
      %v1707 = vunpack.c.0.s8 %v1706
      %v1708 = vlaneseq
      %v1709 = vshrl.u32 %v1708, 7
      %v1710 = vsub.s32 %v1707, %v1709
      %v1711 = vrot.slane %v1703, %v1710
      %v1713 = vunpack.c.l.s4 1934713408
      %v1714 = vunpack.c.0.s8 %v1713
      %v1715 = vlaneseq
      %v1716 = vshrl.u32 %v1715, 7
      %v1717 = vsub.s32 %v1714, %v1716
      %v1718 = vrot.slane %v1704, %v1717
      %v1719 = vcombine.low %v1663, %v1695
      %v1720 = vcombine.high %v1663, %v1695
      %v1721 = vcombine.low %v1670, %v1702
      %v1722 = vcombine.high %v1670, %v1702
      %v1723 = vcombine.low %v1679, %v1711
      %v1724 = vcombine.high %v1679, %v1711
      %v1725 = vcombine.low %v1686, %v1718
      %v1726 = vcombine.high %v1686, %v1718
      %v1727 = vcombine.low %v1107, %v1109
      %v1728 = vcombine.high %v1107, %v1109
      %v1730 = vunpack.c.l.s4 1983009808
      %v1731 = vunpack.c.0.s8 %v1730
      %v1732 = vlaneseq
      %v1733 = vshrl.u32 %v1732, 7
      %v1734 = vsub.s32 %v1731, %v1733
      %v1735 = vrot.slane %v1727, %v1734
      %v1737 = vunpack.c.l.s4 1983009808
      %v1738 = vunpack.c.0.s8 %v1737
      %v1739 = vlaneseq
      %v1740 = vshrl.u32 %v1739, 7
      %v1741 = vsub.s32 %v1738, %v1740
      %v1742 = vrot.slane %v1728, %v1741
      %v1743 = vcombine.low %v1108, %v1110
      %v1744 = vcombine.high %v1108, %v1110
      %v1746 = vunpack.c.l.s4 1983009808
      %v1747 = vunpack.c.0.s8 %v1746
      %v1748 = vlaneseq
      %v1749 = vshrl.u32 %v1748, 7
      %v1750 = vsub.s32 %v1747, %v1749
      %v1751 = vrot.slane %v1743, %v1750
      %v1753 = vunpack.c.l.s4 1983009808
      %v1754 = vunpack.c.0.s8 %v1753
      %v1755 = vlaneseq
      %v1756 = vshrl.u32 %v1755, 7
      %v1757 = vsub.s32 %v1754, %v1756
      %v1758 = vrot.slane %v1744, %v1757
      %v1759 = vcombine.low %v1111, %v1113
      %v1760 = vcombine.high %v1111, %v1113
      %v1762 = vunpack.c.l.s4 1983009808
      %v1763 = vunpack.c.0.s8 %v1762
      %v1764 = vlaneseq
      %v1765 = vshrl.u32 %v1764, 7
      %v1766 = vsub.s32 %v1763, %v1765
      %v1767 = vrot.slane %v1759, %v1766
      %v1769 = vunpack.c.l.s4 1983009808
      %v1770 = vunpack.c.0.s8 %v1769
      %v1771 = vlaneseq
      %v1772 = vshrl.u32 %v1771, 7
      %v1773 = vsub.s32 %v1770, %v1772
      %v1774 = vrot.slane %v1760, %v1773
      %v1775 = vcombine.low %v1112, %v1114
      %v1776 = vcombine.high %v1112, %v1114
      %v1778 = vunpack.c.l.s4 1983009808
      %v1779 = vunpack.c.0.s8 %v1778
      %v1780 = vlaneseq
      %v1781 = vshrl.u32 %v1780, 7
      %v1782 = vsub.s32 %v1779, %v1781
      %v1783 = vrot.slane %v1775, %v1782
      %v1785 = vunpack.c.l.s4 1983009808
      %v1786 = vunpack.c.0.s8 %v1785
      %v1787 = vlaneseq
      %v1788 = vshrl.u32 %v1787, 7
      %v1789 = vsub.s32 %v1786, %v1788
      %v1790 = vrot.slane %v1776, %v1789
      %v1791 = vcombine.low %v1735, %v1751
      %v1792 = vcombine.high %v1735, %v1751
      %v1794 = vunpack.c.l.s4 1934713408
      %v1795 = vunpack.c.0.s8 %v1794
      %v1796 = vlaneseq
      %v1797 = vshrl.u32 %v1796, 7
      %v1798 = vsub.s32 %v1795, %v1797
      %v1799 = vrot.slane %v1791, %v1798
      %v1801 = vunpack.c.l.s4 1934713408
      %v1802 = vunpack.c.0.s8 %v1801
      %v1803 = vlaneseq
      %v1804 = vshrl.u32 %v1803, 7
      %v1805 = vsub.s32 %v1802, %v1804
      %v1806 = vrot.slane %v1792, %v1805
      %v1807 = vcombine.low %v1742, %v1758
      %v1808 = vcombine.high %v1742, %v1758
      %v1810 = vunpack.c.l.s4 1934713408
      %v1811 = vunpack.c.0.s8 %v1810
      %v1812 = vlaneseq
      %v1813 = vshrl.u32 %v1812, 7
      %v1814 = vsub.s32 %v1811, %v1813
      %v1815 = vrot.slane %v1807, %v1814
      %v1817 = vunpack.c.l.s4 1934713408
      %v1818 = vunpack.c.0.s8 %v1817
      %v1819 = vlaneseq
      %v1820 = vshrl.u32 %v1819, 7
      %v1821 = vsub.s32 %v1818, %v1820
      %v1822 = vrot.slane %v1808, %v1821
      %v1823 = vcombine.low %v1767, %v1783
      %v1824 = vcombine.high %v1767, %v1783
      %v1826 = vunpack.c.l.s4 1934713408
      %v1827 = vunpack.c.0.s8 %v1826
      %v1828 = vlaneseq
      %v1829 = vshrl.u32 %v1828, 7
      %v1830 = vsub.s32 %v1827, %v1829
      %v1831 = vrot.slane %v1823, %v1830
      %v1833 = vunpack.c.l.s4 1934713408
      %v1834 = vunpack.c.0.s8 %v1833
      %v1835 = vlaneseq
      %v1836 = vshrl.u32 %v1835, 7
      %v1837 = vsub.s32 %v1834, %v1836
      %v1838 = vrot.slane %v1824, %v1837
      %v1839 = vcombine.low %v1774, %v1790
      %v1840 = vcombine.high %v1774, %v1790
      %v1842 = vunpack.c.l.s4 1934713408
      %v1843 = vunpack.c.0.s8 %v1842
      %v1844 = vlaneseq
      %v1845 = vshrl.u32 %v1844, 7
      %v1846 = vsub.s32 %v1843, %v1845
      %v1847 = vrot.slane %v1839, %v1846
      %v1849 = vunpack.c.l.s4 1934713408
      %v1850 = vunpack.c.0.s8 %v1849
      %v1851 = vlaneseq
      %v1852 = vshrl.u32 %v1851, 7
      %v1853 = vsub.s32 %v1850, %v1852
      %v1854 = vrot.slane %v1840, %v1853
      %v1855 = vcombine.low %v1799, %v1831
      %v1856 = vcombine.high %v1799, %v1831
      %v1857 = vcombine.low %v1806, %v1838
      %v1858 = vcombine.high %v1806, %v1838
      %v1859 = vcombine.low %v1815, %v1847
      %v1860 = vcombine.high %v1815, %v1847
      %v1861 = vcombine.low %v1822, %v1854
      %v1862 = vcombine.high %v1822, %v1854
      %v1863 = vcombine.low %v951, %v958
      %v1865 = vunpack.c.l.s4 1983009808
      %v1866 = vunpack.c.0.s8 %v1865
      %v1867 = vlaneseq
      %v1868 = vshrl.u32 %v1867, 7
      %v1869 = vsub.s32 %v1866, %v1868
      %v1870 = vrot.slane %v1863, %v1869
      %v1871 = vcombine.low %v975, %v976
      %v1873 = vunpack.c.l.s4 1983009808
      %v1874 = vunpack.c.0.s8 %v1873
      %v1875 = vlaneseq
      %v1876 = vshrl.u32 %v1875, 7
      %v1877 = vsub.s32 %v1874, %v1876
      %v1878 = vrot.slane %v1871, %v1877
      %v1879 = vcombine.low %v967, %v974
      %v1881 = vunpack.c.l.s4 1983009808
      %v1882 = vunpack.c.0.s8 %v1881
      %v1883 = vlaneseq
      %v1884 = vshrl.u32 %v1883, 7
      %v1885 = vsub.s32 %v1882, %v1884
      %v1886 = vrot.slane %v1879, %v1885
      %v1887 = vcombine.low %v977, %v978
      %v1889 = vunpack.c.l.s4 1983009808
      %v1890 = vunpack.c.0.s8 %v1889
      %v1891 = vlaneseq
      %v1892 = vshrl.u32 %v1891, 7
      %v1893 = vsub.s32 %v1890, %v1892
      %v1894 = vrot.slane %v1887, %v1893
      %v1895 = vcombine.low %v1870, %v1878
      %v1896 = vcombine.high %v1870, %v1878
      %v1898 = vunpack.c.l.s4 1934713408
      %v1899 = vunpack.c.0.s8 %v1898
      %v1900 = vlaneseq
      %v1901 = vshrl.u32 %v1900, 7
      %v1902 = vsub.s32 %v1899, %v1901
      %v1903 = vrot.slane %v1895, %v1902
      %v1905 = vunpack.c.l.s4 1934713408
      %v1906 = vunpack.c.0.s8 %v1905
      %v1907 = vlaneseq
      %v1908 = vshrl.u32 %v1907, 7
      %v1909 = vsub.s32 %v1906, %v1908
      %v1910 = vrot.slane %v1896, %v1909
      %v1911 = vcombine.low %v1886, %v1894
      %v1912 = vcombine.high %v1886, %v1894
      %v1914 = vunpack.c.l.s4 1934713408
      %v1915 = vunpack.c.0.s8 %v1914
      %v1916 = vlaneseq
      %v1917 = vshrl.u32 %v1916, 7
      %v1918 = vsub.s32 %v1915, %v1917
      %v1919 = vrot.slane %v1911, %v1918
      %v1921 = vunpack.c.l.s4 1934713408
      %v1922 = vunpack.c.0.s8 %v1921
      %v1923 = vlaneseq
      %v1924 = vshrl.u32 %v1923, 7
      %v1925 = vsub.s32 %v1922, %v1924
      %v1926 = vrot.slane %v1912, %v1925
      %v1927 = vcombine.low %v1903, %v1919
      %v1928 = vcombine.high %v1903, %v1919
      %v1929 = vcombine.low %v1910, %v1926
      %v1930 = vcombine.high %v1910, %v1926
      %v1931 = vcombine.low %v1155, %v1162
      %v1933 = vunpack.c.l.s4 1983009808
      %v1934 = vunpack.c.0.s8 %v1933
      %v1935 = vlaneseq
      %v1936 = vshrl.u32 %v1935, 7
      %v1937 = vsub.s32 %v1934, %v1936
      %v1938 = vrot.slane %v1931, %v1937
      %v1939 = vcombine.low %v1179, %v1180
      %v1941 = vunpack.c.l.s4 1983009808
      %v1942 = vunpack.c.0.s8 %v1941
      %v1943 = vlaneseq
      %v1944 = vshrl.u32 %v1943, 7
      %v1945 = vsub.s32 %v1942, %v1944
      %v1946 = vrot.slane %v1939, %v1945
      %v1947 = vcombine.low %v1171, %v1178
      %v1949 = vunpack.c.l.s4 1983009808
      %v1950 = vunpack.c.0.s8 %v1949
      %v1951 = vlaneseq
      %v1952 = vshrl.u32 %v1951, 7
      %v1953 = vsub.s32 %v1950, %v1952
      %v1954 = vrot.slane %v1947, %v1953
      %v1955 = vcombine.low %v1181, %v1182
      %v1957 = vunpack.c.l.s4 1983009808
      %v1958 = vunpack.c.0.s8 %v1957
      %v1959 = vlaneseq
      %v1960 = vshrl.u32 %v1959, 7
      %v1961 = vsub.s32 %v1958, %v1960
      %v1962 = vrot.slane %v1955, %v1961
      %v1963 = vcombine.low %v1938, %v1946
      %v1964 = vcombine.high %v1938, %v1946
      %v1966 = vunpack.c.l.s4 1934713408
      %v1967 = vunpack.c.0.s8 %v1966
      %v1968 = vlaneseq
      %v1969 = vshrl.u32 %v1968, 7
      %v1970 = vsub.s32 %v1967, %v1969
      %v1971 = vrot.slane %v1963, %v1970
      %v1973 = vunpack.c.l.s4 1934713408
      %v1974 = vunpack.c.0.s8 %v1973
      %v1975 = vlaneseq
      %v1976 = vshrl.u32 %v1975, 7
      %v1977 = vsub.s32 %v1974, %v1976
      %v1978 = vrot.slane %v1964, %v1977
      %v1979 = vcombine.low %v1954, %v1962
      %v1980 = vcombine.high %v1954, %v1962
      %v1982 = vunpack.c.l.s4 1934713408
      %v1983 = vunpack.c.0.s8 %v1982
      %v1984 = vlaneseq
      %v1985 = vshrl.u32 %v1984, 7
      %v1986 = vsub.s32 %v1983, %v1985
      %v1987 = vrot.slane %v1979, %v1986
      %v1989 = vunpack.c.l.s4 1934713408
      %v1990 = vunpack.c.0.s8 %v1989
      %v1991 = vlaneseq
      %v1992 = vshrl.u32 %v1991, 7
      %v1993 = vsub.s32 %v1990, %v1992
      %v1994 = vrot.slane %v1980, %v1993
      %v1995 = vcombine.low %v1971, %v1987
      %v1996 = vcombine.high %v1971, %v1987
      %v1997 = vcombine.low %v1978, %v1994
      %v1998 = vcombine.high %v1978, %v1994
      %v1999 = vpack.c.bf16 %v1447, %v1311
      %v2000 = vpack.c.bf16 %v1448, %v1312
      %v2001 = vpack.c.bf16 %v1449, %v1313
      %v2002 = vpack.c.bf16 %v1450, %v1314
      %v2003 = vpack.c.bf16 %v1855, %v1719
      %v2004 = vpack.c.bf16 %v1856, %v1720
      %v2005 = vpack.c.bf16 %v1857, %v1721
      %v2006 = vpack.c.bf16 %v1858, %v1722
      %v2007 = vpack.c.bf16 %v1451, %v1315
      %v2008 = vpack.c.bf16 %v1452, %v1316
      %v2009 = vpack.c.bf16 %v1453, %v1317
      %v2010 = vpack.c.bf16 %v1454, %v1318
      %v2011 = vpack.c.bf16 %v1859, %v1723
      %v2012 = vpack.c.bf16 %v1860, %v1724
      %v2013 = vpack.c.bf16 %v1861, %v1725
      %v2014 = vpack.c.bf16 %v1862, %v1726
      %v2015 = vpack.c.bf16 %v1587, %v1519
      %v2016 = vpack.c.bf16 %v1588, %v1520
      %v2017 = vpack.c.bf16 %v1589, %v1521
      %v2018 = vpack.c.bf16 %v1590, %v1522
      %v2019 = vpack.c.bf16 %v1995, %v1927
      %v2020 = vpack.c.bf16 %v1996, %v1928
      %v2021 = vpack.c.bf16 %v1997, %v1929
      %v2022 = vpack.c.bf16 %v1998, %v1930
      %vm2023 = vcmask 130048
      %v2025 = vsel %vm2023, %v1999, 0
      %v2028 = vsel %vm2023, %v2007, 0
      %2030 = vmatprep.subr.bf16.mxu0 0
      %2031 = vmatpush1.bf16.xpose.msra.mxu0 0
      %2032 = vmatprep.subr.bf16.mxu0 0
      %2033 = vmatpush1.bf16.xpose.msra.mxu0 0
      %2034 = vmatprep.subr.bf16.mxu0 0
      %2035 = vmatpush1.bf16.xpose.msra.mxu0 0
      %2036 = vmatprep.subr.bf16.mxu0 0
      %2037 = vmatpush1.bf16.xpose.msra.mxu0 0
      %2038 = vmatprep.subr.bf16.mxu0 0
      %2039 = vmatpush1.bf16.xpose.msra.mxu0 0
      %2040 = vmatprep.subr.bf16.mxu0 0
      %2041 = vmatpush1.bf16.xpose.msra.mxu0 0
      %2042 = vmatprep.subr.bf16.mxu0 0
      %2043 = vmatpush1.bf16.xpose.msra.mxu0 0
      %2044 = vmatprep.subr.bf16.mxu0 0
      %2045 = vmatpush1.bf16.xpose.msra.mxu0 %v2028
      %2046 = vmatprep.subr.bf16.mxu0 0
      %2047 = vmatpush2.bf16.xpose.msra.mxu0 0
      %2048 = vmatprep.subr.bf16.mxu0 0
      %2049 = vmatpush2.bf16.xpose.msra.mxu0 0
      %2050 = vmatprep.subr.bf16.mxu0 0
      %2051 = vmatpush2.bf16.xpose.msra.mxu0 0
      %2052 = vmatprep.subr.bf16.mxu0 0
      %2053 = vmatpush2.bf16.xpose.msra.mxu0 0
      %2054 = vmatprep.subr.bf16.mxu0 0
      %2055 = vmatpush2.bf16.xpose.msra.mxu0 0
      %2056 = vmatprep.subr.bf16.mxu0 0
      %2057 = vmatpush2.bf16.xpose.msra.mxu0 0
      %2058 = vmatprep.subr.bf16.mxu0 0
      %2059 = vmatpush2.bf16.xpose.msra.mxu0 0
      %2060 = vmatprep.subr.bf16.mxu0 0
      %2061 = vmatpush2.bf16.xpose.msra.mxu0 0
      %2062 = vmatprep.mubr.bf16.mxu0 0
      %2063 = vmatmul.mubr.bf16.gmra.mxu0 %v2025
      %v2064 = vpop.f32.mrf.mxu0
      %v2065 = vadd.f32 %v47, %v2064
      %v2066 = vpop.f32.mrf.mxu0
      %v2067 = vpop.f32.mrf.mxu0
      %v2068 = vadd.f32 %v48, %v2067
      %v2069 = vpop.f32.mrf.mxu0
      %2070 = vdwg.mxu0
      %v2072 = vsel %vm2023, %v2000, 0
      %v2075 = vsel %vm2023, %v2008, 0
      %2077 = vmatprep.subr.bf16.mxu0 0
      %2078 = vmatpush1.bf16.xpose.msra.mxu0 0
      %2079 = vmatprep.subr.bf16.mxu0 0
      %2080 = vmatpush1.bf16.xpose.msra.mxu0 0
      %2081 = vmatprep.subr.bf16.mxu0 0
      %2082 = vmatpush1.bf16.xpose.msra.mxu0 0
      %2083 = vmatprep.subr.bf16.mxu0 0
      %2084 = vmatpush1.bf16.xpose.msra.mxu0 0
      %2085 = vmatprep.subr.bf16.mxu0 0
      %2086 = vmatpush1.bf16.xpose.msra.mxu0 0
      %2087 = vmatprep.subr.bf16.mxu0 0
      %2088 = vmatpush1.bf16.xpose.msra.mxu0 0
      %2089 = vmatprep.subr.bf16.mxu0 0
      %2090 = vmatpush1.bf16.xpose.msra.mxu0 0
      %2091 = vmatprep.subr.bf16.mxu0 0
      %2092 = vmatpush1.bf16.xpose.msra.mxu0 %v2075
      %2093 = vmatprep.subr.bf16.mxu0 0
      %2094 = vmatpush2.bf16.xpose.msra.mxu0 0
      %2095 = vmatprep.subr.bf16.mxu0 0
      %2096 = vmatpush2.bf16.xpose.msra.mxu0 0
      %2097 = vmatprep.subr.bf16.mxu0 0
      %2098 = vmatpush2.bf16.xpose.msra.mxu0 0
      %2099 = vmatprep.subr.bf16.mxu0 0
      %2100 = vmatpush2.bf16.xpose.msra.mxu0 0
      %2101 = vmatprep.subr.bf16.mxu0 0
      %2102 = vmatpush2.bf16.xpose.msra.mxu0 0
      %2103 = vmatprep.subr.bf16.mxu0 0
      %2104 = vmatpush2.bf16.xpose.msra.mxu0 0
      %2105 = vmatprep.subr.bf16.mxu0 0
      %2106 = vmatpush2.bf16.xpose.msra.mxu0 0
      %2107 = vmatprep.subr.bf16.mxu0 0
      %2108 = vmatpush2.bf16.xpose.msra.mxu0 0
      %2109 = vmatprep.mubr.bf16.mxu0 0
      %2110 = vmatmul.mubr.bf16.gmra.mxu0 %v2072
      %v2111 = vpop.f32.mrf.mxu0
      %v2112 = vadd.f32 %v47, %v2111
      %v2113 = vpop.f32.mrf.mxu0
      %v2114 = vpop.f32.mrf.mxu0
      %v2115 = vadd.f32 %v48, %v2114
      %v2116 = vpop.f32.mrf.mxu0
      %2117 = vdwg.mxu0
      %v2119 = vsel %vm2023, %v2001, 0
      %v2122 = vsel %vm2023, %v2009, 0
      %2124 = vmatprep.subr.bf16.mxu0 0
      %2125 = vmatpush1.bf16.xpose.msra.mxu0 0
      %2126 = vmatprep.subr.bf16.mxu0 0
      %2127 = vmatpush1.bf16.xpose.msra.mxu0 0
      %2128 = vmatprep.subr.bf16.mxu0 0
      %2129 = vmatpush1.bf16.xpose.msra.mxu0 0
      %2130 = vmatprep.subr.bf16.mxu0 0
      %2131 = vmatpush1.bf16.xpose.msra.mxu0 0
      %2132 = vmatprep.subr.bf16.mxu0 0
      %2133 = vmatpush1.bf16.xpose.msra.mxu0 0
      %2134 = vmatprep.subr.bf16.mxu0 0
      %2135 = vmatpush1.bf16.xpose.msra.mxu0 0
      %2136 = vmatprep.subr.bf16.mxu0 0
      %2137 = vmatpush1.bf16.xpose.msra.mxu0 0
      %2138 = vmatprep.subr.bf16.mxu0 0
      %2139 = vmatpush1.bf16.xpose.msra.mxu0 %v2122
      %2140 = vmatprep.subr.bf16.mxu0 0
      %2141 = vmatpush2.bf16.xpose.msra.mxu0 0
      %2142 = vmatprep.subr.bf16.mxu0 0
      %2143 = vmatpush2.bf16.xpose.msra.mxu0 0
      %2144 = vmatprep.subr.bf16.mxu0 0
      %2145 = vmatpush2.bf16.xpose.msra.mxu0 0
      %2146 = vmatprep.subr.bf16.mxu0 0
      %2147 = vmatpush2.bf16.xpose.msra.mxu0 0
      %2148 = vmatprep.subr.bf16.mxu0 0
      %2149 = vmatpush2.bf16.xpose.msra.mxu0 0
      %2150 = vmatprep.subr.bf16.mxu0 0
      %2151 = vmatpush2.bf16.xpose.msra.mxu0 0
      %2152 = vmatprep.subr.bf16.mxu0 0
      %2153 = vmatpush2.bf16.xpose.msra.mxu0 0
      %2154 = vmatprep.subr.bf16.mxu0 0
      %2155 = vmatpush2.bf16.xpose.msra.mxu0 0
      %2156 = vmatprep.mubr.bf16.mxu0 0
      %2157 = vmatmul.mubr.bf16.gmra.mxu0 %v2119
      %v2158 = vpop.f32.mrf.mxu0
      %v2159 = vadd.f32 %v47, %v2158
      %v2160 = vpop.f32.mrf.mxu0
      %v2161 = vpop.f32.mrf.mxu0
      %v2162 = vadd.f32 %v48, %v2161
      %v2163 = vpop.f32.mrf.mxu0
      %2164 = vdwg.mxu0
      %v2166 = vsel %vm2023, %v2002, 0
      %v2169 = vsel %vm2023, %v2010, 0
      %2171 = vmatprep.subr.bf16.mxu0 0
      %2172 = vmatpush1.bf16.xpose.msra.mxu0 0
      %2173 = vmatprep.subr.bf16.mxu0 0
      %2174 = vmatpush1.bf16.xpose.msra.mxu0 0
      %2175 = vmatprep.subr.bf16.mxu0 0
      %2176 = vmatpush1.bf16.xpose.msra.mxu0 0
      %2177 = vmatprep.subr.bf16.mxu0 0
      %2178 = vmatpush1.bf16.xpose.msra.mxu0 0
      %2179 = vmatprep.subr.bf16.mxu0 0
      %2180 = vmatpush1.bf16.xpose.msra.mxu0 0
      %2181 = vmatprep.subr.bf16.mxu0 0
      %2182 = vmatpush1.bf16.xpose.msra.mxu0 0
      %2183 = vmatprep.subr.bf16.mxu0 0
      %2184 = vmatpush1.bf16.xpose.msra.mxu0 0
      %2185 = vmatprep.subr.bf16.mxu0 0
      %2186 = vmatpush1.bf16.xpose.msra.mxu0 %v2169
      %2187 = vmatprep.subr.bf16.mxu0 0
      %2188 = vmatpush2.bf16.xpose.msra.mxu0 0
      %2189 = vmatprep.subr.bf16.mxu0 0
      %2190 = vmatpush2.bf16.xpose.msra.mxu0 0
      %2191 = vmatprep.subr.bf16.mxu0 0
      %2192 = vmatpush2.bf16.xpose.msra.mxu0 0
      %2193 = vmatprep.subr.bf16.mxu0 0
      %2194 = vmatpush2.bf16.xpose.msra.mxu0 0
      %2195 = vmatprep.subr.bf16.mxu0 0
      %2196 = vmatpush2.bf16.xpose.msra.mxu0 0
      %2197 = vmatprep.subr.bf16.mxu0 0
      %2198 = vmatpush2.bf16.xpose.msra.mxu0 0
      %2199 = vmatprep.subr.bf16.mxu0 0
      %2200 = vmatpush2.bf16.xpose.msra.mxu0 0
      %2201 = vmatprep.subr.bf16.mxu0 0
      %2202 = vmatpush2.bf16.xpose.msra.mxu0 0
      %2203 = vmatprep.mubr.bf16.mxu0 0
      %2204 = vmatmul.mubr.bf16.gmra.mxu0 %v2166
      %v2205 = vpop.f32.mrf.mxu0
      %v2206 = vadd.f32 %v47, %v2205
      %v2207 = vpop.f32.mrf.mxu0
      %v2208 = vpop.f32.mrf.mxu0
      %v2209 = vadd.f32 %v48, %v2208
      %v2210 = vpop.f32.mrf.mxu0
      %2211 = vdwg.mxu0
      %v2213 = vsel %vm2023, %v2003, 0
      %v2216 = vsel %vm2023, %v2011, 0
      %2218 = vmatprep.subr.bf16.mxu0 0
      %2219 = vmatpush1.bf16.xpose.msra.mxu0 0
      %2220 = vmatprep.subr.bf16.mxu0 0
      %2221 = vmatpush1.bf16.xpose.msra.mxu0 0
      %2222 = vmatprep.subr.bf16.mxu0 0
      %2223 = vmatpush1.bf16.xpose.msra.mxu0 0
      %2224 = vmatprep.subr.bf16.mxu0 0
      %2225 = vmatpush1.bf16.xpose.msra.mxu0 0
      %2226 = vmatprep.subr.bf16.mxu0 0
      %2227 = vmatpush1.bf16.xpose.msra.mxu0 0
      %2228 = vmatprep.subr.bf16.mxu0 0
      %2229 = vmatpush1.bf16.xpose.msra.mxu0 0
      %2230 = vmatprep.subr.bf16.mxu0 0
      %2231 = vmatpush1.bf16.xpose.msra.mxu0 0
      %2232 = vmatprep.subr.bf16.mxu0 0
      %2233 = vmatpush1.bf16.xpose.msra.mxu0 %v2216
      %2234 = vmatprep.subr.bf16.mxu0 0
      %2235 = vmatpush2.bf16.xpose.msra.mxu0 0
      %2236 = vmatprep.subr.bf16.mxu0 0
      %2237 = vmatpush2.bf16.xpose.msra.mxu0 0
      %2238 = vmatprep.subr.bf16.mxu0 0
      %2239 = vmatpush2.bf16.xpose.msra.mxu0 0
      %2240 = vmatprep.subr.bf16.mxu0 0
      %2241 = vmatpush2.bf16.xpose.msra.mxu0 0
      %2242 = vmatprep.subr.bf16.mxu0 0
      %2243 = vmatpush2.bf16.xpose.msra.mxu0 0
      %2244 = vmatprep.subr.bf16.mxu0 0
      %2245 = vmatpush2.bf16.xpose.msra.mxu0 0
      %2246 = vmatprep.subr.bf16.mxu0 0
      %2247 = vmatpush2.bf16.xpose.msra.mxu0 0
      %2248 = vmatprep.subr.bf16.mxu0 0
      %2249 = vmatpush2.bf16.xpose.msra.mxu0 0
      %2250 = vmatprep.mubr.bf16.mxu0 0
      %2251 = vmatmul.mubr.bf16.gmra.mxu0 %v2213
      %v2252 = vpop.f32.mrf.mxu0
      %v2253 = vadd.f32 %v47, %v2252
      %v2254 = vpop.f32.mrf.mxu0
      %v2255 = vpop.f32.mrf.mxu0
      %v2256 = vadd.f32 %v48, %v2255
      %v2257 = vpop.f32.mrf.mxu0
      %2258 = vdwg.mxu0
      %v2260 = vsel %vm2023, %v2004, 0
      %v2263 = vsel %vm2023, %v2012, 0
      %2265 = vmatprep.subr.bf16.mxu0 0
      %2266 = vmatpush1.bf16.xpose.msra.mxu0 0
      %2267 = vmatprep.subr.bf16.mxu0 0
      %2268 = vmatpush1.bf16.xpose.msra.mxu0 0
      %2269 = vmatprep.subr.bf16.mxu0 0
      %2270 = vmatpush1.bf16.xpose.msra.mxu0 0
      %2271 = vmatprep.subr.bf16.mxu0 0
      %2272 = vmatpush1.bf16.xpose.msra.mxu0 0
      %2273 = vmatprep.subr.bf16.mxu0 0
      %2274 = vmatpush1.bf16.xpose.msra.mxu0 0
      %2275 = vmatprep.subr.bf16.mxu0 0
      %2276 = vmatpush1.bf16.xpose.msra.mxu0 0
      %2277 = vmatprep.subr.bf16.mxu0 0
      %2278 = vmatpush1.bf16.xpose.msra.mxu0 0
      %2279 = vmatprep.subr.bf16.mxu0 0
      %2280 = vmatpush1.bf16.xpose.msra.mxu0 %v2263
      %2281 = vmatprep.subr.bf16.mxu0 0
      %2282 = vmatpush2.bf16.xpose.msra.mxu0 0
      %2283 = vmatprep.subr.bf16.mxu0 0
      %2284 = vmatpush2.bf16.xpose.msra.mxu0 0
      %2285 = vmatprep.subr.bf16.mxu0 0
      %2286 = vmatpush2.bf16.xpose.msra.mxu0 0
      %2287 = vmatprep.subr.bf16.mxu0 0
      %2288 = vmatpush2.bf16.xpose.msra.mxu0 0
      %2289 = vmatprep.subr.bf16.mxu0 0
      %2290 = vmatpush2.bf16.xpose.msra.mxu0 0
      %2291 = vmatprep.subr.bf16.mxu0 0
      %2292 = vmatpush2.bf16.xpose.msra.mxu0 0
      %2293 = vmatprep.subr.bf16.mxu0 0
      %2294 = vmatpush2.bf16.xpose.msra.mxu0 0
      %2295 = vmatprep.subr.bf16.mxu0 0
      %2296 = vmatpush2.bf16.xpose.msra.mxu0 0
      %2297 = vmatprep.mubr.bf16.mxu0 0
      %2298 = vmatmul.mubr.bf16.gmra.mxu0 %v2260
      %v2299 = vpop.f32.mrf.mxu0
      %v2300 = vadd.f32 %v47, %v2299
      %v2301 = vpop.f32.mrf.mxu0
      %v2302 = vpop.f32.mrf.mxu0
      %v2303 = vadd.f32 %v48, %v2302
      %v2304 = vpop.f32.mrf.mxu0
      %2305 = vdwg.mxu0
      %v2307 = vsel %vm2023, %v2005, 0
      %v2310 = vsel %vm2023, %v2013, 0
      %2312 = vmatprep.subr.bf16.mxu0 0
      %2313 = vmatpush1.bf16.xpose.msra.mxu0 0
      %2314 = vmatprep.subr.bf16.mxu0 0
      %2315 = vmatpush1.bf16.xpose.msra.mxu0 0
      %2316 = vmatprep.subr.bf16.mxu0 0
      %2317 = vmatpush1.bf16.xpose.msra.mxu0 0
      %2318 = vmatprep.subr.bf16.mxu0 0
      %2319 = vmatpush1.bf16.xpose.msra.mxu0 0
      %2320 = vmatprep.subr.bf16.mxu0 0
      %2321 = vmatpush1.bf16.xpose.msra.mxu0 0
      %2322 = vmatprep.subr.bf16.mxu0 0
      %2323 = vmatpush1.bf16.xpose.msra.mxu0 0
      %2324 = vmatprep.subr.bf16.mxu0 0
      %2325 = vmatpush1.bf16.xpose.msra.mxu0 0
      %2326 = vmatprep.subr.bf16.mxu0 0
      %2327 = vmatpush1.bf16.xpose.msra.mxu0 %v2310
      %2328 = vmatprep.subr.bf16.mxu0 0
      %2329 = vmatpush2.bf16.xpose.msra.mxu0 0
      %2330 = vmatprep.subr.bf16.mxu0 0
      %2331 = vmatpush2.bf16.xpose.msra.mxu0 0
      %2332 = vmatprep.subr.bf16.mxu0 0
      %2333 = vmatpush2.bf16.xpose.msra.mxu0 0
      %2334 = vmatprep.subr.bf16.mxu0 0
      %2335 = vmatpush2.bf16.xpose.msra.mxu0 0
      %2336 = vmatprep.subr.bf16.mxu0 0
      %2337 = vmatpush2.bf16.xpose.msra.mxu0 0
      %2338 = vmatprep.subr.bf16.mxu0 0
      %2339 = vmatpush2.bf16.xpose.msra.mxu0 0
      %2340 = vmatprep.subr.bf16.mxu0 0
      %2341 = vmatpush2.bf16.xpose.msra.mxu0 0
      %2342 = vmatprep.subr.bf16.mxu0 0
      %2343 = vmatpush2.bf16.xpose.msra.mxu0 0
      %2344 = vmatprep.mubr.bf16.mxu0 0
      %2345 = vmatmul.mubr.bf16.gmra.mxu0 %v2307
      %v2346 = vpop.f32.mrf.mxu0
      %v2347 = vadd.f32 %v47, %v2346
      %v2348 = vpop.f32.mrf.mxu0
      %v2349 = vpop.f32.mrf.mxu0
      %v2350 = vadd.f32 %v48, %v2349
      %v2351 = vpop.f32.mrf.mxu0
      %2352 = vdwg.mxu0
      %v2354 = vsel %vm2023, %v2006, 0
      %v2357 = vsel %vm2023, %v2014, 0
      %2359 = vmatprep.subr.bf16.mxu0 0
      %2360 = vmatpush1.bf16.xpose.msra.mxu0 0
      %2361 = vmatprep.subr.bf16.mxu0 0
      %2362 = vmatpush1.bf16.xpose.msra.mxu0 0
      %2363 = vmatprep.subr.bf16.mxu0 0
      %2364 = vmatpush1.bf16.xpose.msra.mxu0 0
      %2365 = vmatprep.subr.bf16.mxu0 0
      %2366 = vmatpush1.bf16.xpose.msra.mxu0 0
      %2367 = vmatprep.subr.bf16.mxu0 0
      %2368 = vmatpush1.bf16.xpose.msra.mxu0 0
      %2369 = vmatprep.subr.bf16.mxu0 0
      %2370 = vmatpush1.bf16.xpose.msra.mxu0 0
      %2371 = vmatprep.subr.bf16.mxu0 0
      %2372 = vmatpush1.bf16.xpose.msra.mxu0 0
      %2373 = vmatprep.subr.bf16.mxu0 0
      %2374 = vmatpush1.bf16.xpose.msra.mxu0 %v2357
      %2375 = vmatprep.subr.bf16.mxu0 0
      %2376 = vmatpush2.bf16.xpose.msra.mxu0 0
      %2377 = vmatprep.subr.bf16.mxu0 0
      %2378 = vmatpush2.bf16.xpose.msra.mxu0 0
      %2379 = vmatprep.subr.bf16.mxu0 0
      %2380 = vmatpush2.bf16.xpose.msra.mxu0 0
      %2381 = vmatprep.subr.bf16.mxu0 0
      %2382 = vmatpush2.bf16.xpose.msra.mxu0 0
      %2383 = vmatprep.subr.bf16.mxu0 0
      %2384 = vmatpush2.bf16.xpose.msra.mxu0 0
      %2385 = vmatprep.subr.bf16.mxu0 0
      %2386 = vmatpush2.bf16.xpose.msra.mxu0 0
      %2387 = vmatprep.subr.bf16.mxu0 0
      %2388 = vmatpush2.bf16.xpose.msra.mxu0 0
      %2389 = vmatprep.subr.bf16.mxu0 0
      %2390 = vmatpush2.bf16.xpose.msra.mxu0 0
      %2391 = vmatprep.mubr.bf16.mxu0 0
      %2392 = vmatmul.mubr.bf16.gmra.mxu0 %v2354
      %v2393 = vpop.f32.mrf.mxu0
      %v2394 = vadd.f32 %v47, %v2393
      %v2395 = vpop.f32.mrf.mxu0
      %v2396 = vpop.f32.mrf.mxu0
      %v2397 = vadd.f32 %v48, %v2396
      %v2398 = vpop.f32.mrf.mxu0
      %2399 = vdwg.mxu0
      %v2400 = vsel %vm2023, %v2065, -inf
      %2401 = vmax.xlane.f32.xlu0 %v2400
      %v2402 = vpop.xlane.xlu0 %2401
      %v2403 = vsel %vm2023, %v2068, -inf
      %2404 = vmax.xlane.f32.xlu0 %v2403
      %v2405 = vpop.xlane.xlu0 %2404
      %v2406 = vsel %vm2023, %v2112, -inf
      %2407 = vmax.xlane.f32.xlu0 %v2406
      %v2408 = vpop.xlane.xlu0 %2407
      %v2409 = vsel %vm2023, %v2115, -inf
      %2410 = vmax.xlane.f32.xlu0 %v2409
      %v2411 = vpop.xlane.xlu0 %2410
      %v2412 = vsel %vm2023, %v2159, -inf
      %2413 = vmax.xlane.f32.xlu0 %v2412
      %v2414 = vpop.xlane.xlu0 %2413
      %v2415 = vsel %vm2023, %v2162, -inf
      %2416 = vmax.xlane.f32.xlu0 %v2415
      %v2417 = vpop.xlane.xlu0 %2416
      %v2418 = vsel %vm2023, %v2206, -inf
      %2419 = vmax.xlane.f32.xlu0 %v2418
      %v2420 = vpop.xlane.xlu0 %2419
      %v2421 = vsel %vm2023, %v2209, -inf
      %2422 = vmax.xlane.f32.xlu0 %v2421
      %v2423 = vpop.xlane.xlu0 %2422
      %v2424 = vsel %vm2023, %v2253, -inf
      %2425 = vmax.xlane.f32.xlu0 %v2424
      %v2426 = vpop.xlane.xlu0 %2425
      %v2427 = vsel %vm2023, %v2256, -inf
      %2428 = vmax.xlane.f32.xlu0 %v2427
      %v2429 = vpop.xlane.xlu0 %2428
      %v2430 = vsel %vm2023, %v2300, -inf
      %2431 = vmax.xlane.f32.xlu0 %v2430
      %v2432 = vpop.xlane.xlu0 %2431
      %v2433 = vsel %vm2023, %v2303, -inf
      %2434 = vmax.xlane.f32.xlu0 %v2433
      %v2435 = vpop.xlane.xlu0 %2434
      %v2436 = vsel %vm2023, %v2347, -inf
      %2437 = vmax.xlane.f32.xlu0 %v2436
      %v2438 = vpop.xlane.xlu0 %2437
      %v2439 = vsel %vm2023, %v2350, -inf
      %2440 = vmax.xlane.f32.xlu0 %v2439
      %v2441 = vpop.xlane.xlu0 %2440
      %v2442 = vsel %vm2023, %v2394, -inf
      %2443 = vmax.xlane.f32.xlu0 %v2442
      %v2444 = vpop.xlane.xlu0 %2443
      %v2445 = vsel %vm2023, %v2397, -inf
      %2446 = vmax.xlane.f32.xlu0 %v2445
      %v2447 = vpop.xlane.xlu0 %2446
      %v2448 = vsub.f32 %v2065, %v2402
      %v2449 = vsub.f32 %v2068, %v2405
      %v2450 = vsub.f32 %v2112, %v2408
      %v2451 = vsub.f32 %v2115, %v2411
      %v2452 = vsub.f32 %v2159, %v2414
      %v2453 = vsub.f32 %v2162, %v2417
      %v2454 = vsub.f32 %v2206, %v2420
      %v2455 = vsub.f32 %v2209, %v2423
      %v2456 = vsub.f32 %v2253, %v2426
      %v2457 = vsub.f32 %v2256, %v2429
      %v2458 = vsub.f32 %v2300, %v2432
      %v2459 = vsub.f32 %v2303, %v2435
      %v2460 = vsub.f32 %v2347, %v2438
      %v2461 = vsub.f32 %v2350, %v2441
      %v2462 = vsub.f32 %v2394, %v2444
      %v2463 = vsub.f32 %v2397, %v2447
      %v2464 = vmul.f32 %v2448, 1.442695
      %v2465 = vpow.pop %v2464
      %v2466 = vmul.f32 %v2449, 1.442695
      %v2467 = vpow.pop %v2466
      %v2468 = vmul.f32 %v2450, 1.442695
      %v2469 = vpow.pop %v2468
      %v2470 = vmul.f32 %v2451, 1.442695
      %v2471 = vpow.pop %v2470
      %v2472 = vmul.f32 %v2452, 1.442695
      %v2473 = vpow.pop %v2472
      %v2474 = vmul.f32 %v2453, 1.442695
      %v2475 = vpow.pop %v2474
      %v2476 = vmul.f32 %v2454, 1.442695
      %v2477 = vpow.pop %v2476
      %v2478 = vmul.f32 %v2455, 1.442695
      %v2479 = vpow.pop %v2478
      %v2480 = vmul.f32 %v2456, 1.442695
      %v2481 = vpow.pop %v2480
      %v2482 = vmul.f32 %v2457, 1.442695
      %v2483 = vpow.pop %v2482
      %v2484 = vmul.f32 %v2458, 1.442695
      %v2485 = vpow.pop %v2484
      %v2486 = vmul.f32 %v2459, 1.442695
      %v2487 = vpow.pop %v2486
      %v2488 = vmul.f32 %v2460, 1.442695
      %v2489 = vpow.pop %v2488
      %v2490 = vmul.f32 %v2461, 1.442695
      %v2491 = vpow.pop %v2490
      %v2492 = vmul.f32 %v2462, 1.442695
      %v2493 = vpow.pop %v2492
      %v2494 = vmul.f32 %v2463, 1.442695
      %v2495 = vpow.pop %v2494
      %v2496 = vsel %vm2023, %v2465, 0.0
      %2497 = vadd.xlane.f32.xlu0 %v2496
      %v2498 = vpop.xlane.xlu0 %2497
      %v2499 = vsel %vm2023, %v2467, 0.0
      %2500 = vadd.xlane.f32.xlu0 %v2499
      %v2501 = vpop.xlane.xlu0 %2500
      %v2502 = vsel %vm2023, %v2469, 0.0
      %2503 = vadd.xlane.f32.xlu0 %v2502
      %v2504 = vpop.xlane.xlu0 %2503
      %v2505 = vsel %vm2023, %v2471, 0.0
      %2506 = vadd.xlane.f32.xlu0 %v2505
      %v2507 = vpop.xlane.xlu0 %2506
      %v2508 = vsel %vm2023, %v2473, 0.0
      %2509 = vadd.xlane.f32.xlu0 %v2508
      %v2510 = vpop.xlane.xlu0 %2509
      %v2511 = vsel %vm2023, %v2475, 0.0
      %2512 = vadd.xlane.f32.xlu0 %v2511
      %v2513 = vpop.xlane.xlu0 %2512
      %v2514 = vsel %vm2023, %v2477, 0.0
      %2515 = vadd.xlane.f32.xlu0 %v2514
      %v2516 = vpop.xlane.xlu0 %2515
      %v2517 = vsel %vm2023, %v2479, 0.0
      %2518 = vadd.xlane.f32.xlu0 %v2517
      %v2519 = vpop.xlane.xlu0 %2518
      %v2520 = vsel %vm2023, %v2481, 0.0
      %2521 = vadd.xlane.f32.xlu0 %v2520
      %v2522 = vpop.xlane.xlu0 %2521
      %v2523 = vsel %vm2023, %v2483, 0.0
      %2524 = vadd.xlane.f32.xlu0 %v2523
      %v2525 = vpop.xlane.xlu0 %2524
      %v2526 = vsel %vm2023, %v2485, 0.0
      %2527 = vadd.xlane.f32.xlu0 %v2526
      %v2528 = vpop.xlane.xlu0 %2527
      %v2529 = vsel %vm2023, %v2487, 0.0
      %2530 = vadd.xlane.f32.xlu0 %v2529
      %v2531 = vpop.xlane.xlu0 %2530
      %v2532 = vsel %vm2023, %v2489, 0.0
      %2533 = vadd.xlane.f32.xlu0 %v2532
      %v2534 = vpop.xlane.xlu0 %2533
      %v2535 = vsel %vm2023, %v2491, 0.0
      %2536 = vadd.xlane.f32.xlu0 %v2535
      %v2537 = vpop.xlane.xlu0 %2536
      %v2538 = vsel %vm2023, %v2493, 0.0
      %2539 = vadd.xlane.f32.xlu0 %v2538
      %v2540 = vpop.xlane.xlu0 %2539
      %v2541 = vsel %vm2023, %v2495, 0.0
      %2542 = vadd.xlane.f32.xlu0 %v2541
      %v2543 = vpop.xlane.xlu0 %2542
      %v2544 = vrcp.pop %v2498
      %v2545 = vrcp.pop %v2501
      %v2546 = vrcp.pop %v2504
      %v2547 = vrcp.pop %v2507
      %v2548 = vrcp.pop %v2510
      %v2549 = vrcp.pop %v2513
      %v2550 = vrcp.pop %v2516
      %v2551 = vrcp.pop %v2519
      %v2552 = vrcp.pop %v2522
      %v2553 = vrcp.pop %v2525
      %v2554 = vrcp.pop %v2528
      %v2555 = vrcp.pop %v2531
      %v2556 = vrcp.pop %v2534
      %v2557 = vrcp.pop %v2537
      %v2558 = vrcp.pop %v2540
      %v2559 = vrcp.pop %v2543
      %v2560 = vmul.f32 %v2465, %v2544
      %v2561 = vmul.f32 %v2467, %v2545
      %v2562 = vmul.f32 %v2469, %v2546
      %v2563 = vmul.f32 %v2471, %v2547
      %v2564 = vmul.f32 %v2473, %v2548
      %v2565 = vmul.f32 %v2475, %v2549
      %v2566 = vmul.f32 %v2477, %v2550
      %v2567 = vmul.f32 %v2479, %v2551
      %v2568 = vmul.f32 %v2481, %v2552
      %v2569 = vmul.f32 %v2483, %v2553
      %v2570 = vmul.f32 %v2485, %v2554
      %v2571 = vmul.f32 %v2487, %v2555
      %v2572 = vmul.f32 %v2489, %v2556
      %v2573 = vmul.f32 %v2491, %v2557
      %v2574 = vmul.f32 %v2493, %v2558
      %v2575 = vmul.f32 %v2495, %v2559
      %v2576 = vpack.c.bf16 %v2561, %v2560
      %v2577 = vpack.c.bf16 %v2563, %v2562
      %v2578 = vpack.c.bf16 %v2565, %v2564
      %v2579 = vpack.c.bf16 %v2567, %v2566
      %v2580 = vpack.c.bf16 %v2569, %v2568
      %v2581 = vpack.c.bf16 %v2571, %v2570
      %v2582 = vpack.c.bf16 %v2573, %v2572
      %v2583 = vpack.c.bf16 %v2575, %v2574
      %v2585 = vsel %vm2023, %v2576, 0
      %2587 = vmatprep.subr.bf16.mxu0 0
      %2588 = vmatpush1.bf16.msra.mxu0 0
      %2589 = vmatprep.subr.bf16.mxu0 0
      %2590 = vmatpush1.bf16.msra.mxu0 0
      %2591 = vmatprep.subr.bf16.mxu0 0
      %2592 = vmatpush1.bf16.msra.mxu0 0
      %2593 = vmatprep.subr.bf16.mxu0 0
      %2594 = vmatpush1.bf16.msra.mxu0 0
      %2595 = vmatprep.subr.bf16.mxu0 0
      %2596 = vmatpush1.bf16.msra.mxu0 0
      %2597 = vmatprep.subr.bf16.mxu0 0
      %2598 = vmatpush1.bf16.msra.mxu0 0
      %2599 = vmatprep.subr.bf16.mxu0 0
      %2600 = vmatpush1.bf16.msra.mxu0 0
      %2601 = vmatprep.subr.bf16.mxu0 0
      %2602 = vmatpush1.bf16.msra.mxu0 %v2015
      %2603 = vmatprep.subr.bf16.mxu0 0
      %2604 = vmatpush2.bf16.msra.mxu0 0
      %2605 = vmatprep.subr.bf16.mxu0 0
      %2606 = vmatpush2.bf16.msra.mxu0 0
      %2607 = vmatprep.subr.bf16.mxu0 0
      %2608 = vmatpush2.bf16.msra.mxu0 0
      %2609 = vmatprep.subr.bf16.mxu0 0
      %2610 = vmatpush2.bf16.msra.mxu0 0
      %2611 = vmatprep.subr.bf16.mxu0 0
      %2612 = vmatpush2.bf16.msra.mxu0 0
      %2613 = vmatprep.subr.bf16.mxu0 0
      %2614 = vmatpush2.bf16.msra.mxu0 0
      %2615 = vmatprep.subr.bf16.mxu0 0
      %2616 = vmatpush2.bf16.msra.mxu0 0
      %2617 = vmatprep.subr.bf16.mxu0 0
      %2618 = vmatpush2.bf16.msra.mxu0 0
      %2619 = vmatprep.mubr.bf16.mxu0 0
      %2620 = vmatmul.mubr.bf16.gmra.mxu0 %v2585
      %v2621 = vpop.f32.mrf.mxu0
      %v2622 = vadd.f32 0.0, %v2621
      %v2623 = vpop.f32.mrf.mxu0
      %v2624 = vpop.f32.mrf.mxu0
      %v2625 = vadd.f32 0.0, %v2624
      %v2626 = vpop.f32.mrf.mxu0
      %2627 = vdwg.mxu0
      %v2629 = vsel %vm2023, %v2577, 0
      %2631 = vmatprep.subr.bf16.mxu0 0
      %2632 = vmatpush1.bf16.msra.mxu0 0
      %2633 = vmatprep.subr.bf16.mxu0 0
      %2634 = vmatpush1.bf16.msra.mxu0 0
      %2635 = vmatprep.subr.bf16.mxu0 0
      %2636 = vmatpush1.bf16.msra.mxu0 0
      %2637 = vmatprep.subr.bf16.mxu0 0
      %2638 = vmatpush1.bf16.msra.mxu0 0
      %2639 = vmatprep.subr.bf16.mxu0 0
      %2640 = vmatpush1.bf16.msra.mxu0 0
      %2641 = vmatprep.subr.bf16.mxu0 0
      %2642 = vmatpush1.bf16.msra.mxu0 0
      %2643 = vmatprep.subr.bf16.mxu0 0
      %2644 = vmatpush1.bf16.msra.mxu0 0
      %2645 = vmatprep.subr.bf16.mxu0 0
      %2646 = vmatpush1.bf16.msra.mxu0 %v2016
      %2647 = vmatprep.subr.bf16.mxu0 0
      %2648 = vmatpush2.bf16.msra.mxu0 0
      %2649 = vmatprep.subr.bf16.mxu0 0
      %2650 = vmatpush2.bf16.msra.mxu0 0
      %2651 = vmatprep.subr.bf16.mxu0 0
      %2652 = vmatpush2.bf16.msra.mxu0 0
      %2653 = vmatprep.subr.bf16.mxu0 0
      %2654 = vmatpush2.bf16.msra.mxu0 0
      %2655 = vmatprep.subr.bf16.mxu0 0
      %2656 = vmatpush2.bf16.msra.mxu0 0
      %2657 = vmatprep.subr.bf16.mxu0 0
      %2658 = vmatpush2.bf16.msra.mxu0 0
      %2659 = vmatprep.subr.bf16.mxu0 0
      %2660 = vmatpush2.bf16.msra.mxu0 0
      %2661 = vmatprep.subr.bf16.mxu0 0
      %2662 = vmatpush2.bf16.msra.mxu0 0
      %2663 = vmatprep.mubr.bf16.mxu0 0
      %2664 = vmatmul.mubr.bf16.gmra.mxu0 %v2629
      %v2665 = vpop.f32.mrf.mxu0
      %v2666 = vadd.f32 0.0, %v2665
      %v2667 = vpop.f32.mrf.mxu0
      %v2668 = vpop.f32.mrf.mxu0
      %v2669 = vadd.f32 0.0, %v2668
      %v2670 = vpop.f32.mrf.mxu0
      %2671 = vdwg.mxu0
      %v2673 = vsel %vm2023, %v2578, 0
      %2675 = vmatprep.subr.bf16.mxu0 0
      %2676 = vmatpush1.bf16.msra.mxu0 0
      %2677 = vmatprep.subr.bf16.mxu0 0
      %2678 = vmatpush1.bf16.msra.mxu0 0
      %2679 = vmatprep.subr.bf16.mxu0 0
      %2680 = vmatpush1.bf16.msra.mxu0 0
      %2681 = vmatprep.subr.bf16.mxu0 0
      %2682 = vmatpush1.bf16.msra.mxu0 0
      %2683 = vmatprep.subr.bf16.mxu0 0
      %2684 = vmatpush1.bf16.msra.mxu0 0
      %2685 = vmatprep.subr.bf16.mxu0 0
      %2686 = vmatpush1.bf16.msra.mxu0 0
      %2687 = vmatprep.subr.bf16.mxu0 0
      %2688 = vmatpush1.bf16.msra.mxu0 0
      %2689 = vmatprep.subr.bf16.mxu0 0
      %2690 = vmatpush1.bf16.msra.mxu0 %v2017
      %2691 = vmatprep.subr.bf16.mxu0 0
      %2692 = vmatpush2.bf16.msra.mxu0 0
      %2693 = vmatprep.subr.bf16.mxu0 0
      %2694 = vmatpush2.bf16.msra.mxu0 0
      %2695 = vmatprep.subr.bf16.mxu0 0
      %2696 = vmatpush2.bf16.msra.mxu0 0
      %2697 = vmatprep.subr.bf16.mxu0 0
      %2698 = vmatpush2.bf16.msra.mxu0 0
      %2699 = vmatprep.subr.bf16.mxu0 0
      %2700 = vmatpush2.bf16.msra.mxu0 0
      %2701 = vmatprep.subr.bf16.mxu0 0
      %2702 = vmatpush2.bf16.msra.mxu0 0
      %2703 = vmatprep.subr.bf16.mxu0 0
      %2704 = vmatpush2.bf16.msra.mxu0 0
      %2705 = vmatprep.subr.bf16.mxu0 0
      %2706 = vmatpush2.bf16.msra.mxu0 0
      %2707 = vmatprep.mubr.bf16.mxu0 0
      %2708 = vmatmul.mubr.bf16.gmra.mxu0 %v2673
      %v2709 = vpop.f32.mrf.mxu0
      %v2710 = vadd.f32 0.0, %v2709
      %v2711 = vpop.f32.mrf.mxu0
      %v2712 = vpop.f32.mrf.mxu0
      %v2713 = vadd.f32 0.0, %v2712
      %v2714 = vpop.f32.mrf.mxu0
      %2715 = vdwg.mxu0
      %v2717 = vsel %vm2023, %v2579, 0
      %2719 = vmatprep.subr.bf16.mxu0 0
      %2720 = vmatpush1.bf16.msra.mxu0 0
      %2721 = vmatprep.subr.bf16.mxu0 0
      %2722 = vmatpush1.bf16.msra.mxu0 0
      %2723 = vmatprep.subr.bf16.mxu0 0
      %2724 = vmatpush1.bf16.msra.mxu0 0
      %2725 = vmatprep.subr.bf16.mxu0 0
      %2726 = vmatpush1.bf16.msra.mxu0 0
      %2727 = vmatprep.subr.bf16.mxu0 0
      %2728 = vmatpush1.bf16.msra.mxu0 0
      %2729 = vmatprep.subr.bf16.mxu0 0
      %2730 = vmatpush1.bf16.msra.mxu0 0
      %2731 = vmatprep.subr.bf16.mxu0 0
      %2732 = vmatpush1.bf16.msra.mxu0 0
      %2733 = vmatprep.subr.bf16.mxu0 0
      %2734 = vmatpush1.bf16.msra.mxu0 %v2018
      %2735 = vmatprep.subr.bf16.mxu0 0
      %2736 = vmatpush2.bf16.msra.mxu0 0
      %2737 = vmatprep.subr.bf16.mxu0 0
      %2738 = vmatpush2.bf16.msra.mxu0 0
      %2739 = vmatprep.subr.bf16.mxu0 0
      %2740 = vmatpush2.bf16.msra.mxu0 0
      %2741 = vmatprep.subr.bf16.mxu0 0
      %2742 = vmatpush2.bf16.msra.mxu0 0
      %2743 = vmatprep.subr.bf16.mxu0 0
      %2744 = vmatpush2.bf16.msra.mxu0 0
      %2745 = vmatprep.subr.bf16.mxu0 0
      %2746 = vmatpush2.bf16.msra.mxu0 0
      %2747 = vmatprep.subr.bf16.mxu0 0
      %2748 = vmatpush2.bf16.msra.mxu0 0
      %2749 = vmatprep.subr.bf16.mxu0 0
      %2750 = vmatpush2.bf16.msra.mxu0 0
      %2751 = vmatprep.mubr.bf16.mxu0 0
      %2752 = vmatmul.mubr.bf16.gmra.mxu0 %v2717
      %v2753 = vpop.f32.mrf.mxu0
      %v2754 = vadd.f32 0.0, %v2753
      %v2755 = vpop.f32.mrf.mxu0
      %v2756 = vpop.f32.mrf.mxu0
      %v2757 = vadd.f32 0.0, %v2756
      %v2758 = vpop.f32.mrf.mxu0
      %2759 = vdwg.mxu0
      %v2761 = vsel %vm2023, %v2580, 0
      %2763 = vmatprep.subr.bf16.mxu0 0
      %2764 = vmatpush1.bf16.msra.mxu0 0
      %2765 = vmatprep.subr.bf16.mxu0 0
      %2766 = vmatpush1.bf16.msra.mxu0 0
      %2767 = vmatprep.subr.bf16.mxu0 0
      %2768 = vmatpush1.bf16.msra.mxu0 0
      %2769 = vmatprep.subr.bf16.mxu0 0
      %2770 = vmatpush1.bf16.msra.mxu0 0
      %2771 = vmatprep.subr.bf16.mxu0 0
      %2772 = vmatpush1.bf16.msra.mxu0 0
      %2773 = vmatprep.subr.bf16.mxu0 0
      %2774 = vmatpush1.bf16.msra.mxu0 0
      %2775 = vmatprep.subr.bf16.mxu0 0
      %2776 = vmatpush1.bf16.msra.mxu0 0
      %2777 = vmatprep.subr.bf16.mxu0 0
      %2778 = vmatpush1.bf16.msra.mxu0 %v2019
      %2779 = vmatprep.subr.bf16.mxu0 0
      %2780 = vmatpush2.bf16.msra.mxu0 0
      %2781 = vmatprep.subr.bf16.mxu0 0
      %2782 = vmatpush2.bf16.msra.mxu0 0
      %2783 = vmatprep.subr.bf16.mxu0 0
      %2784 = vmatpush2.bf16.msra.mxu0 0
      %2785 = vmatprep.subr.bf16.mxu0 0
      %2786 = vmatpush2.bf16.msra.mxu0 0
      %2787 = vmatprep.subr.bf16.mxu0 0
      %2788 = vmatpush2.bf16.msra.mxu0 0
      %2789 = vmatprep.subr.bf16.mxu0 0
      %2790 = vmatpush2.bf16.msra.mxu0 0
      %2791 = vmatprep.subr.bf16.mxu0 0
      %2792 = vmatpush2.bf16.msra.mxu0 0
      %2793 = vmatprep.subr.bf16.mxu0 0
      %2794 = vmatpush2.bf16.msra.mxu0 0
      %2795 = vmatprep.mubr.bf16.mxu0 0
      %2796 = vmatmul.mubr.bf16.gmra.mxu0 %v2761
      %v2797 = vpop.f32.mrf.mxu0
      %v2798 = vadd.f32 0.0, %v2797
      %v2799 = vpop.f32.mrf.mxu0
      %v2800 = vpop.f32.mrf.mxu0
      %v2801 = vadd.f32 0.0, %v2800
      %v2802 = vpop.f32.mrf.mxu0
      %2803 = vdwg.mxu0
      %v2805 = vsel %vm2023, %v2581, 0
      %2807 = vmatprep.subr.bf16.mxu0 0
      %2808 = vmatpush1.bf16.msra.mxu0 0
      %2809 = vmatprep.subr.bf16.mxu0 0
      %2810 = vmatpush1.bf16.msra.mxu0 0
      %2811 = vmatprep.subr.bf16.mxu0 0
      %2812 = vmatpush1.bf16.msra.mxu0 0
      %2813 = vmatprep.subr.bf16.mxu0 0
      %2814 = vmatpush1.bf16.msra.mxu0 0
      %2815 = vmatprep.subr.bf16.mxu0 0
      %2816 = vmatpush1.bf16.msra.mxu0 0
      %2817 = vmatprep.subr.bf16.mxu0 0
      %2818 = vmatpush1.bf16.msra.mxu0 0
      %2819 = vmatprep.subr.bf16.mxu0 0
      %2820 = vmatpush1.bf16.msra.mxu0 0
      %2821 = vmatprep.subr.bf16.mxu0 0
      %2822 = vmatpush1.bf16.msra.mxu0 %v2020
      %2823 = vmatprep.subr.bf16.mxu0 0
      %2824 = vmatpush2.bf16.msra.mxu0 0
      %2825 = vmatprep.subr.bf16.mxu0 0
      %2826 = vmatpush2.bf16.msra.mxu0 0
      %2827 = vmatprep.subr.bf16.mxu0 0
      %2828 = vmatpush2.bf16.msra.mxu0 0
      %2829 = vmatprep.subr.bf16.mxu0 0
      %2830 = vmatpush2.bf16.msra.mxu0 0
      %2831 = vmatprep.subr.bf16.mxu0 0
      %2832 = vmatpush2.bf16.msra.mxu0 0
      %2833 = vmatprep.subr.bf16.mxu0 0
      %2834 = vmatpush2.bf16.msra.mxu0 0
      %2835 = vmatprep.subr.bf16.mxu0 0
      %2836 = vmatpush2.bf16.msra.mxu0 0
      %2837 = vmatprep.subr.bf16.mxu0 0
      %2838 = vmatpush2.bf16.msra.mxu0 0
      %2839 = vmatprep.mubr.bf16.mxu0 0
      %2840 = vmatmul.mubr.bf16.gmra.mxu0 %v2805
      %v2841 = vpop.f32.mrf.mxu0
      %v2842 = vadd.f32 0.0, %v2841
      %v2843 = vpop.f32.mrf.mxu0
      %v2844 = vpop.f32.mrf.mxu0
      %v2845 = vadd.f32 0.0, %v2844
      %v2846 = vpop.f32.mrf.mxu0
      %2847 = vdwg.mxu0
      %v2849 = vsel %vm2023, %v2582, 0
      %2851 = vmatprep.subr.bf16.mxu0 0
      %2852 = vmatpush1.bf16.msra.mxu0 0
      %2853 = vmatprep.subr.bf16.mxu0 0
      %2854 = vmatpush1.bf16.msra.mxu0 0
      %2855 = vmatprep.subr.bf16.mxu0 0
      %2856 = vmatpush1.bf16.msra.mxu0 0
      %2857 = vmatprep.subr.bf16.mxu0 0
      %2858 = vmatpush1.bf16.msra.mxu0 0
      %2859 = vmatprep.subr.bf16.mxu0 0
      %2860 = vmatpush1.bf16.msra.mxu0 0
      %2861 = vmatprep.subr.bf16.mxu0 0
      %2862 = vmatpush1.bf16.msra.mxu0 0
      %2863 = vmatprep.subr.bf16.mxu0 0
      %2864 = vmatpush1.bf16.msra.mxu0 0
      %2865 = vmatprep.subr.bf16.mxu0 0
      %2866 = vmatpush1.bf16.msra.mxu0 %v2021
      %2867 = vmatprep.subr.bf16.mxu0 0
      %2868 = vmatpush2.bf16.msra.mxu0 0
      %2869 = vmatprep.subr.bf16.mxu0 0
      %2870 = vmatpush2.bf16.msra.mxu0 0
      %2871 = vmatprep.subr.bf16.mxu0 0
      %2872 = vmatpush2.bf16.msra.mxu0 0
      %2873 = vmatprep.subr.bf16.mxu0 0
      %2874 = vmatpush2.bf16.msra.mxu0 0
      %2875 = vmatprep.subr.bf16.mxu0 0
      %2876 = vmatpush2.bf16.msra.mxu0 0
      %2877 = vmatprep.subr.bf16.mxu0 0
      %2878 = vmatpush2.bf16.msra.mxu0 0
      %2879 = vmatprep.subr.bf16.mxu0 0
      %2880 = vmatpush2.bf16.msra.mxu0 0
      %2881 = vmatprep.subr.bf16.mxu0 0
      %2882 = vmatpush2.bf16.msra.mxu0 0
      %2883 = vmatprep.mubr.bf16.mxu0 0
      %2884 = vmatmul.mubr.bf16.gmra.mxu0 %v2849
      %v2885 = vpop.f32.mrf.mxu0
      %v2886 = vadd.f32 0.0, %v2885
      %v2887 = vpop.f32.mrf.mxu0
      %v2888 = vpop.f32.mrf.mxu0
      %v2889 = vadd.f32 0.0, %v2888
      %v2890 = vpop.f32.mrf.mxu0
      %2891 = vdwg.mxu0
      %v2893 = vsel %vm2023, %v2583, 0
      %2895 = vmatprep.subr.bf16.mxu0 0
      %2896 = vmatpush1.bf16.msra.mxu0 0
      %2897 = vmatprep.subr.bf16.mxu0 0
      %2898 = vmatpush1.bf16.msra.mxu0 0
      %2899 = vmatprep.subr.bf16.mxu0 0
      %2900 = vmatpush1.bf16.msra.mxu0 0
      %2901 = vmatprep.subr.bf16.mxu0 0
      %2902 = vmatpush1.bf16.msra.mxu0 0
      %2903 = vmatprep.subr.bf16.mxu0 0
      %2904 = vmatpush1.bf16.msra.mxu0 0
      %2905 = vmatprep.subr.bf16.mxu0 0
      %2906 = vmatpush1.bf16.msra.mxu0 0
      %2907 = vmatprep.subr.bf16.mxu0 0
      %2908 = vmatpush1.bf16.msra.mxu0 0
      %2909 = vmatprep.subr.bf16.mxu0 0
      %2910 = vmatpush1.bf16.msra.mxu0 %v2022
      %2911 = vmatprep.subr.bf16.mxu0 0
      %2912 = vmatpush2.bf16.msra.mxu0 0
      %2913 = vmatprep.subr.bf16.mxu0 0
      %2914 = vmatpush2.bf16.msra.mxu0 0
      %2915 = vmatprep.subr.bf16.mxu0 0
      %2916 = vmatpush2.bf16.msra.mxu0 0
      %2917 = vmatprep.subr.bf16.mxu0 0
      %2918 = vmatpush2.bf16.msra.mxu0 0
      %2919 = vmatprep.subr.bf16.mxu0 0
      %2920 = vmatpush2.bf16.msra.mxu0 0
      %2921 = vmatprep.subr.bf16.mxu0 0
      %2922 = vmatpush2.bf16.msra.mxu0 0
      %2923 = vmatprep.subr.bf16.mxu0 0
      %2924 = vmatpush2.bf16.msra.mxu0 0
      %2925 = vmatprep.subr.bf16.mxu0 0
      %2926 = vmatpush2.bf16.msra.mxu0 0
      %2927 = vmatprep.mubr.bf16.mxu0 0
      %2928 = vmatmul.mubr.bf16.gmra.mxu0 %v2893
      %v2929 = vpop.f32.mrf.mxu0
      %v2930 = vadd.f32 0.0, %v2929
      %v2931 = vpop.f32.mrf.mxu0
      %v2932 = vpop.f32.mrf.mxu0
      %v2933 = vadd.f32 0.0, %v2932
      %v2934 = vpop.f32.mrf.mxu0
      %2935 = vdwg.mxu0
      %v2936 = vcombine.low %v2622, %v2710
      %v2937 = vcombine.high %v2622, %v2710
      %v2939 = vunpack.c.l.s4 1983009808
      %v2940 = vunpack.c.0.s8 %v2939
      %v2941 = vlaneseq
      %v2942 = vshrl.u32 %v2941, 7
      %v2943 = vsub.s32 %v2940, %v2942
      %v2944 = vrot.slane %v2936, %v2943
      %v2946 = vunpack.c.l.s4 1983009808
      %v2947 = vunpack.c.0.s8 %v2946
      %v2948 = vlaneseq
      %v2949 = vshrl.u32 %v2948, 7
      %v2950 = vsub.s32 %v2947, %v2949
      %v2951 = vrot.slane %v2937, %v2950
      %v2952 = vcombine.low %v2666, %v2754
      %v2953 = vcombine.high %v2666, %v2754
      %v2955 = vunpack.c.l.s4 1983009808
      %v2956 = vunpack.c.0.s8 %v2955
      %v2957 = vlaneseq
      %v2958 = vshrl.u32 %v2957, 7
      %v2959 = vsub.s32 %v2956, %v2958
      %v2960 = vrot.slane %v2952, %v2959
      %v2962 = vunpack.c.l.s4 1983009808
      %v2963 = vunpack.c.0.s8 %v2962
      %v2964 = vlaneseq
      %v2965 = vshrl.u32 %v2964, 7
      %v2966 = vsub.s32 %v2963, %v2965
      %v2967 = vrot.slane %v2953, %v2966
      %v2968 = vcombine.low %v2944, %v2960
      %v2969 = vcombine.high %v2944, %v2960
      %v2971 = vunpack.c.l.s4 1934713408
      %v2972 = vunpack.c.0.s8 %v2971
      %v2973 = vlaneseq
      %v2974 = vshrl.u32 %v2973, 7
      %v2975 = vsub.s32 %v2972, %v2974
      %v2976 = vrot.slane %v2968, %v2975
      %v2978 = vunpack.c.l.s4 1934713408
      %v2979 = vunpack.c.0.s8 %v2978
      %v2980 = vlaneseq
      %v2981 = vshrl.u32 %v2980, 7
      %v2982 = vsub.s32 %v2979, %v2981
      %v2983 = vrot.slane %v2969, %v2982
      %v2984 = vcombine.low %v2951, %v2967
      %v2985 = vcombine.high %v2951, %v2967
      %v2987 = vunpack.c.l.s4 1934713408
      %v2988 = vunpack.c.0.s8 %v2987
      %v2989 = vlaneseq
      %v2990 = vshrl.u32 %v2989, 7
      %v2991 = vsub.s32 %v2988, %v2990
      %v2992 = vrot.slane %v2984, %v2991
      %v2994 = vunpack.c.l.s4 1934713408
      %v2995 = vunpack.c.0.s8 %v2994
      %v2996 = vlaneseq
      %v2997 = vshrl.u32 %v2996, 7
      %v2998 = vsub.s32 %v2995, %v2997
      %v2999 = vrot.slane %v2985, %v2998
      %v3000 = vcombine.high %v2976, 0.0
      %v3001 = vcombine.high %v2983, 0.0
      %v3002 = vcombine.high %v2992, 0.0
      %v3003 = vcombine.high %v2999, 0.0
      %v3004 = vcombine.low %v2625, %v2713
      %v3005 = vcombine.high %v2625, %v2713
      %v3007 = vunpack.c.l.s4 1983009808
      %v3008 = vunpack.c.0.s8 %v3007
      %v3009 = vlaneseq
      %v3010 = vshrl.u32 %v3009, 7
      %v3011 = vsub.s32 %v3008, %v3010
      %v3012 = vrot.slane %v3004, %v3011
      %v3014 = vunpack.c.l.s4 1983009808
      %v3015 = vunpack.c.0.s8 %v3014
      %v3016 = vlaneseq
      %v3017 = vshrl.u32 %v3016, 7
      %v3018 = vsub.s32 %v3015, %v3017
      %v3019 = vrot.slane %v3005, %v3018
      %v3020 = vcombine.low %v2669, %v2757
      %v3021 = vcombine.high %v2669, %v2757
      %v3023 = vunpack.c.l.s4 1983009808
      %v3024 = vunpack.c.0.s8 %v3023
      %v3025 = vlaneseq
      %v3026 = vshrl.u32 %v3025, 7
      %v3027 = vsub.s32 %v3024, %v3026
      %v3028 = vrot.slane %v3020, %v3027
      %v3030 = vunpack.c.l.s4 1983009808
      %v3031 = vunpack.c.0.s8 %v3030
      %v3032 = vlaneseq
      %v3033 = vshrl.u32 %v3032, 7
      %v3034 = vsub.s32 %v3031, %v3033
      %v3035 = vrot.slane %v3021, %v3034
      %v3036 = vcombine.low %v3012, %v3028
      %v3037 = vcombine.high %v3012, %v3028
      %v3039 = vunpack.c.l.s4 1934713408
      %v3040 = vunpack.c.0.s8 %v3039
      %v3041 = vlaneseq
      %v3042 = vshrl.u32 %v3041, 7
      %v3043 = vsub.s32 %v3040, %v3042
      %v3044 = vrot.slane %v3036, %v3043
      %v3046 = vunpack.c.l.s4 1934713408
      %v3047 = vunpack.c.0.s8 %v3046
      %v3048 = vlaneseq
      %v3049 = vshrl.u32 %v3048, 7
      %v3050 = vsub.s32 %v3047, %v3049
      %v3051 = vrot.slane %v3037, %v3050
      %v3052 = vcombine.low %v3019, %v3035
      %v3053 = vcombine.high %v3019, %v3035
      %v3055 = vunpack.c.l.s4 1934713408
      %v3056 = vunpack.c.0.s8 %v3055
      %v3057 = vlaneseq
      %v3058 = vshrl.u32 %v3057, 7
      %v3059 = vsub.s32 %v3056, %v3058
      %v3060 = vrot.slane %v3052, %v3059
      %v3062 = vunpack.c.l.s4 1934713408
      %v3063 = vunpack.c.0.s8 %v3062
      %v3064 = vlaneseq
      %v3065 = vshrl.u32 %v3064, 7
      %v3066 = vsub.s32 %v3063, %v3065
      %v3067 = vrot.slane %v3053, %v3066
      %v3068 = vcombine.high %v3044, 0.0
      %v3069 = vcombine.high %v3051, 0.0
      %v3070 = vcombine.high %v3060, 0.0
      %v3071 = vcombine.high %v3067, 0.0
      %v3072 = vcombine.low %v2798, %v2886
      %v3073 = vcombine.high %v2798, %v2886
      %v3075 = vunpack.c.l.s4 1983009808
      %v3076 = vunpack.c.0.s8 %v3075
      %v3077 = vlaneseq
      %v3078 = vshrl.u32 %v3077, 7
      %v3079 = vsub.s32 %v3076, %v3078
      %v3080 = vrot.slane %v3072, %v3079
      %v3082 = vunpack.c.l.s4 1983009808
      %v3083 = vunpack.c.0.s8 %v3082
      %v3084 = vlaneseq
      %v3085 = vshrl.u32 %v3084, 7
      %v3086 = vsub.s32 %v3083, %v3085
      %v3087 = vrot.slane %v3073, %v3086
      %v3088 = vcombine.low %v2842, %v2930
      %v3089 = vcombine.high %v2842, %v2930
      %v3091 = vunpack.c.l.s4 1983009808
      %v3092 = vunpack.c.0.s8 %v3091
      %v3093 = vlaneseq
      %v3094 = vshrl.u32 %v3093, 7
      %v3095 = vsub.s32 %v3092, %v3094
      %v3096 = vrot.slane %v3088, %v3095
      %v3098 = vunpack.c.l.s4 1983009808
      %v3099 = vunpack.c.0.s8 %v3098
      %v3100 = vlaneseq
      %v3101 = vshrl.u32 %v3100, 7
      %v3102 = vsub.s32 %v3099, %v3101
      %v3103 = vrot.slane %v3089, %v3102
      %v3104 = vcombine.low %v3080, %v3096
      %v3105 = vcombine.high %v3080, %v3096
      %v3107 = vunpack.c.l.s4 1934713408
      %v3108 = vunpack.c.0.s8 %v3107
      %v3109 = vlaneseq
      %v3110 = vshrl.u32 %v3109, 7
      %v3111 = vsub.s32 %v3108, %v3110
      %v3112 = vrot.slane %v3104, %v3111
      %v3114 = vunpack.c.l.s4 1934713408
      %v3115 = vunpack.c.0.s8 %v3114
      %v3116 = vlaneseq
      %v3117 = vshrl.u32 %v3116, 7
      %v3118 = vsub.s32 %v3115, %v3117
      %v3119 = vrot.slane %v3105, %v3118
      %v3120 = vcombine.low %v3087, %v3103
      %v3121 = vcombine.high %v3087, %v3103
      %v3123 = vunpack.c.l.s4 1934713408
      %v3124 = vunpack.c.0.s8 %v3123
      %v3125 = vlaneseq
      %v3126 = vshrl.u32 %v3125, 7
      %v3127 = vsub.s32 %v3124, %v3126
      %v3128 = vrot.slane %v3120, %v3127
      %v3130 = vunpack.c.l.s4 1934713408
      %v3131 = vunpack.c.0.s8 %v3130
      %v3132 = vlaneseq
      %v3133 = vshrl.u32 %v3132, 7
      %v3134 = vsub.s32 %v3131, %v3133
      %v3135 = vrot.slane %v3121, %v3134
      %v3136 = vcombine.high %v3112, 0.0
      %v3137 = vcombine.high %v3119, 0.0
      %v3138 = vcombine.high %v3128, 0.0
      %v3139 = vcombine.high %v3135, 0.0
      %v3140 = vcombine.low %v2801, %v2889
      %v3141 = vcombine.high %v2801, %v2889
      %v3143 = vunpack.c.l.s4 1983009808
      %v3144 = vunpack.c.0.s8 %v3143
      %v3145 = vlaneseq
      %v3146 = vshrl.u32 %v3145, 7
      %v3147 = vsub.s32 %v3144, %v3146
      %v3148 = vrot.slane %v3140, %v3147
      %v3150 = vunpack.c.l.s4 1983009808
      %v3151 = vunpack.c.0.s8 %v3150
      %v3152 = vlaneseq
      %v3153 = vshrl.u32 %v3152, 7
      %v3154 = vsub.s32 %v3151, %v3153
      %v3155 = vrot.slane %v3141, %v3154
      %v3156 = vcombine.low %v2845, %v2933
      %v3157 = vcombine.high %v2845, %v2933
      %v3159 = vunpack.c.l.s4 1983009808
      %v3160 = vunpack.c.0.s8 %v3159
      %v3161 = vlaneseq
      %v3162 = vshrl.u32 %v3161, 7
      %v3163 = vsub.s32 %v3160, %v3162
      %v3164 = vrot.slane %v3156, %v3163
      %v3166 = vunpack.c.l.s4 1983009808
      %v3167 = vunpack.c.0.s8 %v3166
      %v3168 = vlaneseq
      %v3169 = vshrl.u32 %v3168, 7
      %v3170 = vsub.s32 %v3167, %v3169
      %v3171 = vrot.slane %v3157, %v3170
      %v3172 = vcombine.low %v3148, %v3164
      %v3173 = vcombine.high %v3148, %v3164
      %v3175 = vunpack.c.l.s4 1934713408
      %v3176 = vunpack.c.0.s8 %v3175
      %v3177 = vlaneseq
      %v3178 = vshrl.u32 %v3177, 7
      %v3179 = vsub.s32 %v3176, %v3178
      %v3180 = vrot.slane %v3172, %v3179
      %v3182 = vunpack.c.l.s4 1934713408
      %v3183 = vunpack.c.0.s8 %v3182
      %v3184 = vlaneseq
      %v3185 = vshrl.u32 %v3184, 7
      %v3186 = vsub.s32 %v3183, %v3185
      %v3187 = vrot.slane %v3173, %v3186
      %v3188 = vcombine.low %v3155, %v3171
      %v3189 = vcombine.high %v3155, %v3171
      %v3191 = vunpack.c.l.s4 1934713408
      %v3192 = vunpack.c.0.s8 %v3191
      %v3193 = vlaneseq
      %v3194 = vshrl.u32 %v3193, 7
      %v3195 = vsub.s32 %v3192, %v3194
      %v3196 = vrot.slane %v3188, %v3195
      %v3198 = vunpack.c.l.s4 1934713408
      %v3199 = vunpack.c.0.s8 %v3198
      %v3200 = vlaneseq
      %v3201 = vshrl.u32 %v3200, 7
      %v3202 = vsub.s32 %v3199, %v3201
      %v3203 = vrot.slane %v3189, %v3202
      %v3204 = vcombine.high %v3180, 0.0
      %v3205 = vcombine.high %v3187, 0.0
      %v3206 = vcombine.high %v3196, 0.0
      %v3207 = vcombine.high %v3203, 0.0
      %v3208 = vcombine.low %v2976, %v2983
      %v3210 = vunpack.c.l.s4 1983009808
      %v3211 = vunpack.c.0.s8 %v3210
      %v3212 = vlaneseq
      %v3213 = vshrl.u32 %v3212, 7
      %v3214 = vsub.s32 %v3211, %v3213
      %v3215 = vrot.slane %v3208, %v3214
      %v3216 = vcombine.low %v3000, %v3001
      %v3218 = vunpack.c.l.s4 1983009808
      %v3219 = vunpack.c.0.s8 %v3218
      %v3220 = vlaneseq
      %v3221 = vshrl.u32 %v3220, 7
      %v3222 = vsub.s32 %v3219, %v3221
      %v3223 = vrot.slane %v3216, %v3222
      %v3224 = vcombine.low %v2992, %v2999
      %v3226 = vunpack.c.l.s4 1983009808
      %v3227 = vunpack.c.0.s8 %v3226
      %v3228 = vlaneseq
      %v3229 = vshrl.u32 %v3228, 7
      %v3230 = vsub.s32 %v3227, %v3229
      %v3231 = vrot.slane %v3224, %v3230
      %v3232 = vcombine.low %v3002, %v3003
      %v3234 = vunpack.c.l.s4 1983009808
      %v3235 = vunpack.c.0.s8 %v3234
      %v3236 = vlaneseq
      %v3237 = vshrl.u32 %v3236, 7
      %v3238 = vsub.s32 %v3235, %v3237
      %v3239 = vrot.slane %v3232, %v3238
      %v3240 = vcombine.low %v3215, %v3223
      %v3241 = vcombine.high %v3215, %v3223
      %v3243 = vunpack.c.l.s4 1934713408
      %v3244 = vunpack.c.0.s8 %v3243
      %v3245 = vlaneseq
      %v3246 = vshrl.u32 %v3245, 7
      %v3247 = vsub.s32 %v3244, %v3246
      %v3248 = vrot.slane %v3240, %v3247
      %v3250 = vunpack.c.l.s4 1934713408
      %v3251 = vunpack.c.0.s8 %v3250
      %v3252 = vlaneseq
      %v3253 = vshrl.u32 %v3252, 7
      %v3254 = vsub.s32 %v3251, %v3253
      %v3255 = vrot.slane %v3241, %v3254
      %v3256 = vcombine.low %v3231, %v3239
      %v3257 = vcombine.high %v3231, %v3239
      %v3259 = vunpack.c.l.s4 1934713408
      %v3260 = vunpack.c.0.s8 %v3259
      %v3261 = vlaneseq
      %v3262 = vshrl.u32 %v3261, 7
      %v3263 = vsub.s32 %v3260, %v3262
      %v3264 = vrot.slane %v3256, %v3263
      %v3266 = vunpack.c.l.s4 1934713408
      %v3267 = vunpack.c.0.s8 %v3266
      %v3268 = vlaneseq
      %v3269 = vshrl.u32 %v3268, 7
      %v3270 = vsub.s32 %v3267, %v3269
      %v3271 = vrot.slane %v3257, %v3270
      %v3272 = vcombine.low %v3248, %v3264
      %v3273 = vcombine.high %v3248, %v3264
      %v3274 = vcombine.low %v3255, %v3271
      %v3275 = vcombine.high %v3255, %v3271
      %v3276 = vcombine.low %v3044, %v3051
      %v3278 = vunpack.c.l.s4 1983009808
      %v3279 = vunpack.c.0.s8 %v3278
      %v3280 = vlaneseq
      %v3281 = vshrl.u32 %v3280, 7
      %v3282 = vsub.s32 %v3279, %v3281
      %v3283 = vrot.slane %v3276, %v3282
      %v3284 = vcombine.low %v3068, %v3069
      %v3286 = vunpack.c.l.s4 1983009808
      %v3287 = vunpack.c.0.s8 %v3286
      %v3288 = vlaneseq
      %v3289 = vshrl.u32 %v3288, 7
      %v3290 = vsub.s32 %v3287, %v3289
      %v3291 = vrot.slane %v3284, %v3290
      %v3292 = vcombine.low %v3060, %v3067
      %v3294 = vunpack.c.l.s4 1983009808
      %v3295 = vunpack.c.0.s8 %v3294
      %v3296 = vlaneseq
      %v3297 = vshrl.u32 %v3296, 7
      %v3298 = vsub.s32 %v3295, %v3297
      %v3299 = vrot.slane %v3292, %v3298
      %v3300 = vcombine.low %v3070, %v3071
      %v3302 = vunpack.c.l.s4 1983009808
      %v3303 = vunpack.c.0.s8 %v3302
      %v3304 = vlaneseq
      %v3305 = vshrl.u32 %v3304, 7
      %v3306 = vsub.s32 %v3303, %v3305
      %v3307 = vrot.slane %v3300, %v3306
      %v3308 = vcombine.low %v3283, %v3291
      %v3309 = vcombine.high %v3283, %v3291
      %v3311 = vunpack.c.l.s4 1934713408
      %v3312 = vunpack.c.0.s8 %v3311
      %v3313 = vlaneseq
      %v3314 = vshrl.u32 %v3313, 7
      %v3315 = vsub.s32 %v3312, %v3314
      %v3316 = vrot.slane %v3308, %v3315
      %v3318 = vunpack.c.l.s4 1934713408
      %v3319 = vunpack.c.0.s8 %v3318
      %v3320 = vlaneseq
      %v3321 = vshrl.u32 %v3320, 7
      %v3322 = vsub.s32 %v3319, %v3321
      %v3323 = vrot.slane %v3309, %v3322
      %v3324 = vcombine.low %v3299, %v3307
      %v3325 = vcombine.high %v3299, %v3307
      %v3327 = vunpack.c.l.s4 1934713408
      %v3328 = vunpack.c.0.s8 %v3327
      %v3329 = vlaneseq
      %v3330 = vshrl.u32 %v3329, 7
      %v3331 = vsub.s32 %v3328, %v3330
      %v3332 = vrot.slane %v3324, %v3331
      %v3334 = vunpack.c.l.s4 1934713408
      %v3335 = vunpack.c.0.s8 %v3334
      %v3336 = vlaneseq
      %v3337 = vshrl.u32 %v3336, 7
      %v3338 = vsub.s32 %v3335, %v3337
      %v3339 = vrot.slane %v3325, %v3338
      %v3340 = vcombine.low %v3316, %v3332
      %v3341 = vcombine.high %v3316, %v3332
      %v3342 = vcombine.low %v3323, %v3339
      %v3343 = vcombine.high %v3323, %v3339
      %v3344 = vcombine.low %v3112, %v3119
      %v3346 = vunpack.c.l.s4 1983009808
      %v3347 = vunpack.c.0.s8 %v3346
      %v3348 = vlaneseq
      %v3349 = vshrl.u32 %v3348, 7
      %v3350 = vsub.s32 %v3347, %v3349
      %v3351 = vrot.slane %v3344, %v3350
      %v3352 = vcombine.low %v3136, %v3137
      %v3354 = vunpack.c.l.s4 1983009808
      %v3355 = vunpack.c.0.s8 %v3354
      %v3356 = vlaneseq
      %v3357 = vshrl.u32 %v3356, 7
      %v3358 = vsub.s32 %v3355, %v3357
      %v3359 = vrot.slane %v3352, %v3358
      %v3360 = vcombine.low %v3128, %v3135
      %v3362 = vunpack.c.l.s4 1983009808
      %v3363 = vunpack.c.0.s8 %v3362
      %v3364 = vlaneseq
      %v3365 = vshrl.u32 %v3364, 7
      %v3366 = vsub.s32 %v3363, %v3365
      %v3367 = vrot.slane %v3360, %v3366
      %v3368 = vcombine.low %v3138, %v3139
      %v3370 = vunpack.c.l.s4 1983009808
      %v3371 = vunpack.c.0.s8 %v3370
      %v3372 = vlaneseq
      %v3373 = vshrl.u32 %v3372, 7
      %v3374 = vsub.s32 %v3371, %v3373
      %v3375 = vrot.slane %v3368, %v3374
      %v3376 = vcombine.low %v3351, %v3359
      %v3377 = vcombine.high %v3351, %v3359
      %v3379 = vunpack.c.l.s4 1934713408
      %v3380 = vunpack.c.0.s8 %v3379
      %v3381 = vlaneseq
      %v3382 = vshrl.u32 %v3381, 7
      %v3383 = vsub.s32 %v3380, %v3382
      %v3384 = vrot.slane %v3376, %v3383
      %v3386 = vunpack.c.l.s4 1934713408
      %v3387 = vunpack.c.0.s8 %v3386
      %v3388 = vlaneseq
      %v3389 = vshrl.u32 %v3388, 7
      %v3390 = vsub.s32 %v3387, %v3389
      %v3391 = vrot.slane %v3377, %v3390
      %v3392 = vcombine.low %v3367, %v3375
      %v3393 = vcombine.high %v3367, %v3375
      %v3395 = vunpack.c.l.s4 1934713408
      %v3396 = vunpack.c.0.s8 %v3395
      %v3397 = vlaneseq
      %v3398 = vshrl.u32 %v3397, 7
      %v3399 = vsub.s32 %v3396, %v3398
      %v3400 = vrot.slane %v3392, %v3399
      %v3402 = vunpack.c.l.s4 1934713408
      %v3403 = vunpack.c.0.s8 %v3402
      %v3404 = vlaneseq
      %v3405 = vshrl.u32 %v3404, 7
      %v3406 = vsub.s32 %v3403, %v3405
      %v3407 = vrot.slane %v3393, %v3406
      %v3408 = vcombine.low %v3384, %v3400
      %v3409 = vcombine.high %v3384, %v3400
      %v3410 = vcombine.low %v3391, %v3407
      %v3411 = vcombine.high %v3391, %v3407
      %v3412 = vcombine.low %v3180, %v3187
      %v3414 = vunpack.c.l.s4 1983009808
      %v3415 = vunpack.c.0.s8 %v3414
      %v3416 = vlaneseq
      %v3417 = vshrl.u32 %v3416, 7
      %v3418 = vsub.s32 %v3415, %v3417
      %v3419 = vrot.slane %v3412, %v3418
      %v3420 = vcombine.low %v3204, %v3205
      %v3422 = vunpack.c.l.s4 1983009808
      %v3423 = vunpack.c.0.s8 %v3422
      %v3424 = vlaneseq
      %v3425 = vshrl.u32 %v3424, 7
      %v3426 = vsub.s32 %v3423, %v3425
      %v3427 = vrot.slane %v3420, %v3426
      %v3428 = vcombine.low %v3196, %v3203
      %v3430 = vunpack.c.l.s4 1983009808
      %v3431 = vunpack.c.0.s8 %v3430
      %v3432 = vlaneseq
      %v3433 = vshrl.u32 %v3432, 7
      %v3434 = vsub.s32 %v3431, %v3433
      %v3435 = vrot.slane %v3428, %v3434
      %v3436 = vcombine.low %v3206, %v3207
      %v3438 = vunpack.c.l.s4 1983009808
      %v3439 = vunpack.c.0.s8 %v3438
      %v3440 = vlaneseq
      %v3441 = vshrl.u32 %v3440, 7
      %v3442 = vsub.s32 %v3439, %v3441
      %v3443 = vrot.slane %v3436, %v3442
      %v3444 = vcombine.low %v3419, %v3427
      %v3445 = vcombine.high %v3419, %v3427
      %v3447 = vunpack.c.l.s4 1934713408
      %v3448 = vunpack.c.0.s8 %v3447
      %v3449 = vlaneseq
      %v3450 = vshrl.u32 %v3449, 7
      %v3451 = vsub.s32 %v3448, %v3450
      %v3452 = vrot.slane %v3444, %v3451
      %v3454 = vunpack.c.l.s4 1934713408
      %v3455 = vunpack.c.0.s8 %v3454
      %v3456 = vlaneseq
      %v3457 = vshrl.u32 %v3456, 7
      %v3458 = vsub.s32 %v3455, %v3457
      %v3459 = vrot.slane %v3445, %v3458
      %v3460 = vcombine.low %v3435, %v3443
      %v3461 = vcombine.high %v3435, %v3443
      %v3463 = vunpack.c.l.s4 1934713408
      %v3464 = vunpack.c.0.s8 %v3463
      %v3465 = vlaneseq
      %v3466 = vshrl.u32 %v3465, 7
      %v3467 = vsub.s32 %v3464, %v3466
      %v3468 = vrot.slane %v3460, %v3467
      %v3470 = vunpack.c.l.s4 1934713408
      %v3471 = vunpack.c.0.s8 %v3470
      %v3472 = vlaneseq
      %v3473 = vshrl.u32 %v3472, 7
      %v3474 = vsub.s32 %v3471, %v3473
      %v3475 = vrot.slane %v3461, %v3474
      %v3476 = vcombine.low %v3452, %v3468
      %v3477 = vcombine.high %v3452, %v3468
      %v3478 = vcombine.low %v3459, %v3475
      %v3479 = vcombine.high %v3459, %v3475
      %3484 = vrot.lane.b32.xlu0 %v3273, 16
      %v3485 = vpop.permute.xlu0 %3484
      %3486 = vrot.lane.b32.xlu0 %v3341, 16
      %v3487 = vpop.permute.xlu0 %3486
      %3488 = vrot.lane.b32.xlu0 %v3409, 16
      %v3489 = vpop.permute.xlu0 %3488
      %3490 = vrot.lane.b32.xlu0 %v3477, 16
      %v3491 = vpop.permute.xlu0 %3490
      %3500 = vrot.lane.b32.xlu0 %v3274, 32
      %v3501 = vpop.permute.xlu0 %3500
      %3502 = vrot.lane.b32.xlu0 %v3342, 32
      %v3503 = vpop.permute.xlu0 %3502
      %3504 = vrot.lane.b32.xlu0 %v3410, 32
      %v3505 = vpop.permute.xlu0 %3504
      %3506 = vrot.lane.b32.xlu0 %v3478, 32
      %v3507 = vpop.permute.xlu0 %3506
      %3516 = vrot.lane.b32.xlu0 %v3275, 48
      %v3517 = vpop.permute.xlu0 %3516
      %3518 = vrot.lane.b32.xlu0 %v3343, 48
      %v3519 = vpop.permute.xlu0 %3518
      %3520 = vrot.lane.b32.xlu0 %v3411, 48
      %v3521 = vpop.permute.xlu0 %3520
      %3522 = vrot.lane.b32.xlu0 %v3479, 48
      %v3523 = vpop.permute.xlu0 %3522
      %v3528 = vsel %vm2023, %v3272, %v3485
      %v3529 = vsel %vm2023, %v3340, %v3487
      %v3530 = vsel %vm2023, %v3408, %v3489
      %v3531 = vsel %vm2023, %v3476, %v3491
      %vm3532 = vcmask 261120
      %v3533 = vsel %vm3532, %v3528, %v3501
      %v3534 = vsel %vm3532, %v3529, %v3503
      %v3535 = vsel %vm3532, %v3530, %v3505
      %v3536 = vsel %vm3532, %v3531, %v3507
      %vm3537 = vcmask 392192
      %v3538 = vsel %vm3537, %v3533, %v3517
      %v3539 = vsel %vm3537, %v3534, %v3519
      %v3540 = vsel %vm3537, %v3535, %v3521
      %v3541 = vsel %vm3537, %v3536, %v3523
      %v3542 = vpack.c.bf16 %v3539, %v3538
      %v3543 = vpack.c.bf16 %v3541, %v3540
      %s3544 = smul.u32 %s50, 8
      %s3545 = smul.addr %s3544, 4
      %s3546 = scalar_lea.vmem %s4, %s3545
      %v3547 = vld [vmem:[%s3546] sm:$0xf]
      %v3548 = vld [vmem:[%s3546 + $0x4] sm:$0xf]
      %v3549 = vld [vmem:[%s3546 + $0x8] sm:$0xf]
      %v3550 = vld [vmem:[%s3546 + $0xc] sm:$0xf]
      %v3551 = vld [vmem:[%s3546 + $0x10] sm:$0xf]
      %v3552 = vld [vmem:[%s3546 + $0x14] sm:$0xf]
      %v3553 = vld [vmem:[%s3546 + $0x18] sm:$0xf]
      %v3554 = vld [vmem:[%s3546 + $0x1c] sm:$0xf]
      %s3555 = scalar_lea.vmem %s5, %s50
      %v3556 = vld [vmem:[%s3555] sm:$0x1]
      %v3558 = vlaneseq
      %v3559 = vshrl.u32 %v3558, 7
      %v3560 = vsub.s32 0, %v3559
      %v3561 = vrot.slane %v3556, %v3560
      %v3571 = vunpack.c.l.b16 %v3547
      %v3572 = vunpack.c.l.b16 %v3548
      %v3573 = vunpack.c.l.b16 %v3549
      %v3574 = vunpack.c.l.b16 %v3550
      %v3575 = vunpack.c.l.b16 %v3551
      %v3576 = vunpack.c.l.b16 %v3552
      %v3577 = vunpack.c.l.b16 %v3553
      %v3578 = vunpack.c.l.b16 %v3554
      %v3579 = vpack.c.b16 %v3572, %v3571
      %v3580 = vpack.c.b16 %v3574, %v3573
      %v3581 = vpack.c.b16 %v3576, %v3575
      %v3582 = vpack.c.b16 %v3578, %v3577
      %v3588 = vsel %vm59, %v3542, 0
      %v3591 = vsel %vm59, %v3543, 0
      %3593 = vmatprep.subr.bf16.mxu0 0
      %3594 = vmatpush1.bf16.msra.mxu0 0
      %3595 = vmatprep.subr.bf16.mxu0 0
      %3596 = vmatpush1.bf16.msra.mxu0 0
      %3597 = vmatprep.subr.bf16.mxu0 0
      %3598 = vmatpush1.bf16.msra.mxu0 0
      %3599 = vmatprep.subr.bf16.mxu0 0
      %3600 = vmatpush1.bf16.msra.mxu0 0
      %3601 = vmatprep.subr.bf16.mxu0 0
      %3602 = vmatpush1.bf16.msra.mxu0 %v3582
      %3603 = vmatprep.subr.bf16.mxu0 0
      %3604 = vmatpush1.bf16.msra.mxu0 %v3581
      %3605 = vmatprep.subr.bf16.mxu0 0
      %3606 = vmatpush1.bf16.msra.mxu0 %v3580
      %3607 = vmatprep.subr.bf16.mxu0 0
      %3608 = vmatpush1.bf16.msra.mxu0 %v3579
      %3609 = vmatprep.subr.bf16.mxu0 0
      %3610 = vmatpush2.bf16.msra.mxu0 0
      %3611 = vmatprep.subr.bf16.mxu0 0
      %3612 = vmatpush2.bf16.msra.mxu0 0
      %3613 = vmatprep.subr.bf16.mxu0 0
      %3614 = vmatpush2.bf16.msra.mxu0 0
      %3615 = vmatprep.subr.bf16.mxu0 0
      %3616 = vmatpush2.bf16.msra.mxu0 0
      %3617 = vmatprep.subr.bf16.mxu0 0
      %3618 = vmatpush2.bf16.msra.mxu0 0
      %3619 = vmatprep.subr.bf16.mxu0 0
      %3620 = vmatpush2.bf16.msra.mxu0 0
      %3621 = vmatprep.subr.bf16.mxu0 0
      %3622 = vmatpush2.bf16.msra.mxu0 0
      %3623 = vmatprep.subr.bf16.mxu0 0
      %3624 = vmatpush2.bf16.msra.mxu0 0
      %3625 = vmatprep.mubr.bf16.mxu0 0
      %3626 = vmatmul.mubr.bf16.gmra.mxu0 %v3588
      %v3627 = vpop.f32.mrf.mxu0
      %v3628 = vadd.f32 %v3561, %v3627
      %v3629 = vpop.f32.mrf.mxu0
      %v3630 = vpop.f32.mrf.mxu0
      %v3631 = vadd.f32 %v3561, %v3630
      %v3632 = vpop.f32.mrf.mxu0
      %3633 = vmatprep.mubr.bf16.mxu0 0
      %3634 = vmatmul.mubr.bf16.gmra.mxu0 %v3591
      %v3635 = vpop.f32.mrf.mxu0
      %v3636 = vadd.f32 %v3561, %v3635
      %v3637 = vpop.f32.mrf.mxu0
      %v3638 = vpop.f32.mrf.mxu0
      %v3639 = vadd.f32 %v3561, %v3638
      %v3640 = vpop.f32.mrf.mxu0
      %3641 = vdwg.mxu0
      %v3642 = vadd.f32 %v55, %v3628
      %v3643 = vadd.f32 %v56, %v3631
      %v3644 = vadd.f32 %v57, %v3636
      %v3645 = vadd.f32 %v58, %v3639
      %v3646 = vsel %vm59, %v3642, 0.0
      %3647 = vadd.xlane.f32.xlu0 %v3646
      %v3648 = vpop.xlane.xlu0 %3647
      %v3649 = vsel %vm59, %v3643, 0.0
      %3650 = vadd.xlane.f32.xlu0 %v3649
      %v3651 = vpop.xlane.xlu0 %3650
      %v3652 = vsel %vm59, %v3644, 0.0
      %3653 = vadd.xlane.f32.xlu0 %v3652
      %v3654 = vpop.xlane.xlu0 %3653
      %v3655 = vsel %vm59, %v3645, 0.0
      %3656 = vadd.xlane.f32.xlu0 %v3655
      %v3657 = vpop.xlane.xlu0 %3656
      %v3658 = vmul.f32 %v3648, %v72
      %v3659 = vmul.f32 %v3651, %v72
      %v3660 = vmul.f32 %v3654, %v72
      %v3661 = vmul.f32 %v3657, %v72
      %v3662 = vsub.f32 %v3642, %v3658
      %v3663 = vsub.f32 %v3643, %v3659
      %v3664 = vsub.f32 %v3644, %v3660
      %v3665 = vsub.f32 %v3645, %v3661
      %v3666 = vmul.f32 %v3662, %v3662
      %v3667 = vmul.f32 %v3663, %v3663
      %v3668 = vmul.f32 %v3664, %v3664
      %v3669 = vmul.f32 %v3665, %v3665
      %v3670 = vsel %vm59, %v3666, 0.0
      %3671 = vadd.xlane.f32.xlu0 %v3670
      %v3672 = vpop.xlane.xlu0 %3671
      %v3673 = vsel %vm59, %v3667, 0.0
      %3674 = vadd.xlane.f32.xlu0 %v3673
      %v3675 = vpop.xlane.xlu0 %3674
      %v3676 = vsel %vm59, %v3668, 0.0
      %3677 = vadd.xlane.f32.xlu0 %v3676
      %v3678 = vpop.xlane.xlu0 %3677
      %v3679 = vsel %vm59, %v3669, 0.0
      %3680 = vadd.xlane.f32.xlu0 %v3679
      %v3681 = vpop.xlane.xlu0 %3680
      %v3682 = vmul.f32 %v3672, %v72
      %v3683 = vmul.f32 %v3675, %v72
      %v3684 = vmul.f32 %v3678, %v72
      %v3685 = vmul.f32 %v3681, %v72
      %v3686 = vadd.f32 %v3682, 1e-05
      %v3687 = vadd.f32 %v3683, 1e-05
      %v3688 = vadd.f32 %v3684, 1e-05
      %v3689 = vadd.f32 %v3685, 1e-05
      %v3690 = vrsqrt.pop %v3686
      %v3691 = vrsqrt.pop %v3687
      %v3692 = vrsqrt.pop %v3688
      %v3693 = vrsqrt.pop %v3689
      %v3694 = vmul.f32 %v3662, %v3690
      %v3695 = vmul.f32 %v3663, %v3691
      %v3696 = vmul.f32 %v3664, %v3692
      %v3697 = vmul.f32 %v3665, %v3693
      %v3698 = vpack.c.bf16 %v3695, %v3694
      %v3699 = vpack.c.bf16 %v3697, %v3696
      %s3700 = smul.addr %s115, 4
      %s3701 = scalar_lea.vmem %s6, %s3700
      %v3702 = vld [vmem:[%s3701] sm:$0xff]
      %v3703 = vld [vmem:[%s3701 + $0x8] sm:$0xff]
      %v3704 = vld [vmem:[%s3701 + $0x10] sm:$0xff]
      %v3705 = vld [vmem:[%s3701 + $0x18] sm:$0xff]
      %v3706 = vld [vmem:[%s3701 + $0x20] sm:$0xff]
      %v3707 = vld [vmem:[%s3701 + $0x28] sm:$0xff]
      %v3708 = vld [vmem:[%s3701 + $0x30] sm:$0xff]
      %v3709 = vld [vmem:[%s3701 + $0x38] sm:$0xff]
      %s3710 = scalar_lea.vmem %s7, %s126
      %v3711 = vld [vmem:[%s3710] sm:$0x3]
      %v3713 = vlaneseq
      %v3714 = vshrl.u32 %v3713, 7
      %v3715 = vsub.s32 0, %v3714
      %v3716 = vrot.slane %v3711, %v3715
      %v3717 = vlaneseq
      %v3718 = vshrl.u32 %v3717, 7
      %v3719 = vsub.s32 1, %v3718
      %v3720 = vrot.slane %v3711, %v3719
      %v3731 = vunpack.c.l.b16 %v3702
      %v3732 = vunpack.c.h.b16 %v3702
      %v3733 = vunpack.c.l.b16 %v3703
      %v3734 = vunpack.c.h.b16 %v3703
      %v3735 = vunpack.c.l.b16 %v3704
      %v3736 = vunpack.c.h.b16 %v3704
      %v3737 = vunpack.c.l.b16 %v3705
      %v3738 = vunpack.c.h.b16 %v3705
      %v3739 = vunpack.c.l.b16 %v3706
      %v3740 = vunpack.c.h.b16 %v3706
      %v3741 = vunpack.c.l.b16 %v3707
      %v3742 = vunpack.c.h.b16 %v3707
      %v3743 = vunpack.c.l.b16 %v3708
      %v3744 = vunpack.c.h.b16 %v3708
      %v3745 = vunpack.c.l.b16 %v3709
      %v3746 = vunpack.c.h.b16 %v3709
      %v3747 = vpack.c.b16 %v3733, %v3731
      %v3748 = vpack.c.b16 %v3734, %v3732
      %v3749 = vpack.c.b16 %v3737, %v3735
      %v3750 = vpack.c.b16 %v3738, %v3736
      %v3751 = vpack.c.b16 %v3741, %v3739
      %v3752 = vpack.c.b16 %v3742, %v3740
      %v3753 = vpack.c.b16 %v3745, %v3743
      %v3754 = vpack.c.b16 %v3746, %v3744
      %v3764 = vsel %vm59, %v3698, 0
      %v3767 = vsel %vm59, %v3699, 0
      %3769 = vmatprep.subr.bf16.mxu0 0
      %3770 = vmatpush1.bf16.msra.mxu0 0
      %3771 = vmatprep.subr.bf16.mxu0 0
      %3772 = vmatpush1.bf16.msra.mxu0 0
      %3773 = vmatprep.subr.bf16.mxu0 0
      %3774 = vmatpush1.bf16.msra.mxu0 0
      %3775 = vmatprep.subr.bf16.mxu0 0
      %3776 = vmatpush1.bf16.msra.mxu0 0
      %3777 = vmatprep.subr.bf16.mxu0 %v3754
      %3778 = vmatpush1.bf16.msra.mxu0 %v3753
      %3779 = vmatprep.subr.bf16.mxu0 %v3752
      %3780 = vmatpush1.bf16.msra.mxu0 %v3751
      %3781 = vmatprep.subr.bf16.mxu0 %v3750
      %3782 = vmatpush1.bf16.msra.mxu0 %v3749
      %3783 = vmatprep.subr.bf16.mxu0 %v3748
      %3784 = vmatpush1.bf16.msra.mxu0 %v3747
      %3785 = vmatprep.subr.bf16.mxu0 0
      %3786 = vmatpush2.bf16.msra.mxu0 0
      %3787 = vmatprep.subr.bf16.mxu0 0
      %3788 = vmatpush2.bf16.msra.mxu0 0
      %3789 = vmatprep.subr.bf16.mxu0 0
      %3790 = vmatpush2.bf16.msra.mxu0 0
      %3791 = vmatprep.subr.bf16.mxu0 0
      %3792 = vmatpush2.bf16.msra.mxu0 0
      %3793 = vmatprep.subr.bf16.mxu0 0
      %3794 = vmatpush2.bf16.msra.mxu0 0
      %3795 = vmatprep.subr.bf16.mxu0 0
      %3796 = vmatpush2.bf16.msra.mxu0 0
      %3797 = vmatprep.subr.bf16.mxu0 0
      %3798 = vmatpush2.bf16.msra.mxu0 0
      %3799 = vmatprep.subr.bf16.mxu0 0
      %3800 = vmatpush2.bf16.msra.mxu0 0
      %3801 = vmatprep.mubr.bf16.mxu0 0
      %3802 = vmatmul.mubr.bf16.gmra.mxu0 %v3764
      %v3803 = vpop.f32.mrf.mxu0
      %v3804 = vadd.f32 %v3716, %v3803
      %v3805 = vpop.f32.mrf.mxu0
      %v3806 = vadd.f32 %v3720, %v3805
      %v3807 = vpop.f32.mrf.mxu0
      %v3808 = vadd.f32 %v3716, %v3807
      %v3809 = vpop.f32.mrf.mxu0
      %v3810 = vadd.f32 %v3720, %v3809
      %3811 = vmatprep.mubr.bf16.mxu0 0
      %3812 = vmatmul.mubr.bf16.gmra.mxu0 %v3767
      %v3813 = vpop.f32.mrf.mxu0
      %v3814 = vadd.f32 %v3716, %v3813
      %v3815 = vpop.f32.mrf.mxu0
      %v3816 = vadd.f32 %v3720, %v3815
      %v3817 = vpop.f32.mrf.mxu0
      %v3818 = vadd.f32 %v3716, %v3817
      %v3819 = vpop.f32.mrf.mxu0
      %v3820 = vadd.f32 %v3720, %v3819
      %3821 = vdwg.mxu0
      %v3822 = vmax.f32 %v3804, 0.0
      %v3823 = vmax.f32 %v3806, 0.0
      %v3824 = vmax.f32 %v3808, 0.0
      %v3825 = vmax.f32 %v3810, 0.0
      %v3826 = vmax.f32 %v3814, 0.0
      %v3827 = vmax.f32 %v3816, 0.0
      %v3828 = vmax.f32 %v3818, 0.0
      %v3829 = vmax.f32 %v3820, 0.0
      %v3830 = vpack.c.bf16 %v3824, %v3822
      %v3831 = vpack.c.bf16 %v3825, %v3823
      %v3832 = vpack.c.bf16 %v3828, %v3826
      %v3833 = vpack.c.bf16 %v3829, %v3827
      %s3834 = smul.u32 %s50, 32
      %s3835 = smul.addr %s3834, 4
      %s3836 = scalar_lea.vmem %s8, %s3835
      %v3837 = vld [vmem:[%s3836] sm:$0xf]
      %v3838 = vld [vmem:[%s3836 + $0x4] sm:$0xf]
      %v3839 = vld [vmem:[%s3836 + $0x8] sm:$0xf]
      %v3840 = vld [vmem:[%s3836 + $0xc] sm:$0xf]
      %v3841 = vld [vmem:[%s3836 + $0x10] sm:$0xf]
      %v3842 = vld [vmem:[%s3836 + $0x14] sm:$0xf]
      %v3843 = vld [vmem:[%s3836 + $0x18] sm:$0xf]
      %v3844 = vld [vmem:[%s3836 + $0x1c] sm:$0xf]
      %v3845 = vld [vmem:[%s3836 + $0x20] sm:$0xf]
      %v3846 = vld [vmem:[%s3836 + $0x24] sm:$0xf]
      %v3847 = vld [vmem:[%s3836 + $0x28] sm:$0xf]
      %v3848 = vld [vmem:[%s3836 + $0x2c] sm:$0xf]
      %v3849 = vld [vmem:[%s3836 + $0x30] sm:$0xf]
      %v3850 = vld [vmem:[%s3836 + $0x34] sm:$0xf]
      %v3851 = vld [vmem:[%s3836 + $0x38] sm:$0xf]
      %v3852 = vld [vmem:[%s3836 + $0x3c] sm:$0xf]
      %v3853 = vld [vmem:[%s3836 + $0x40] sm:$0xf]
      %v3854 = vld [vmem:[%s3836 + $0x44] sm:$0xf]
      %v3855 = vld [vmem:[%s3836 + $0x48] sm:$0xf]
      %v3856 = vld [vmem:[%s3836 + $0x4c] sm:$0xf]
      %v3857 = vld [vmem:[%s3836 + $0x50] sm:$0xf]
      %v3858 = vld [vmem:[%s3836 + $0x54] sm:$0xf]
      %v3859 = vld [vmem:[%s3836 + $0x58] sm:$0xf]
      %v3860 = vld [vmem:[%s3836 + $0x5c] sm:$0xf]
      %v3861 = vld [vmem:[%s3836 + $0x60] sm:$0xf]
      %v3862 = vld [vmem:[%s3836 + $0x64] sm:$0xf]
      %v3863 = vld [vmem:[%s3836 + $0x68] sm:$0xf]
      %v3864 = vld [vmem:[%s3836 + $0x6c] sm:$0xf]
      %v3865 = vld [vmem:[%s3836 + $0x70] sm:$0xf]
      %v3866 = vld [vmem:[%s3836 + $0x74] sm:$0xf]
      %v3867 = vld [vmem:[%s3836 + $0x78] sm:$0xf]
      %v3868 = vld [vmem:[%s3836 + $0x7c] sm:$0xf]
      %s3869 = scalar_lea.vmem %s9, %s50
      %v3870 = vld [vmem:[%s3869] sm:$0x1]
      %v3872 = vlaneseq
      %v3873 = vshrl.u32 %v3872, 7
      %v3874 = vsub.s32 0, %v3873
      %v3875 = vrot.slane %v3870, %v3874
      %v3909 = vunpack.c.l.b16 %v3837
      %v3910 = vunpack.c.l.b16 %v3838
      %v3911 = vunpack.c.l.b16 %v3839
      %v3912 = vunpack.c.l.b16 %v3840
      %v3913 = vunpack.c.l.b16 %v3841
      %v3914 = vunpack.c.l.b16 %v3842
      %v3915 = vunpack.c.l.b16 %v3843
      %v3916 = vunpack.c.l.b16 %v3844
      %v3917 = vunpack.c.l.b16 %v3845
      %v3918 = vunpack.c.l.b16 %v3846
      %v3919 = vunpack.c.l.b16 %v3847
      %v3920 = vunpack.c.l.b16 %v3848
      %v3921 = vunpack.c.l.b16 %v3849
      %v3922 = vunpack.c.l.b16 %v3850
      %v3923 = vunpack.c.l.b16 %v3851
      %v3924 = vunpack.c.l.b16 %v3852
      %v3925 = vunpack.c.l.b16 %v3853
      %v3926 = vunpack.c.l.b16 %v3854
      %v3927 = vunpack.c.l.b16 %v3855
      %v3928 = vunpack.c.l.b16 %v3856
      %v3929 = vunpack.c.l.b16 %v3857
      %v3930 = vunpack.c.l.b16 %v3858
      %v3931 = vunpack.c.l.b16 %v3859
      %v3932 = vunpack.c.l.b16 %v3860
      %v3933 = vunpack.c.l.b16 %v3861
      %v3934 = vunpack.c.l.b16 %v3862
      %v3935 = vunpack.c.l.b16 %v3863
      %v3936 = vunpack.c.l.b16 %v3864
      %v3937 = vunpack.c.l.b16 %v3865
      %v3938 = vunpack.c.l.b16 %v3866
      %v3939 = vunpack.c.l.b16 %v3867
      %v3940 = vunpack.c.l.b16 %v3868
      %v3941 = vpack.c.b16 %v3910, %v3909
      %v3942 = vpack.c.b16 %v3912, %v3911
      %v3943 = vpack.c.b16 %v3914, %v3913
      %v3944 = vpack.c.b16 %v3916, %v3915
      %v3945 = vpack.c.b16 %v3918, %v3917
      %v3946 = vpack.c.b16 %v3920, %v3919
      %v3947 = vpack.c.b16 %v3922, %v3921
      %v3948 = vpack.c.b16 %v3924, %v3923
      %v3949 = vpack.c.b16 %v3926, %v3925
      %v3950 = vpack.c.b16 %v3928, %v3927
      %v3951 = vpack.c.b16 %v3930, %v3929
      %v3952 = vpack.c.b16 %v3932, %v3931
      %v3953 = vpack.c.b16 %v3934, %v3933
      %v3954 = vpack.c.b16 %v3936, %v3935
      %v3955 = vpack.c.b16 %v3938, %v3937
      %v3956 = vpack.c.b16 %v3940, %v3939
      %3973 = vmatprep.subr.bf16.mxu0 0
      %3974 = vmatpush1.bf16.msra.mxu0 %v3948
      %3975 = vmatprep.subr.bf16.mxu0 0
      %3976 = vmatpush1.bf16.msra.mxu0 %v3947
      %3977 = vmatprep.subr.bf16.mxu0 0
      %3978 = vmatpush1.bf16.msra.mxu0 %v3946
      %3979 = vmatprep.subr.bf16.mxu0 0
      %3980 = vmatpush1.bf16.msra.mxu0 %v3945
      %3981 = vmatprep.subr.bf16.mxu0 0
      %3982 = vmatpush1.bf16.msra.mxu0 %v3944
      %3983 = vmatprep.subr.bf16.mxu0 0
      %3984 = vmatpush1.bf16.msra.mxu0 %v3943
      %3985 = vmatprep.subr.bf16.mxu0 0
      %3986 = vmatpush1.bf16.msra.mxu0 %v3942
      %3987 = vmatprep.subr.bf16.mxu0 0
      %3988 = vmatpush1.bf16.msra.mxu0 %v3941
      %3989 = vmatprep.subr.bf16.mxu0 0
      %3990 = vmatpush2.bf16.msra.mxu0 %v3956
      %3991 = vmatprep.subr.bf16.mxu0 0
      %3992 = vmatpush2.bf16.msra.mxu0 %v3955
      %3993 = vmatprep.subr.bf16.mxu0 0
      %3994 = vmatpush2.bf16.msra.mxu0 %v3954
      %3995 = vmatprep.subr.bf16.mxu0 0
      %3996 = vmatpush2.bf16.msra.mxu0 %v3953
      %3997 = vmatprep.subr.bf16.mxu0 0
      %3998 = vmatpush2.bf16.msra.mxu0 %v3952
      %3999 = vmatprep.subr.bf16.mxu0 0
      %4000 = vmatpush2.bf16.msra.mxu0 %v3951
      %4001 = vmatprep.subr.bf16.mxu0 0
      %4002 = vmatpush2.bf16.msra.mxu0 %v3950
      %4003 = vmatprep.subr.bf16.mxu0 0
      %4004 = vmatpush2.bf16.msra.mxu0 %v3949
      %4005 = vmatprep.mubr.bf16.mxu0 %v3831
      %4006 = vmatmul.mubr.bf16.gmra.mxu0 %v3830
      %v4007 = vpop.f32.mrf.mxu0
      %v4008 = vadd.f32 %v3875, %v4007
      %v4009 = vpop.f32.mrf.mxu0
      %v4010 = vpop.f32.mrf.mxu0
      %v4011 = vadd.f32 %v3875, %v4010
      %v4012 = vpop.f32.mrf.mxu0
      %4013 = vmatprep.mubr.bf16.mxu0 %v3833
      %4014 = vmatmul.mubr.bf16.gmra.mxu0 %v3832
      %v4015 = vpop.f32.mrf.mxu0
      %v4016 = vadd.f32 %v3875, %v4015
      %v4017 = vpop.f32.mrf.mxu0
      %v4018 = vpop.f32.mrf.mxu0
      %v4019 = vadd.f32 %v3875, %v4018
      %v4020 = vpop.f32.mrf.mxu0
      %4021 = vdwg.mxu0
      %v4022 = vadd.f32 %v3642, %v4008
      %v4023 = vadd.f32 %v3643, %v4011
      %v4024 = vadd.f32 %v3644, %v4016
      %v4025 = vadd.f32 %v3645, %v4019
    $region54: #{tpu_custom_call.1} parent=1 // loop_footer
      %s54 = sadd.s32 1, %s50
    $region55: #{tpu_custom_call.1} parent=1 // loop_footer_branch
      %49 = sbr.rel target = $region51
    $region56: #{tpu_custom_call.1} parent=1 // loop_exit
      _
    %vm4026 = vcmask 523264
    %v4027 = vsel %vm4026, %v55, 0.0
    %4028 = vadd.xlane.f32.xlu0 %v4027
    %v4029 = vpop.xlane.xlu0 %4028
    %v4030 = vsel %vm4026, %v56, 0.0
    %4031 = vadd.xlane.f32.xlu0 %v4030
    %v4032 = vpop.xlane.xlu0 %4031
    %v4033 = vsel %vm4026, %v57, 0.0
    %4034 = vadd.xlane.f32.xlu0 %v4033
    %v4035 = vpop.xlane.xlu0 %4034
    %v4036 = vsel %vm4026, %v58, 0.0
    %4037 = vadd.xlane.f32.xlu0 %v4036
    %v4038 = vpop.xlane.xlu0 %4037
    %v4039 = vrcp.pop 64.0
    %v4040 = vmul.f32 %v4029, %v4039
    %v4041 = vmul.f32 %v4032, %v4039
    %v4042 = vmul.f32 %v4035, %v4039
    %v4043 = vmul.f32 %v4038, %v4039
    %v4044 = vsub.f32 %v55, %v4040
    %v4045 = vsub.f32 %v56, %v4041
    %v4046 = vsub.f32 %v57, %v4042
    %v4047 = vsub.f32 %v58, %v4043
    %v4048 = vmul.f32 %v4044, %v4044
    %v4049 = vmul.f32 %v4045, %v4045
    %v4050 = vmul.f32 %v4046, %v4046
    %v4051 = vmul.f32 %v4047, %v4047
    %v4052 = vsel %vm4026, %v4048, 0.0
    %4053 = vadd.xlane.f32.xlu0 %v4052
    %v4054 = vpop.xlane.xlu0 %4053
    %v4055 = vsel %vm4026, %v4049, 0.0
    %4056 = vadd.xlane.f32.xlu0 %v4055
    %v4057 = vpop.xlane.xlu0 %4056
    %v4058 = vsel %vm4026, %v4050, 0.0
    %4059 = vadd.xlane.f32.xlu0 %v4058
    %v4060 = vpop.xlane.xlu0 %4059
    %v4061 = vsel %vm4026, %v4051, 0.0
    %4062 = vadd.xlane.f32.xlu0 %v4061
    %v4063 = vpop.xlane.xlu0 %4062
    %v4064 = vmul.f32 %v4054, %v4039
    %v4065 = vmul.f32 %v4057, %v4039
    %v4066 = vmul.f32 %v4060, %v4039
    %v4067 = vmul.f32 %v4063, %v4039
    %v4068 = vadd.f32 %v4064, 1e-05
    %v4069 = vadd.f32 %v4065, 1e-05
    %v4070 = vadd.f32 %v4066, 1e-05
    %v4071 = vadd.f32 %v4067, 1e-05
    %v4072 = vrsqrt.pop %v4068
    %v4073 = vrsqrt.pop %v4069
    %v4074 = vrsqrt.pop %v4070
    %v4075 = vrsqrt.pop %v4071
    %v4076 = vmul.f32 %v4044, %v4072
    %v4077 = vmul.f32 %v4045, %v4073
    %v4078 = vmul.f32 %v4046, %v4074
    %v4079 = vmul.f32 %v4047, %v4075
    %v4080 = vpack.c.bf16 %v4077, %v4076
    %v4081 = vpack.c.bf16 %v4079, %v4078
    %v4082 = vld [vmem:[%s10] sm:$0xf]
    %v4083 = vld [vmem:[%s10 + $0x4] sm:$0xf]
    %v4084 = vld [vmem:[%s10 + $0x8] sm:$0xf]
    %v4085 = vld [vmem:[%s10 + $0xc] sm:$0xf]
    %v4086 = vld [vmem:[%s10 + $0x10] sm:$0xf]
    %v4087 = vld [vmem:[%s10 + $0x14] sm:$0xf]
    %v4088 = vld [vmem:[%s10 + $0x18] sm:$0xf]
    %v4089 = vld [vmem:[%s10 + $0x1c] sm:$0xf]
    %v4090 = vld [vmem:[%s11] sm:$0x1]
    %v4092 = vlaneseq
    %v4093 = vshrl.u32 %v4092, 7
    %v4094 = vsub.s32 0, %v4093
    %v4095 = vrot.slane %v4090, %v4094
    %v4105 = vunpack.c.l.b16 %v4082
    %v4106 = vunpack.c.l.b16 %v4083
    %v4107 = vunpack.c.l.b16 %v4084
    %v4108 = vunpack.c.l.b16 %v4085
    %v4109 = vunpack.c.l.b16 %v4086
    %v4110 = vunpack.c.l.b16 %v4087
    %v4111 = vunpack.c.l.b16 %v4088
    %v4112 = vunpack.c.l.b16 %v4089
    %v4113 = vpack.c.b16 %v4106, %v4105
    %v4114 = vpack.c.b16 %v4108, %v4107
    %v4115 = vpack.c.b16 %v4110, %v4109
    %v4116 = vpack.c.b16 %v4112, %v4111
    %v4122 = vsel %vm4026, %v4080, 0
    %v4125 = vsel %vm4026, %v4081, 0
    %4127 = vmatprep.subr.bf16.mxu0 0
    %4128 = vmatpush1.bf16.msra.mxu0 0
    %4129 = vmatprep.subr.bf16.mxu0 0
    %4130 = vmatpush1.bf16.msra.mxu0 0
    %4131 = vmatprep.subr.bf16.mxu0 0
    %4132 = vmatpush1.bf16.msra.mxu0 0
    %4133 = vmatprep.subr.bf16.mxu0 0
    %4134 = vmatpush1.bf16.msra.mxu0 0
    %4135 = vmatprep.subr.bf16.mxu0 0
    %4136 = vmatpush1.bf16.msra.mxu0 %v4116
    %4137 = vmatprep.subr.bf16.mxu0 0
    %4138 = vmatpush1.bf16.msra.mxu0 %v4115
    %4139 = vmatprep.subr.bf16.mxu0 0
    %4140 = vmatpush1.bf16.msra.mxu0 %v4114
    %4141 = vmatprep.subr.bf16.mxu0 0
    %4142 = vmatpush1.bf16.msra.mxu0 %v4113
    %4143 = vmatprep.subr.bf16.mxu0 0
    %4144 = vmatpush2.bf16.msra.mxu0 0
    %4145 = vmatprep.subr.bf16.mxu0 0
    %4146 = vmatpush2.bf16.msra.mxu0 0
    %4147 = vmatprep.subr.bf16.mxu0 0
    %4148 = vmatpush2.bf16.msra.mxu0 0
    %4149 = vmatprep.subr.bf16.mxu0 0
    %4150 = vmatpush2.bf16.msra.mxu0 0
    %4151 = vmatprep.subr.bf16.mxu0 0
    %4152 = vmatpush2.bf16.msra.mxu0 0
    %4153 = vmatprep.subr.bf16.mxu0 0
    %4154 = vmatpush2.bf16.msra.mxu0 0
    %4155 = vmatprep.subr.bf16.mxu0 0
    %4156 = vmatpush2.bf16.msra.mxu0 0
    %4157 = vmatprep.subr.bf16.mxu0 0
    %4158 = vmatpush2.bf16.msra.mxu0 0
    %4159 = vmatprep.mubr.bf16.mxu0 0
    %4160 = vmatmul.mubr.bf16.gmra.mxu0 %v4122
    %v4161 = vpop.f32.mrf.mxu0
    %v4162 = vadd.f32 %v4095, %v4161
    %v4163 = vpop.f32.mrf.mxu0
    %v4164 = vpop.f32.mrf.mxu0
    %v4165 = vadd.f32 %v4095, %v4164
    %v4166 = vpop.f32.mrf.mxu0
    %4167 = vmatprep.mubr.bf16.mxu0 0
    %4168 = vmatmul.mubr.bf16.gmra.mxu0 %v4125
    %v4169 = vpop.f32.mrf.mxu0
    %v4170 = vadd.f32 %v4095, %v4169
    %v4171 = vpop.f32.mrf.mxu0
    %v4172 = vpop.f32.mrf.mxu0
    %v4173 = vadd.f32 %v4095, %v4172
    %v4174 = vpop.f32.mrf.mxu0
    %4175 = vdwg.mxu0
    %4176 = vst [vmem:[#allocation2] sm:$0xff] %v4162
    %4177 = vst [vmem:[#allocation2 + $0x8] sm:$0xff] %v4165
    %4178 = vst [vmem:[#allocation2 + $0x10] sm:$0xff] %v4170
    %4179 = vst [vmem:[#allocation2 + $0x18] sm:$0xff] %v4173
    // Predicated region
    $region57: #{tpu_custom_call.1} parent=1 // pred_check
      _
    $region58: #{tpu_custom_call.1} parent=1 // pred_check_branch
      %4181 = sbr.rel (0) target = $region60
    $region59: #{tpu_custom_call.1} parent=1 // pred_region
      %s4183 = ssub.s32 512, 512
      %4184 = vsyncadd [#allocation3], %s4183
      %s4185 = sshll.u32 [#allocation2], 4
      %s4186 = int_to_ptr.vmem [resolvable:$true] %s4185
      %4191 = dma.vmem_to_hbm [thread:$0]  %s4186, 512, %s12, [#allocation3], 128, 128, 8
    $region60: #{tpu_custom_call.1} parent=1 // pred_fallthru
      _
    // Predicated region
    $region61: #{tpu_custom_call.1} parent=1 // pred_check
      _
    $region62: #{tpu_custom_call.1} parent=1 // pred_check_branch
      %4193 = sbr.rel (0) target = $region64
    $region63: #{tpu_custom_call.1} parent=1 // pred_region
      %4194 = dma.done [#allocation3], 512
    $region64: #{tpu_custom_call.1} parent=1 // pred_fallthru
      _
    %4195 = vsyncpa [#allocation3], 1

</llo_original>
